<compile_context>
chip_gen: v5e
topology: v5e:2x2
jax: 0.10.0
libtpu: 0.0.40
codegen_flags: <defaults>
</compile_context>

<pallas_src>
import jax
import jax.numpy as jnp
from jax import lax
from jax.experimental import pallas as pl
from jax.experimental.pallas import tpu as pltpu


_MIN_PALLAS_ELEMENTS = 1 << 20   # below ~4 MiB (f32) the fused XLA reduce wins
_MAX_BLOCK_ELEMS = 1 << 20       # 4 MiB f32 intermediates / input tile (v7x-safe)
_DEFAULT_VMEM_LIMIT = 48 * 1024 * 1024


def _round_up(x, m):
    return ((x + m - 1) // m) * m


def _choose_lane(n):
    """Largest lane width in {512, 256, 128} dividing n (None -> XLA fallback)."""
    for lane in (512, 256, 128):
        if n % lane == 0:
            return lane
    return None


def _tpu_block_budget():
    """(max block elems, vmem_limit_bytes), keyed on chip VMEM when queryable.

    v7x has only 64 MiB VMEM per TensorCore, so the default stays at 4 MiB
    tiles; v5e/v6e (128 MiB physical) get 8 MiB tiles and a larger scoped
    limit.  Guarded so a missing/renamed introspection API degrades safely.
    """
    max_elems, vmem_limit = _MAX_BLOCK_ELEMS, _DEFAULT_VMEM_LIMIT
    try:
        info = pltpu.get_tpu_info()
        cap = getattr(info, "vmem_capacity_bytes", None)
        if cap is not None and cap >= 100 * 1024 * 1024:      # v5e / v6e
            max_elems = 2 * _MAX_BLOCK_ELEMS
            vmem_limit = 80 * 1024 * 1024
    except Exception:
        pass
    return max_elems, vmem_limit


def _make_diff_sums_kernel(block_rows, lane, inner, rows, need_sq, need_mask):
    """Streaming |diff| / diff^2 reduction with fused scalar epilogue.

    Outputs are one f32 scalar per split, shape (n_splits, 1, 1); the (8, lane)
    running partials live in VMEM scratch (resident across the inner axis).
    """

    def kernel(img_ref, rec_ref, *rest):
        if need_sq:
            abs_out_ref, sq_out_ref, abs_acc, sq_acc = rest
        else:
            abs_out_ref, abs_acc = rest
            sq_out_ref = sq_acc = None

        s = pl.program_id(0)   # split (parallel) axis
        i = pl.program_id(1)   # block (arbitrary / reduction) axis

        @pl.when(i == 0)
        def _init():
            abs_acc[...] = jnp.zeros_like(abs_acc)
            if need_sq:
                sq_acc[...] = jnp.zeros_like(sq_acc)

        diff = rec_ref[...].astype(jnp.float32) - img_ref[...].astype(jnp.float32)

        if need_mask:
            # Zero rows past the true array extent.  `g` is the *logical* block
            # index (unclamped), so this also zeroes any duplicated overhang
            # block re-read via the clamped index_map.
            g = s * inner + i
            row = g * block_rows + lax.broadcasted_iota(
                jnp.int32, (block_rows, 1), 0)
            diff = jnp.where(row < rows, diff, 0.0)

        # Pure VPU adds onto the resident (8, lane) partials: the reshape
        # follows the native (8, 128) tiling, so it is layout-free.
        abs_acc[...] += jnp.sum(
            jnp.abs(diff).reshape(block_rows // 8, 8, lane), axis=0)
        if need_sq:
            sq_acc[...] += jnp.sum(
                (diff * diff).reshape(block_rows // 8, 8, lane), axis=0)

        # Fused epilogue: one XLU cross-lane reduce per split, written to the
        # tiny scalar output (kills the wrapper-side jnp.sum launch).
        @pl.when(i == inner - 1)
        def _finalize():
            abs_out_ref[...] = jnp.sum(abs_acc[...], keepdims=True).reshape(1, 1, 1)
            if need_sq:
                sq_out_ref[...] = jnp.sum(sq_acc[...], keepdims=True).reshape(1, 1, 1)

    return kernel


def _diff_sums(images, reconstructions, need_sq):
    """Returns (sum|rec-img|, sum((rec-img)^2)); the latter is 0 if not needed."""
    assert images.shape == reconstructions.shape
    n = images.size
    flat_i = images.reshape(-1)
    flat_r = reconstructions.reshape(-1)

    lane = _choose_lane(n)
    if lane is None or n < _MIN_PALLAS_ELEMENTS:
        # Small inputs (pallas_call fixed cost dominates) or element counts not
        # divisible by 128 (would otherwise need a padding HBM copy).  XLA's
        # fused abs-diff reduction is also memory-bound and near roofline.
        diff = flat_r.astype(jnp.float32) - flat_i.astype(jnp.float32)
        abs_sum = jnp.sum(jnp.abs(diff))
        sq_sum = jnp.sum(diff * diff) if need_sq else jnp.float32(0.0)
        return abs_sum, sq_sum

    rows = n // lane
    img2d = flat_i.reshape(rows, lane)     # bitcast view, no HBM copy
    rec2d = flat_r.reshape(rows, lane)

    max_block_elems, vmem_limit = _tpu_block_budget()
    # Block sized by f32 working-set (keeps intermediates bounded even for
    # bf16/int8 inputs, which are cast to f32 in-kernel — required on v5e where
    # the VPU has no bf16).  TODO(synk): per-dtype byte-sized tiles (review
    # item 7) are deliberately not applied on v7x to respect its 64 MiB VMEM.
    block_cap = max(8, max_block_elems // lane)

    # Always 2 splits so both v7x TensorCores get work; on single-core chips
    # this only restructures the loop.  Re-derive block_rows so the split is
    # (nearly) even instead of dropping to one core for odd block counts.
    n_splits = 2
    n_blocks = n_splits * pl.cdiv(pl.cdiv(rows, block_cap), n_splits)
    block_rows = min(block_cap, _round_up(pl.cdiv(rows, n_blocks), 8))
    inner = n_blocks // n_splits
    max_block = (rows - 1) // block_rows          # last in-range block index
    need_mask = (n_blocks * block_rows != rows)   # ragged tail / overhang block

    kernel = _make_diff_sums_kernel(block_rows, lane, inner, rows,
                                    need_sq, need_mask)

    # Clamped index_map keeps every DMA in range; the in-kernel mask zeroes any
    # duplicated overhang contribution.
    in_spec = pl.BlockSpec(
        (block_rows, lane),
        lambda s, i: (jnp.minimum(s * inner + i, max_block), 0))

    scalar_shape = jax.ShapeDtypeStruct((n_splits, 1, 1), jnp.float32)
    scalar_spec = pl.BlockSpec((1, 1, 1), lambda s, i: (s, 0, 0))
    out_shape = (scalar_shape, scalar_shape) if need_sq else (scalar_shape,)
    out_specs = (scalar_spec, scalar_spec) if need_sq else (scalar_spec,)

    scratch = [pltpu.VMEM((8, lane), jnp.float32)]
    if need_sq:
        scratch.append(pltpu.VMEM((8, lane), jnp.float32))

    results = pl.pallas_call(
        kernel,
        out_shape=out_shape,
        grid_spec=pltpu.PrefetchScalarGridSpec(
            num_scalar_prefetch=0,
            grid=(n_splits, inner),
            in_specs=[in_spec, in_spec],
            out_specs=out_specs,
            scratch_shapes=tuple(scratch)),
        compiler_params=pltpu.CompilerParams(
            dimension_semantics=("parallel", "arbitrary"),
            vmem_limit_bytes=vmem_limit),
    )(img2d, rec2d)

    # Only n_splits (=2) scalars remain; this fuses into the weighted-sum math.
    abs_sum = jnp.sum(results[0])
    sq_sum = jnp.sum(results[1]) if need_sq else jnp.float32(0.0)
    return abs_sum, sq_sum


class Loss:
    """JAX/Pallas port of vector_quants.loss.Loss (forward only)."""

    def __init__(
        self,
        perceptual_loss_type=0,
        adversarial_loss_type=0,
        l1_loss_weight=1.0,
        l2_loss_weight=0.0,
        perceptual_loss_weight=1.0,
        adversarial_loss_weight=0.0,
        codebook_loss_weight=1.0,
        entropy_loss_weight=0.0,
        sample_entropy_loss_weight=0.0,
        codebook_entropy_loss_weight=0.0,
        kl_loss_weight=0.0005,
    ):
        # TODO(synk): perceptual_loss_type != 0 needs an LPIPS (VGG/Alex/Squeeze)
        # network; only the default (None) branch is implemented.
        self.perceptual_loss = None
        self.adversarial_loss = None  # get_adversarial_loss always returns None
        self.l1_loss_weight = l1_loss_weight
        self.l2_loss_weight = l2_loss_weight
        self.perceptual_loss_weight = perceptual_loss_weight
        self.adversarial_loss_weight = adversarial_loss_weight
        self.codebook_loss_weight = codebook_loss_weight
        self.entropy_loss_weight = entropy_loss_weight
        self.kl_loss_weight = kl_loss_weight
        self.sample_entropy_loss_weight = sample_entropy_loss_weight
        self.codebook_entropy_loss_weight = codebook_entropy_loss_weight

    @property
    def keys(self):
        train_keys = [
            "l1_loss", "l2_loss", "perceptual_loss", "adversarial_loss",
            "codebook_loss", "entropy_loss", "sample_entropy_loss",
            "codebook_entropy_loss", "kl_loss", "loss",
        ]
        return train_keys + ["valid_" + k for k in train_keys]

    def __call__(self, images, reconstructions, **kwargs):
        zero = jnp.float32(0.0)

        need_l1 = self.l1_loss_weight != 0
        need_l2 = self.l2_loss_weight != 0
        if need_l1 or need_l2:
            abs_sum, sq_sum = _diff_sums(images, reconstructions, need_sq=need_l2)
            inv_n = jnp.float32(1.0 / images.size)
            l1_loss = abs_sum * inv_n if need_l1 else zero
            l2_loss = sq_sum * inv_n if need_l2 else zero
        else:
            l1_loss = zero
            l2_loss = zero

        # perceptual / adversarial sub-models are None under the default config.
        perceptual_loss = zero
        adversarial_loss = zero

        codebook_loss = jnp.asarray(kwargs.get("codebook_loss", zero), jnp.float32)
        entropy_loss = jnp.asarray(kwargs.get("entropy_loss", zero), jnp.float32)
        kl_loss = jnp.asarray(kwargs.get("kl_loss", zero), jnp.float32)
        sample_entropy_loss = jnp.asarray(
            kwargs.get("sample_entropy_loss", zero), jnp.float32)
        codebook_entropy_loss = jnp.asarray(
            kwargs.get("codebook_entropy_loss", zero), jnp.float32)

        loss = (
            self.l1_loss_weight * l1_loss
            + self.l2_loss_weight * l2_loss
            + self.perceptual_loss_weight * perceptual_loss
            + self.adversarial_loss_weight * adversarial_loss
            + self.codebook_loss_weight * codebook_loss
            + self.entropy_loss_weight * entropy_loss
            + self.kl_loss_weight * kl_loss
            + self.sample_entropy_loss_weight * sample_entropy_loss
            + self.codebook_entropy_loss_weight * codebook_entropy_loss
        )

        # NOTE: the PyTorch module does .cpu().item() here; we keep device
        # scalars so the call stays jittable and non-blocking.
        loss_dict = {
            "l1_loss": l1_loss,
            "l2_loss": l2_loss,
            "perceptual_loss": perceptual_loss,
            "adversarial_loss": adversarial_loss,
            "codebook_loss": codebook_loss,
            "entropy_loss": entropy_loss,
            "sample_entropy_loss": sample_entropy_loss,
            "codebook_entropy_loss": codebook_entropy_loss,
            "kl_loss": kl_loss,
            "loss": loss,
        }
        return loss, loss_dict


if __name__ == "__main__":
    key = jax.random.PRNGKey(0)
    ks = jax.random.split(key, 8)

    codebook_loss = jnp.abs(jax.random.normal(ks[0], (), dtype=jnp.float32))
    kl_loss = jnp.abs(jax.random.normal(ks[1], (), dtype=jnp.float32))

    def ref_losses(img, rec):
        d = rec.astype(jnp.float32) - img.astype(jnp.float32)
        return jnp.mean(jnp.abs(d)), jnp.mean(d * d)

    # ---- Case 1: small NCHW demo shape (XLA fallback path) ----
    imgs = jax.random.normal(ks[2], (2, 4, 16, 16), dtype=jnp.float32)
    recs = imgs + 0.1 * jax.random.normal(ks[3], (2, 4, 16, 16), dtype=jnp.float32)
    loss1, dict1 = Loss()(imgs, recs, codebook_loss=codebook_loss, kl_loss=kl_loss)
    loss1 = jax.block_until_ready(loss1)
    r1, _ = ref_losses(imgs, recs)
    ref1 = 1.0 * r1 + 1.0 * codebook_loss + 0.0005 * kl_loss
    assert jnp.allclose(loss1, ref1, rtol=1e-5, atol=1e-6), (float(loss1), float(ref1))

    # ---- Case 2: Pallas path, multi-block inner loop, 2-way split, l1 + l2 ----
    imgs = jax.random.normal(ks[4], (16, 3, 256, 256), dtype=jnp.float32)
    recs = imgs + 0.05 * jax.random.normal(ks[5], (16, 3, 256, 256), dtype=jnp.float32)
    loss2, dict2 = Loss(l2_loss_weight=0.5)(
        imgs, recs, codebook_loss=codebook_loss, kl_loss=kl_loss)
    loss2 = jax.block_until_ready(loss2)
    r1, r2 = ref_losses(imgs, recs)
    assert jnp.allclose(dict2["l1_loss"], r1, rtol=1e-4, atol=1e-6)
    assert jnp.allclose(dict2["l2_loss"], r2, rtol=1e-4, atol=1e-6)
    ref2 = 1.0 * r1 + 0.5 * r2 + 1.0 * codebook_loss + 0.0005 * kl_loss
    assert jnp.allclose(loss2, ref2, rtol=1e-4, atol=1e-6), (float(loss2), float(ref2))

    # ---- Case 3: Pallas path with a ragged last block (row mask), default config ----
    imgs = jax.random.normal(ks[6], (4, 3, 352, 352), dtype=jnp.float32)
    recs = imgs + 0.05 * jax.random.normal(ks[7], (4, 3, 352, 352), dtype=jnp.float32)
    loss3, dict3 = Loss()(imgs, recs, codebook_loss=codebook_loss, kl_loss=kl_loss)
    loss3 = jax.block_until_ready(loss3)
    r1, _ = ref_losses(imgs, recs)
    ref3 = 1.0 * r1 + 1.0 * codebook_loss + 0.0005 * kl_loss
    assert jnp.allclose(dict3["l1_loss"], r1, rtol=1e-4, atol=1e-6)
    assert jnp.allclose(loss3, ref3, rtol=1e-4, atol=1e-6), (float(loss3), float(ref3))

    print("KERNEL_OK")
</pallas_src>

<mosaic_0001>
module attributes {stable_mosaic.version = 11 : i64} {
  func.func @kernel(%arg0: i32, %arg1: i32, %arg2: memref<1536x512xf32, #tpu.memory_space<vmem>>, %arg3: memref<1536x512xf32, #tpu.memory_space<vmem>>, %arg4: memref<1x1x1xf32, #tpu.memory_space<vmem>>, %arg5: memref<1x1x1xf32, #tpu.memory_space<vmem>>, %arg6: memref<8x512xf32, #tpu.memory_space<vmem>>, %arg7: memref<8x512xf32, #tpu.memory_space<vmem>>) attributes {dimension_semantics = [#tpu.dimension_semantics<parallel>, #tpu.dimension_semantics<arbitrary>], iteration_bounds = array<i64: 2, 2>, scalar_prefetch = 0 : i64, scratch_operands = 2 : i64, tpu.core_type = #tpu.core_type<tc>, window_params = [{transform_indices = @transform_0, window_bounds = array<i64: 1536, 512>}, {transform_indices = @transform_1, window_bounds = array<i64: 1536, 512>}, {transform_indices = @transform_2, window_bounds = array<i64: 1, 1, 1>}, {transform_indices = @transform_3, window_bounds = array<i64: 1, 1, 1>}]} {
    %c0_i32 = arith.constant 0 : i32
    %0 = arith.cmpi eq, %arg1, %c0_i32 : i32
    %1 = arith.extui %0 : i1 to i32
    %c0_i32_0 = arith.constant 0 : i32
    %2 = arith.cmpi ne, %1, %c0_i32_0 : i32
    scf.if %2 {
      %cst_14 = arith.constant 0.000000e+00 : f32
      %21 = vector.broadcast %cst_14 : f32 to vector<8x512xf32>
      %c0_15 = arith.constant 0 : index
      %c0_16 = arith.constant 0 : index
      %22 = vector.load %arg6[%c0_15, %c0_16] : memref<8x512xf32, #tpu.memory_space<vmem>>, vector<8x512xf32>
      tpu.vector_store %arg6[%c0_15, %c0_16], %21 {strides = array<i32>} : memref<8x512xf32, #tpu.memory_space<vmem>>, vector<8x512xf32>,
      %cst_17 = arith.constant 0.000000e+00 : f32
      %23 = vector.broadcast %cst_17 : f32 to vector<8x512xf32>
      %c0_18 = arith.constant 0 : index
      %c0_19 = arith.constant 0 : index
      %24 = vector.load %arg7[%c0_18, %c0_19] : memref<8x512xf32, #tpu.memory_space<vmem>>, vector<8x512xf32>
      tpu.vector_store %arg7[%c0_18, %c0_19], %23 {strides = array<i32>} : memref<8x512xf32, #tpu.memory_space<vmem>>, vector<8x512xf32>,
    } else {
    }
    %c0 = arith.constant 0 : index
    %c0_1 = arith.constant 0 : index
    %3 = vector.load %arg3[%c0, %c0_1] : memref<1536x512xf32, #tpu.memory_space<vmem>>, vector<1536x512xf32>
    %c0_2 = arith.constant 0 : index
    %c0_3 = arith.constant 0 : index
    %4 = vector.load %arg2[%c0_2, %c0_3] : memref<1536x512xf32, #tpu.memory_space<vmem>>, vector<1536x512xf32>
    %5 = arith.subf %3, %4 : vector<1536x512xf32>
    %c0_4 = arith.constant 0 : index
    %c0_5 = arith.constant 0 : index
    %6 = vector.load %arg6[%c0_4, %c0_5] : memref<8x512xf32, #tpu.memory_space<vmem>>, vector<8x512xf32>
    %7 = math.absf %5 : vector<1536x512xf32>
    %8 = vector.shape_cast %7 : vector<1536x512xf32> to vector<192x8x512xf32>
    %cst = arith.constant dense<0.000000e+00> : vector<8x512xf32>
    %9 = vector.multi_reduction <add>, %8, %cst [0] : vector<192x8x512xf32> to vector<8x512xf32>
    %10 = arith.addf %6, %9 : vector<8x512xf32>
    %c0_6 = arith.constant 0 : index
    %c0_7 = arith.constant 0 : index
    %11 = vector.load %arg6[%c0_6, %c0_7] : memref<8x512xf32, #tpu.memory_space<vmem>>, vector<8x512xf32>
    tpu.vector_store %arg6[%c0_6, %c0_7], %10 {strides = array<i32>} : memref<8x512xf32, #tpu.memory_space<vmem>>, vector<8x512xf32>,
    %c0_8 = arith.constant 0 : index
    %c0_9 = arith.constant 0 : index
    %12 = vector.load %arg7[%c0_8, %c0_9] : memref<8x512xf32, #tpu.memory_space<vmem>>, vector<8x512xf32>
    %13 = arith.mulf %5, %5 : vector<1536x512xf32>
    %14 = vector.shape_cast %13 : vector<1536x512xf32> to vector<192x8x512xf32>
    %cst_10 = arith.constant dense<0.000000e+00> : vector<8x512xf32>
    %15 = vector.multi_reduction <add>, %14, %cst_10 [0] : vector<192x8x512xf32> to vector<8x512xf32>
    %16 = arith.addf %12, %15 : vector<8x512xf32>
    %c0_11 = arith.constant 0 : index
    %c0_12 = arith.constant 0 : index
    %17 = vector.load %arg7[%c0_11, %c0_12] : memref<8x512xf32, #tpu.memory_space<vmem>>, vector<8x512xf32>
    tpu.vector_store %arg7[%c0_11, %c0_12], %16 {strides = array<i32>} : memref<8x512xf32, #tpu.memory_space<vmem>>, vector<8x512xf32>,
    %c1_i32 = arith.constant 1 : i32
    %18 = arith.cmpi eq, %arg1, %c1_i32 : i32
    %19 = arith.extui %18 : i1 to i32
    %c0_i32_13 = arith.constant 0 : i32
    %20 = arith.cmpi ne, %19, %c0_i32_13 : i32
    scf.if %20 {
      %c0_14 = arith.constant 0 : index
      %c0_15 = arith.constant 0 : index
      %21 = vector.load %arg6[%c0_14, %c0_15] : memref<8x512xf32, #tpu.memory_space<vmem>>, vector<8x512xf32>
      %22 = vector.shape_cast %21 : vector<8x512xf32> to vector<1x8x512xf32>
      %cst_16 = arith.constant dense<0.000000e+00> : vector<1xf32>
      %23 = vector.multi_reduction <add>, %22, %cst_16 [1, 2] : vector<1x8x512xf32> to vector<1xf32>
      %24 = vector.shape_cast %23 : vector<1xf32> to vector<1x1x1xf32>
      %25 = vector.extract %24[0, 0, 0] : f32 from vector<1x1x1xf32>
      %26 = vector.broadcast %25 : f32 to vector<1x1xf32>
      %27 = vector.shape_cast %26 : vector<1x1xf32> to vector<1x1x1xf32>
      %c0_17 = arith.constant 0 : index
      %c0_18 = arith.constant 0 : index
      %c0_19 = arith.constant 0 : index
      %28 = vector.load %arg4[%c0_17, %c0_18, %c0_19] : memref<1x1x1xf32, #tpu.memory_space<vmem>>, vector<1x1x1xf32>
      tpu.vector_store %arg4[%c0_17, %c0_18, %c0_19], %27 {strides = array<i32>} : memref<1x1x1xf32, #tpu.memory_space<vmem>>, vector<1x1x1xf32>,
      %c0_20 = arith.constant 0 : index
      %c0_21 = arith.constant 0 : index
      %29 = vector.load %arg7[%c0_20, %c0_21] : memref<8x512xf32, #tpu.memory_space<vmem>>, vector<8x512xf32>
      %30 = vector.shape_cast %29 : vector<8x512xf32> to vector<1x8x512xf32>
      %cst_22 = arith.constant dense<0.000000e+00> : vector<1xf32>
      %31 = vector.multi_reduction <add>, %30, %cst_22 [1, 2] : vector<1x8x512xf32> to vector<1xf32>
      %32 = vector.shape_cast %31 : vector<1xf32> to vector<1x1x1xf32>
      %33 = vector.extract %32[0, 0, 0] : f32 from vector<1x1x1xf32>
      %34 = vector.broadcast %33 : f32 to vector<1x1xf32>
      %35 = vector.shape_cast %34 : vector<1x1xf32> to vector<1x1x1xf32>
      %c0_23 = arith.constant 0 : index
      %c0_24 = arith.constant 0 : index
      %c0_25 = arith.constant 0 : index
      %36 = vector.load %arg5[%c0_23, %c0_24, %c0_25] : memref<1x1x1xf32, #tpu.memory_space<vmem>>, vector<1x1x1xf32>
      tpu.vector_store %arg5[%c0_23, %c0_24, %c0_25], %35 {strides = array<i32>} : memref<1x1x1xf32, #tpu.memory_space<vmem>>, vector<1x1x1xf32>,
    } else {
    }
    return
  }
  func.func @transform_0(%arg0: i32, %arg1: i32) -> (i32, i32) {
    %c2_i32 = arith.constant 2 : i32
    %0 = arith.muli %arg0, %c2_i32 : i32
    %1 = arith.addi %0, %arg1 : i32
    %c3_i32 = arith.constant 3 : i32
    %2 = arith.minsi %1, %c3_i32 : i32
    %c0_i32 = arith.constant 0 : i32
    %c0_i32_0 = arith.constant 0 : i32
    return %2, %c0_i32 : i32, i32
  }
  func.func @transform_1(%arg0: i32, %arg1: i32) -> (i32, i32) {
    %c2_i32 = arith.constant 2 : i32
    %0 = arith.muli %arg0, %c2_i32 : i32
    %1 = arith.addi %0, %arg1 : i32
    %c3_i32 = arith.constant 3 : i32
    %2 = arith.minsi %1, %c3_i32 : i32
    %c0_i32 = arith.constant 0 : i32
    %c0_i32_0 = arith.constant 0 : i32
    return %2, %c0_i32 : i32, i32
  }
  func.func @transform_2(%arg0: i32, %arg1: i32) -> (i32, i32, i32) {
    %c0_i32 = arith.constant 0 : i32
    %c0_i32_0 = arith.constant 0 : i32
    %c0_i32_1 = arith.constant 0 : i32
    return %arg0, %c0_i32, %c0_i32_0 : i32, i32, i32
  }
  func.func @transform_3(%arg0: i32, %arg1: i32) -> (i32, i32, i32) {
    %c0_i32 = arith.constant 0 : i32
    %c0_i32_0 = arith.constant 0 : i32
    %c0_i32_1 = arith.constant 0 : i32
    return %arg0, %c0_i32, %c0_i32_0 : i32, i32, i32
  }
}

</mosaic_0001>

<llo_original>
// kernel: tpu_custom_call.1
$region0: #{tpu_custom_call.1}
  #allocation0 [shape = 'u32[]', space=smem, size = 0x4, offset = 0x4, fixed_abs, tag = 'smem constant byte address 0x4 - core index']
  #allocation1 [shape = 'u32[72,128]{1,0:T(1,128)}', space=vmem, size = 0x9000, scoped, tag = 'internal scratch']
  #allocation2 [shape = 'f32[8,512]{1,0:T(8,128)}', space=vmem, size = 0x4000, scoped, tag = 'scratch operand']
  #allocation3 [shape = 'f32[8,512]{1,0:T(8,128)}', space=vmem, size = 0x4000, scoped, tag = 'scratch operand']
  %s0 = inlined_call_operand.hbm [shape: f32[6144,512], index: 0, kind: input, shape index: {}]
  %s1 = inlined_call_operand.hbm [shape: f32[6144,512], index: 1, kind: input, shape index: {}]
  %s2 = inlined_call_operand.vmem [shape: f32[2,1,1], index: 2, kind: output, shape index: {0}]
  %s3 = inlined_call_operand.vmem [shape: f32[2,1,1], index: 3, kind: output, shape index: {1}]
  %4 = xla_tuple %s2, %s3
  %s5 = sld [smem:[#allocation0]]
  $region65: #{tpu_custom_call.1} parent=0
    _
  %s7 = ssub.s32 1, %s5
  %s8 = scalar_select 0, %s7, %s5
  $region1: #{tpu_custom_call.1} parent=0
    #allocation4 [shape = 'u8[6291456]{0}', space=vmem, size = 0x600000, scoped, tag = 'input window, operand 0']
    #allocation5 [shape = 's32[2]{0}', space=sflag, size = 0x8, scoped, tag = 'scoped memory for tpu_custom_call.1']
    #allocation6 [shape = 'u8[6291456]{0}', space=vmem, size = 0x600000, scoped, tag = 'input window, operand 1']
    #allocation7 [shape = 's32[2]{0}', space=sflag, size = 0x8, scoped, tag = 'scoped memory for tpu_custom_call.1']
    %9 = vsyncpa [#allocation5], 0
    %s10 = scalar_lea.sflag [#allocation5], 1
    %11 = vsyncpa %s10, 0
    %12 = vsyncpa [#allocation7], 0
    %s13 = scalar_lea.sflag [#allocation7], 1
    %14 = vsyncpa %s13, 0
    loop: start=0, step=1, limit=6
    $region2: #{tpu_custom_call.1} parent=1 // loop_pre_header
      _
    $region3: #{tpu_custom_call.1} parent=1 // loop_header
      %s16 = sphi 0, %s20
      %p17 = scmp.ge.s32.totalorder %s16, 6
      %s23 = sphi 0, %s35
      %s24 = sphi 0, %s31
      %s25 = sphi 0, %s23
      %s26 = sphi 0, %s24
      %s27 = sphi 0, %s25
      %s28 = sphi 0, %s26
      %s46 = sphi 0, %s48
      %s49 = sphi 0, %s46
      %s50 = sphi 0, %s49
      %s66 = sphi 0, %s50
      %s80 = sphi 0, %s82
      %s83 = sphi 0, %s80
      %s84 = sphi 0, %s83
      %s100 = sphi 0, %s84
      %s106 = sphi 0, %s108
      %s109 = sphi 0, %s106
      %s110 = sphi 0, %s109
      %s126 = sphi 0, %s110
      %s132 = sphi 0, %s134
      %s135 = sphi 0, %s132
      %s136 = sphi 0, %s135
      %s152 = sphi 0, %s136
    $region4: #{tpu_custom_call.1} parent=1 // loop_header_branch
      %19 = sbr.rel (%p17) target = $region8
    $region5: #{tpu_custom_call.1} parent=1 // loop_body
      %s21 = ssub.s32 %s16, 1
      %s22 = ssub.s32 %s16, 2
      %s29 = sadd.s32 1, %s24
      %p30 = scmp.ge.s32.totalorder %s29, 2
      %s31 = scalar_select %p30, 0, %s29
      %s32 = sadd.s32 1, %s23
      %s33 = scalar_select %p30, %s32, %s23
      %p34 = scmp.ge.s32.totalorder %s33, 2
      %s35 = scalar_select %p34, 0, %s33
      %s36 = smul.u32 %s23, 2
      %s37 = sadd.s32 %s36, %s24
      %p38 = scmp.lt.s32.totalorder %s37, 3
      %s39 = scalar_select %p38, %s37, 3
      %s40 = smul.u32 %s35, 2
      %s41 = sadd.s32 %s40, %s31
      %p42 = scmp.lt.s32.totalorder %s41, 3
      %s43 = scalar_select %p42, %s41, 3
      %s44 = ssub.s32 %s39, %s43
      %p45 = scmp.eq.s32.totalorder %s44, 0
      %s47 = sadd.s32 %s46, 1
      %s48 = scalar_select %p45, %s46, %s47
      %p51 = pneg %p45
      %p52 = scmp.eq.s32.totalorder %s16, 3
      %p53 = por %p51, %p52
      %p54 = scmp.ne.s32.totalorder %s46, %s49
      %p55 = scmp.eq.s32.totalorder %s16, 0
      %p56 = por %p54, %p55
      %p57 = scmp.ne.s32.totalorder %s46, %s49
      %p58 = scmp.eq.s32.totalorder %s21, 3
      %p59 = por %p57, %p58
      %p60 = scmp.ne.s32.totalorder %s49, %s50
      %p61 = scmp.eq.s32.totalorder %s21, 0
      %p62 = por %p60, %p61
      %p63 = scmp.ne.s32.totalorder %s49, %s50
      %p64 = scmp.eq.s32.totalorder %s22, 3
      %p65 = por %p63, %p64
      %p67 = scmp.ne.s32.totalorder %s50, %s66
      %p68 = scmp.eq.s32.totalorder %s22, 0
      %p69 = por %p67, %p68
      %s70 = smul.u32 %s23, 2
      %s71 = sadd.s32 %s70, %s24
      %p72 = scmp.lt.s32.totalorder %s71, 3
      %s73 = scalar_select %p72, %s71, 3
      %s74 = smul.u32 %s35, 2
      %s75 = sadd.s32 %s74, %s31
      %p76 = scmp.lt.s32.totalorder %s75, 3
      %s77 = scalar_select %p76, %s75, 3
      %s78 = ssub.s32 %s73, %s77
      %p79 = scmp.eq.s32.totalorder %s78, 0
      %s81 = sadd.s32 %s80, 1
      %s82 = scalar_select %p79, %s80, %s81
      %p85 = pneg %p79
      %p86 = scmp.eq.s32.totalorder %s16, 3
      %p87 = por %p85, %p86
      %p88 = scmp.ne.s32.totalorder %s80, %s83
      %p89 = scmp.eq.s32.totalorder %s16, 0
      %p90 = por %p88, %p89
      %p91 = scmp.ne.s32.totalorder %s80, %s83
      %p92 = scmp.eq.s32.totalorder %s21, 3
      %p93 = por %p91, %p92
      %p94 = scmp.ne.s32.totalorder %s83, %s84
      %p95 = scmp.eq.s32.totalorder %s21, 0
      %p96 = por %p94, %p95
      %p97 = scmp.ne.s32.totalorder %s83, %s84
      %p98 = scmp.eq.s32.totalorder %s22, 3
      %p99 = por %p97, %p98
      %p101 = scmp.ne.s32.totalorder %s84, %s100
      %p102 = scmp.eq.s32.totalorder %s22, 0
      %p103 = por %p101, %p102
      %s104 = ssub.s32 %s23, %s35
      %p105 = scmp.eq.s32.totalorder %s104, 0
      %s107 = sadd.s32 %s106, 1
      %s108 = scalar_select %p105, %s106, %s107
      %p111 = pneg %p105
      %p112 = scmp.eq.s32.totalorder %s16, 3
      %p113 = por %p111, %p112
      %p114 = scmp.ne.s32.totalorder %s106, %s109
      %p115 = scmp.eq.s32.totalorder %s16, 0
      %p116 = por %p114, %p115
      %p117 = scmp.ne.s32.totalorder %s106, %s109
      %p118 = scmp.eq.s32.totalorder %s21, 3
      %p119 = por %p117, %p118
      %p120 = scmp.ne.s32.totalorder %s109, %s110
      %p121 = scmp.eq.s32.totalorder %s21, 0
      %p122 = por %p120, %p121
      %p123 = scmp.ne.s32.totalorder %s109, %s110
      %p124 = scmp.eq.s32.totalorder %s22, 3
      %p125 = por %p123, %p124
      %p127 = scmp.ne.s32.totalorder %s110, %s126
      %p128 = scmp.eq.s32.totalorder %s22, 0
      %p129 = por %p127, %p128
      %s130 = ssub.s32 %s23, %s35
      %p131 = scmp.eq.s32.totalorder %s130, 0
      %s133 = sadd.s32 %s132, 1
      %s134 = scalar_select %p131, %s132, %s133
      %p137 = pneg %p131
      %p138 = scmp.eq.s32.totalorder %s16, 3
      %p139 = por %p137, %p138
      %p140 = scmp.ne.s32.totalorder %s132, %s135
      %p141 = scmp.eq.s32.totalorder %s16, 0
      %p142 = por %p140, %p141
      %p143 = scmp.ne.s32.totalorder %s132, %s135
      %p144 = scmp.eq.s32.totalorder %s21, 3
      %p145 = por %p143, %p144
      %p146 = scmp.ne.s32.totalorder %s135, %s136
      %p147 = scmp.eq.s32.totalorder %s21, 0
      %p148 = por %p146, %p147
      %p149 = scmp.ne.s32.totalorder %s135, %s136
      %p150 = scmp.eq.s32.totalorder %s22, 3
      %p151 = por %p149, %p150
      %p153 = scmp.ne.s32.totalorder %s136, %s152
      %p154 = scmp.eq.s32.totalorder %s22, 0
      %p155 = por %p153, %p154
      %p156 = scmp.le.s32.totalorder 1, %s16
      %p157 = scmp.lt.s32.totalorder %s16, 5
      %p158 = pnand %p156, %p157
      %p159 = pneg %p158
      // Predicated region
      $region9: #{tpu_custom_call.1} parent=5 // pred_check
        _
      $region10: #{tpu_custom_call.1} parent=5 // pred_check_branch
        %161 = sbr.rel (%p158) target = $region12
      $region11: #{tpu_custom_call.1} parent=5 // pred_region
        %s162 = ssub.s32 %s16, 1
      $region12: #{tpu_custom_call.1} parent=5 // pred_fallthru
        _
      %p163 = scmp.lt.s32.totalorder %s16, 4
      // Predicated region
      $region13: #{tpu_custom_call.1} parent=5 // pred_check
        %p164 = pneg %p163
      $region14: #{tpu_custom_call.1} parent=5 // pred_check_branch
        %166 = sbr.rel (%p164) target = $region16
      $region15: #{tpu_custom_call.1} parent=5 // pred_region
        // Predicated region
        $region17: #{tpu_custom_call.1} parent=15 // pred_check
          %p167 = pneg %p56
        $region18: #{tpu_custom_call.1} parent=15 // pred_check_branch
          %169 = sbr.rel (%p167) target = $region20
        $region19: #{tpu_custom_call.1} parent=15 // pred_region
          %s170 = sand.u32 %s46, 1
          %s171 = scalar_lea.sflag [#allocation5], %s170
          %s172 = sand.u32 %s46, 1
          %s173 = smul.addr %s172, 6144
          %s174 = scalar_lea.vmem [#allocation4], %s173
          %s175 = smul.u32 %s23, 2
          %s176 = sadd.s32 %s175, %s24
          %p177 = scmp.lt.s32.totalorder %s176, 3
          %s178 = scalar_select %p177, %s176, 3
          %s179 = smul.u32 192, %s178
          %181 = vsyncadd %s171, 0
          %s182 = smul.addr %s179, 4
          %s183 = smul.addr %s182, 8
          %s184 = scalar_lea.hbm %s0, %s183
          %s185 = sshll.u32 %s184, 4
          %s186 = int_to_ptr.hbm [resolvable:$true] %s185
          %s187 = sshll.u32 %s174, 4
          %s188 = int_to_ptr.vmem [resolvable:$true] %s187
          %193 = dma.hbm_to_vmem [thread:$0]  %s186, 98304, %s188, %s171, 512, 512, 32
        $region20: #{tpu_custom_call.1} parent=15 // pred_fallthru
          _
        // Predicated region
        $region21: #{tpu_custom_call.1} parent=15 // pred_check
          %p194 = pneg %p90
        $region22: #{tpu_custom_call.1} parent=15 // pred_check_branch
          %196 = sbr.rel (%p194) target = $region24
        $region23: #{tpu_custom_call.1} parent=15 // pred_region
          %s197 = sand.u32 %s80, 1
          %s198 = scalar_lea.sflag [#allocation7], %s197
          %s199 = sand.u32 %s80, 1
          %s200 = smul.addr %s199, 6144
          %s201 = scalar_lea.vmem [#allocation6], %s200
          %s202 = smul.u32 %s23, 2
          %s203 = sadd.s32 %s202, %s24
          %p204 = scmp.lt.s32.totalorder %s203, 3
          %s205 = scalar_select %p204, %s203, 3
          %s206 = smul.u32 192, %s205
          %208 = vsyncadd %s198, 0
          %s209 = smul.addr %s206, 4
          %s210 = smul.addr %s209, 8
          %s211 = scalar_lea.hbm %s1, %s210
          %s212 = sshll.u32 %s211, 4
          %s213 = int_to_ptr.hbm [resolvable:$true] %s212
          %s214 = sshll.u32 %s201, 4
          %s215 = int_to_ptr.vmem [resolvable:$true] %s214
          %220 = dma.hbm_to_vmem [thread:$0]  %s213, 98304, %s215, %s198, 512, 512, 32
        $region24: #{tpu_custom_call.1} parent=15 // pred_fallthru
          _
      $region16: #{tpu_custom_call.1} parent=5 // pred_fallthru
        _
      %p221 = scmp.le.s32.totalorder 1, %s16
      %p222 = scmp.lt.s32.totalorder %s16, 5
      %p223 = pnand %p221, %p222
      %p224 = pneg %p223
      // Predicated region
      $region25: #{tpu_custom_call.1} parent=5 // pred_check
        _
      $region26: #{tpu_custom_call.1} parent=5 // pred_check_branch
        %226 = sbr.rel (%p223) target = $region28
      $region27: #{tpu_custom_call.1} parent=5 // pred_region
        %s227 = ssub.s32 %s16, 1
        %s228 = sand.u32 %s49, 1
        %s229 = scalar_lea.sflag [#allocation5], %s228
        %s230 = sand.u32 %s49, 1
        %s231 = smul.addr %s230, 6144
        %s232 = scalar_lea.vmem [#allocation4], %s231
        // Predicated region
        $region29: #{tpu_custom_call.1} parent=27 // pred_check
          %p233 = pneg %p62
        $region30: #{tpu_custom_call.1} parent=27 // pred_check_branch
          %235 = sbr.rel (%p233) target = $region32
        $region31: #{tpu_custom_call.1} parent=27 // pred_region
          %237 = dma.done %s229, 98304
        $region32: #{tpu_custom_call.1} parent=27 // pred_fallthru
          _
        %s238 = sand.u32 %s83, 1
        %s239 = scalar_lea.sflag [#allocation7], %s238
        %s240 = sand.u32 %s83, 1
        %s241 = smul.addr %s240, 6144
        %s242 = scalar_lea.vmem [#allocation6], %s241
        // Predicated region
        $region33: #{tpu_custom_call.1} parent=27 // pred_check
          %p243 = pneg %p96
        $region34: #{tpu_custom_call.1} parent=27 // pred_check_branch
          %245 = sbr.rel (%p243) target = $region36
        $region35: #{tpu_custom_call.1} parent=27 // pred_region
          %247 = dma.done %s239, 98304
        $region36: #{tpu_custom_call.1} parent=27 // pred_fallthru
          _
        %s248 = sand.u32 %s49, 1
        %s249 = scalar_lea.sflag [#allocation5], %s248
        %s250 = sand.u32 %s49, 1
        %s251 = smul.addr %s250, 6144
        %s252 = scalar_lea.vmem [#allocation4], %s251
        %p253 = pneg %p62
        %p254 = pneg %p59
        %s255 = sand.u32 %s83, 1
        %s256 = scalar_lea.sflag [#allocation7], %s255
        %s257 = sand.u32 %s83, 1
        %s258 = smul.addr %s257, 6144
        %s259 = scalar_lea.vmem [#allocation6], %s258
        %p260 = pneg %p96
        %p261 = pneg %p93
        %p262 = pneg %p122
        %p263 = pneg %p119
        %p264 = scmp.lt.s32.totalorder %s25, 1
        %s265 = scalar_select %p264, %s25, 1
        %s266 = scalar_lea.vmem %s2, %s265
        %p267 = pneg %p148
        %p268 = pneg %p145
        %p269 = scmp.lt.s32.totalorder %s25, 1
        %s270 = scalar_select %p269, %s25, 1
        %s271 = scalar_lea.vmem %s3, %s270
        %s272 = smul.u32 %s25, 2
        %s273 = sadd.s32 %s272, %s26
        %p274 = scmp.lt.s32.totalorder %s273, 3
        %s275 = scalar_select %p274, %s273, 3
        %s276 = smul.u32 192, %s275
        %s277 = smul.u32 %s25, 2
        %s278 = sadd.s32 %s277, %s26
        %p279 = scmp.lt.s32.totalorder %s278, 3
        %s280 = scalar_select %p279, %s278, 3
        %s281 = smul.u32 192, %s280
        %p282 = scmp.lt.s32.totalorder %s25, 1
        %s283 = scalar_select %p282, %s25, 1
        %s284 = scalar_lea.vmem %s2, %s283
        %p285 = scmp.lt.s32.totalorder %s25, 1
        %s286 = scalar_select %p285, %s25, 1
        %s287 = scalar_lea.vmem %s3, %s286
        %p288 = scmp.eq.s32.totalorder %s26, 0
        // Predicated region
        $region37: #{tpu_custom_call.1} parent=27 // pred_check
          %p289 = pneg %p288
        $region38: #{tpu_custom_call.1} parent=27 // pred_check_branch
          %291 = sbr.rel (%p289) target = $region40
        $region39: #{tpu_custom_call.1} parent=27 // pred_region
          %292 = vst [vmem:[#allocation2] sm:$0xff] 0.0
          %293 = vst [vmem:[#allocation2 + $0x8] sm:$0xff] 0.0
          %294 = vst [vmem:[#allocation2 + $0x10] sm:$0xff] 0.0
          %295 = vst [vmem:[#allocation2 + $0x18] sm:$0xff] 0.0
          %296 = vst [vmem:[#allocation3] sm:$0xff] 0.0
          %297 = vst [vmem:[#allocation3 + $0x8] sm:$0xff] 0.0
          %298 = vst [vmem:[#allocation3 + $0x10] sm:$0xff] 0.0
          %299 = vst [vmem:[#allocation3 + $0x18] sm:$0xff] 0.0
        $region40: #{tpu_custom_call.1} parent=27 // pred_fallthru
          _
        %v300 = vld [vmem:[%s242] sm:$0xff]
        %v301 = vld [vmem:[%s242 + $0x8] sm:$0xff]
        %v302 = vld [vmem:[%s242 + $0x10] sm:$0xff]
        %v303 = vld [vmem:[%s242 + $0x18] sm:$0xff]
        %v304 = vld [vmem:[%s242 + $0x20] sm:$0xff]
        %v305 = vld [vmem:[%s242 + $0x28] sm:$0xff]
        %v306 = vld [vmem:[%s242 + $0x30] sm:$0xff]
        %v307 = vld [vmem:[%s242 + $0x38] sm:$0xff]
        %v308 = vld [vmem:[%s242 + $0x40] sm:$0xff]
        %v309 = vld [vmem:[%s242 + $0x48] sm:$0xff]
        %v310 = vld [vmem:[%s242 + $0x50] sm:$0xff]
        %v311 = vld [vmem:[%s242 + $0x58] sm:$0xff]
        %v312 = vld [vmem:[%s242 + $0x60] sm:$0xff]
        %v313 = vld [vmem:[%s242 + $0x68] sm:$0xff]
        %v314 = vld [vmem:[%s242 + $0x70] sm:$0xff]
        %v315 = vld [vmem:[%s242 + $0x78] sm:$0xff]
        %v316 = vld [vmem:[%s242 + $0x80] sm:$0xff]
        %v317 = vld [vmem:[%s242 + $0x88] sm:$0xff]
        %v318 = vld [vmem:[%s242 + $0x90] sm:$0xff]
        %v319 = vld [vmem:[%s242 + $0x98] sm:$0xff]
        %v320 = vld [vmem:[%s242 + $0xa0] sm:$0xff]
        %v321 = vld [vmem:[%s242 + $0xa8] sm:$0xff]
        %v322 = vld [vmem:[%s242 + $0xb0] sm:$0xff]
        %v323 = vld [vmem:[%s242 + $0xb8] sm:$0xff]
        %v324 = vld [vmem:[%s242 + $0xc0] sm:$0xff]
        %v325 = vld [vmem:[%s242 + $0xc8] sm:$0xff]
        %v326 = vld [vmem:[%s242 + $0xd0] sm:$0xff]
        %v327 = vld [vmem:[%s242 + $0xd8] sm:$0xff]
        %v328 = vld [vmem:[%s242 + $0xe0] sm:$0xff]
        %v329 = vld [vmem:[%s242 + $0xe8] sm:$0xff]
        %v330 = vld [vmem:[%s242 + $0xf0] sm:$0xff]
        %v331 = vld [vmem:[%s242 + $0xf8] sm:$0xff]
        %v332 = vld [vmem:[%s242 + $0x100] sm:$0xff]
        %v333 = vld [vmem:[%s242 + $0x108] sm:$0xff]
        %v334 = vld [vmem:[%s242 + $0x110] sm:$0xff]
        %v335 = vld [vmem:[%s242 + $0x118] sm:$0xff]
        %v336 = vld [vmem:[%s242 + $0x120] sm:$0xff]
        %v337 = vld [vmem:[%s242 + $0x128] sm:$0xff]
        %v338 = vld [vmem:[%s242 + $0x130] sm:$0xff]
        %v339 = vld [vmem:[%s242 + $0x138] sm:$0xff]
        %v340 = vld [vmem:[%s242 + $0x140] sm:$0xff]
        %v341 = vld [vmem:[%s242 + $0x148] sm:$0xff]
        %v342 = vld [vmem:[%s242 + $0x150] sm:$0xff]
        %v343 = vld [vmem:[%s242 + $0x158] sm:$0xff]
        %v344 = vld [vmem:[%s242 + $0x160] sm:$0xff]
        %v345 = vld [vmem:[%s242 + $0x168] sm:$0xff]
        %v346 = vld [vmem:[%s242 + $0x170] sm:$0xff]
        %v347 = vld [vmem:[%s242 + $0x178] sm:$0xff]
        %v348 = vld [vmem:[%s242 + $0x180] sm:$0xff]
        %v349 = vld [vmem:[%s242 + $0x188] sm:$0xff]
        %v350 = vld [vmem:[%s242 + $0x190] sm:$0xff]
        %v351 = vld [vmem:[%s242 + $0x198] sm:$0xff]
        %v352 = vld [vmem:[%s242 + $0x1a0] sm:$0xff]
        %v353 = vld [vmem:[%s242 + $0x1a8] sm:$0xff]
        %v354 = vld [vmem:[%s242 + $0x1b0] sm:$0xff]
        %v355 = vld [vmem:[%s242 + $0x1b8] sm:$0xff]
        %v356 = vld [vmem:[%s242 + $0x1c0] sm:$0xff]
        %v357 = vld [vmem:[%s242 + $0x1c8] sm:$0xff]
        %v358 = vld [vmem:[%s242 + $0x1d0] sm:$0xff]
        %v359 = vld [vmem:[%s242 + $0x1d8] sm:$0xff]
        %v360 = vld [vmem:[%s242 + $0x1e0] sm:$0xff]
        %v361 = vld [vmem:[%s242 + $0x1e8] sm:$0xff]
        %v362 = vld [vmem:[%s242 + $0x1f0] sm:$0xff]
        %v363 = vld [vmem:[%s242 + $0x1f8] sm:$0xff]
        %v364 = vld [vmem:[%s242 + $0x200] sm:$0xff]
        %v365 = vld [vmem:[%s242 + $0x208] sm:$0xff]
        %v366 = vld [vmem:[%s242 + $0x210] sm:$0xff]
        %v367 = vld [vmem:[%s242 + $0x218] sm:$0xff]
        %v368 = vld [vmem:[%s242 + $0x220] sm:$0xff]
        %v369 = vld [vmem:[%s242 + $0x228] sm:$0xff]
        %v370 = vld [vmem:[%s242 + $0x230] sm:$0xff]
        %v371 = vld [vmem:[%s242 + $0x238] sm:$0xff]
        %v372 = vld [vmem:[%s242 + $0x240] sm:$0xff]
        %v373 = vld [vmem:[%s242 + $0x248] sm:$0xff]
        %v374 = vld [vmem:[%s242 + $0x250] sm:$0xff]
        %v375 = vld [vmem:[%s242 + $0x258] sm:$0xff]
        %v376 = vld [vmem:[%s242 + $0x260] sm:$0xff]
        %v377 = vld [vmem:[%s242 + $0x268] sm:$0xff]
        %v378 = vld [vmem:[%s242 + $0x270] sm:$0xff]
        %v379 = vld [vmem:[%s242 + $0x278] sm:$0xff]
        %v380 = vld [vmem:[%s242 + $0x280] sm:$0xff]
        %v381 = vld [vmem:[%s242 + $0x288] sm:$0xff]
        %v382 = vld [vmem:[%s242 + $0x290] sm:$0xff]
        %v383 = vld [vmem:[%s242 + $0x298] sm:$0xff]
        %v384 = vld [vmem:[%s242 + $0x2a0] sm:$0xff]
        %v385 = vld [vmem:[%s242 + $0x2a8] sm:$0xff]
        %v386 = vld [vmem:[%s242 + $0x2b0] sm:$0xff]
        %v387 = vld [vmem:[%s242 + $0x2b8] sm:$0xff]
        %v388 = vld [vmem:[%s242 + $0x2c0] sm:$0xff]
        %v389 = vld [vmem:[%s242 + $0x2c8] sm:$0xff]
        %v390 = vld [vmem:[%s242 + $0x2d0] sm:$0xff]
        %v391 = vld [vmem:[%s242 + $0x2d8] sm:$0xff]
        %v392 = vld [vmem:[%s242 + $0x2e0] sm:$0xff]
        %v393 = vld [vmem:[%s242 + $0x2e8] sm:$0xff]
        %v394 = vld [vmem:[%s242 + $0x2f0] sm:$0xff]
        %v395 = vld [vmem:[%s242 + $0x2f8] sm:$0xff]
        %v396 = vld [vmem:[%s242 + $0x300] sm:$0xff]
        %v397 = vld [vmem:[%s242 + $0x308] sm:$0xff]
        %v398 = vld [vmem:[%s242 + $0x310] sm:$0xff]
        %v399 = vld [vmem:[%s242 + $0x318] sm:$0xff]
        %v400 = vld [vmem:[%s242 + $0x320] sm:$0xff]
        %v401 = vld [vmem:[%s242 + $0x328] sm:$0xff]
        %v402 = vld [vmem:[%s242 + $0x330] sm:$0xff]
        %v403 = vld [vmem:[%s242 + $0x338] sm:$0xff]
        %v404 = vld [vmem:[%s242 + $0x340] sm:$0xff]
        %v405 = vld [vmem:[%s242 + $0x348] sm:$0xff]
        %v406 = vld [vmem:[%s242 + $0x350] sm:$0xff]
        %v407 = vld [vmem:[%s242 + $0x358] sm:$0xff]
        %v408 = vld [vmem:[%s242 + $0x360] sm:$0xff]
        %v409 = vld [vmem:[%s242 + $0x368] sm:$0xff]
        %v410 = vld [vmem:[%s242 + $0x370] sm:$0xff]
        %v411 = vld [vmem:[%s242 + $0x378] sm:$0xff]
        %v412 = vld [vmem:[%s242 + $0x380] sm:$0xff]
        %v413 = vld [vmem:[%s242 + $0x388] sm:$0xff]
        %v414 = vld [vmem:[%s242 + $0x390] sm:$0xff]
        %v415 = vld [vmem:[%s242 + $0x398] sm:$0xff]
        %v416 = vld [vmem:[%s242 + $0x3a0] sm:$0xff]
        %v417 = vld [vmem:[%s242 + $0x3a8] sm:$0xff]
        %v418 = vld [vmem:[%s242 + $0x3b0] sm:$0xff]
        %v419 = vld [vmem:[%s242 + $0x3b8] sm:$0xff]
        %v420 = vld [vmem:[%s242 + $0x3c0] sm:$0xff]
        %v421 = vld [vmem:[%s242 + $0x3c8] sm:$0xff]
        %v422 = vld [vmem:[%s242 + $0x3d0] sm:$0xff]
        %v423 = vld [vmem:[%s242 + $0x3d8] sm:$0xff]
        %v424 = vld [vmem:[%s242 + $0x3e0] sm:$0xff]
        %v425 = vld [vmem:[%s242 + $0x3e8] sm:$0xff]
        %v426 = vld [vmem:[%s242 + $0x3f0] sm:$0xff]
        %v427 = vld [vmem:[%s242 + $0x3f8] sm:$0xff]
        %v428 = vld [vmem:[%s242 + $0x400] sm:$0xff]
        %v429 = vld [vmem:[%s242 + $0x408] sm:$0xff]
        %v430 = vld [vmem:[%s242 + $0x410] sm:$0xff]
        %v431 = vld [vmem:[%s242 + $0x418] sm:$0xff]
        %v432 = vld [vmem:[%s242 + $0x420] sm:$0xff]
        %v433 = vld [vmem:[%s242 + $0x428] sm:$0xff]
        %v434 = vld [vmem:[%s242 + $0x430] sm:$0xff]
        %v435 = vld [vmem:[%s242 + $0x438] sm:$0xff]
        %v436 = vld [vmem:[%s242 + $0x440] sm:$0xff]
        %v437 = vld [vmem:[%s242 + $0x448] sm:$0xff]
        %v438 = vld [vmem:[%s242 + $0x450] sm:$0xff]
        %v439 = vld [vmem:[%s242 + $0x458] sm:$0xff]
        %v440 = vld [vmem:[%s242 + $0x460] sm:$0xff]
        %v441 = vld [vmem:[%s242 + $0x468] sm:$0xff]
        %v442 = vld [vmem:[%s242 + $0x470] sm:$0xff]
        %v443 = vld [vmem:[%s242 + $0x478] sm:$0xff]
        %v444 = vld [vmem:[%s242 + $0x480] sm:$0xff]
        %v445 = vld [vmem:[%s242 + $0x488] sm:$0xff]
        %v446 = vld [vmem:[%s242 + $0x490] sm:$0xff]
        %v447 = vld [vmem:[%s242 + $0x498] sm:$0xff]
        %v448 = vld [vmem:[%s242 + $0x4a0] sm:$0xff]
        %v449 = vld [vmem:[%s242 + $0x4a8] sm:$0xff]
        %v450 = vld [vmem:[%s242 + $0x4b0] sm:$0xff]
        %v451 = vld [vmem:[%s242 + $0x4b8] sm:$0xff]
        %v452 = vld [vmem:[%s242 + $0x4c0] sm:$0xff]
        %v453 = vld [vmem:[%s242 + $0x4c8] sm:$0xff]
        %v454 = vld [vmem:[%s242 + $0x4d0] sm:$0xff]
        %v455 = vld [vmem:[%s242 + $0x4d8] sm:$0xff]
        %v456 = vld [vmem:[%s242 + $0x4e0] sm:$0xff]
        %v457 = vld [vmem:[%s242 + $0x4e8] sm:$0xff]
        %v458 = vld [vmem:[%s242 + $0x4f0] sm:$0xff]
        %v459 = vld [vmem:[%s242 + $0x4f8] sm:$0xff]
        %v460 = vld [vmem:[%s242 + $0x500] sm:$0xff]
        %v461 = vld [vmem:[%s242 + $0x508] sm:$0xff]
        %v462 = vld [vmem:[%s242 + $0x510] sm:$0xff]
        %v463 = vld [vmem:[%s242 + $0x518] sm:$0xff]
        %v464 = vld [vmem:[%s242 + $0x520] sm:$0xff]
        %v465 = vld [vmem:[%s242 + $0x528] sm:$0xff]
        %v466 = vld [vmem:[%s242 + $0x530] sm:$0xff]
        %v467 = vld [vmem:[%s242 + $0x538] sm:$0xff]
        %v468 = vld [vmem:[%s242 + $0x540] sm:$0xff]
        %v469 = vld [vmem:[%s242 + $0x548] sm:$0xff]
        %v470 = vld [vmem:[%s242 + $0x550] sm:$0xff]
        %v471 = vld [vmem:[%s242 + $0x558] sm:$0xff]
        %v472 = vld [vmem:[%s242 + $0x560] sm:$0xff]
        %v473 = vld [vmem:[%s242 + $0x568] sm:$0xff]
        %v474 = vld [vmem:[%s242 + $0x570] sm:$0xff]
        %v475 = vld [vmem:[%s242 + $0x578] sm:$0xff]
        %v476 = vld [vmem:[%s242 + $0x580] sm:$0xff]
        %v477 = vld [vmem:[%s242 + $0x588] sm:$0xff]
        %v478 = vld [vmem:[%s242 + $0x590] sm:$0xff]
        %v479 = vld [vmem:[%s242 + $0x598] sm:$0xff]
        %v480 = vld [vmem:[%s242 + $0x5a0] sm:$0xff]
        %v481 = vld [vmem:[%s242 + $0x5a8] sm:$0xff]
        %v482 = vld [vmem:[%s242 + $0x5b0] sm:$0xff]
        %v483 = vld [vmem:[%s242 + $0x5b8] sm:$0xff]
        %v484 = vld [vmem:[%s242 + $0x5c0] sm:$0xff]
        %v485 = vld [vmem:[%s242 + $0x5c8] sm:$0xff]
        %v486 = vld [vmem:[%s242 + $0x5d0] sm:$0xff]
        %v487 = vld [vmem:[%s242 + $0x5d8] sm:$0xff]
        %v488 = vld [vmem:[%s242 + $0x5e0] sm:$0xff]
        %v489 = vld [vmem:[%s242 + $0x5e8] sm:$0xff]
        %v490 = vld [vmem:[%s242 + $0x5f0] sm:$0xff]
        %v491 = vld [vmem:[%s242 + $0x5f8] sm:$0xff]
        %v492 = vld [vmem:[%s242 + $0x600] sm:$0xff]
        %v493 = vld [vmem:[%s242 + $0x608] sm:$0xff]
        %v494 = vld [vmem:[%s242 + $0x610] sm:$0xff]
        %v495 = vld [vmem:[%s242 + $0x618] sm:$0xff]
        %v496 = vld [vmem:[%s242 + $0x620] sm:$0xff]
        %v497 = vld [vmem:[%s242 + $0x628] sm:$0xff]
        %v498 = vld [vmem:[%s242 + $0x630] sm:$0xff]
        %v499 = vld [vmem:[%s242 + $0x638] sm:$0xff]
        %v500 = vld [vmem:[%s242 + $0x640] sm:$0xff]
        %v501 = vld [vmem:[%s242 + $0x648] sm:$0xff]
        %v502 = vld [vmem:[%s242 + $0x650] sm:$0xff]
        %v503 = vld [vmem:[%s242 + $0x658] sm:$0xff]
        %v504 = vld [vmem:[%s242 + $0x660] sm:$0xff]
        %v505 = vld [vmem:[%s242 + $0x668] sm:$0xff]
        %v506 = vld [vmem:[%s242 + $0x670] sm:$0xff]
        %v507 = vld [vmem:[%s242 + $0x678] sm:$0xff]
        %v508 = vld [vmem:[%s242 + $0x680] sm:$0xff]
        %v509 = vld [vmem:[%s242 + $0x688] sm:$0xff]
        %v510 = vld [vmem:[%s242 + $0x690] sm:$0xff]
        %v511 = vld [vmem:[%s242 + $0x698] sm:$0xff]
        %v512 = vld [vmem:[%s242 + $0x6a0] sm:$0xff]
        %v513 = vld [vmem:[%s242 + $0x6a8] sm:$0xff]
        %v514 = vld [vmem:[%s242 + $0x6b0] sm:$0xff]
        %v515 = vld [vmem:[%s242 + $0x6b8] sm:$0xff]
        %v516 = vld [vmem:[%s242 + $0x6c0] sm:$0xff]
        %v517 = vld [vmem:[%s242 + $0x6c8] sm:$0xff]
        %v518 = vld [vmem:[%s242 + $0x6d0] sm:$0xff]
        %v519 = vld [vmem:[%s242 + $0x6d8] sm:$0xff]
        %v520 = vld [vmem:[%s242 + $0x6e0] sm:$0xff]
        %v521 = vld [vmem:[%s242 + $0x6e8] sm:$0xff]
        %v522 = vld [vmem:[%s242 + $0x6f0] sm:$0xff]
        %v523 = vld [vmem:[%s242 + $0x6f8] sm:$0xff]
        %v524 = vld [vmem:[%s242 + $0x700] sm:$0xff]
        %v525 = vld [vmem:[%s242 + $0x708] sm:$0xff]
        %v526 = vld [vmem:[%s242 + $0x710] sm:$0xff]
        %v527 = vld [vmem:[%s242 + $0x718] sm:$0xff]
        %v528 = vld [vmem:[%s242 + $0x720] sm:$0xff]
        %v529 = vld [vmem:[%s242 + $0x728] sm:$0xff]
        %v530 = vld [vmem:[%s242 + $0x730] sm:$0xff]
        %v531 = vld [vmem:[%s242 + $0x738] sm:$0xff]
        %v532 = vld [vmem:[%s242 + $0x740] sm:$0xff]
        %v533 = vld [vmem:[%s242 + $0x748] sm:$0xff]
        %v534 = vld [vmem:[%s242 + $0x750] sm:$0xff]
        %v535 = vld [vmem:[%s242 + $0x758] sm:$0xff]
        %v536 = vld [vmem:[%s242 + $0x760] sm:$0xff]
        %v537 = vld [vmem:[%s242 + $0x768] sm:$0xff]
        %v538 = vld [vmem:[%s242 + $0x770] sm:$0xff]
        %v539 = vld [vmem:[%s242 + $0x778] sm:$0xff]
        %v540 = vld [vmem:[%s242 + $0x780] sm:$0xff]
        %v541 = vld [vmem:[%s242 + $0x788] sm:$0xff]
        %v542 = vld [vmem:[%s242 + $0x790] sm:$0xff]
        %v543 = vld [vmem:[%s242 + $0x798] sm:$0xff]
        %v544 = vld [vmem:[%s242 + $0x7a0] sm:$0xff]
        %v545 = vld [vmem:[%s242 + $0x7a8] sm:$0xff]
        %v546 = vld [vmem:[%s242 + $0x7b0] sm:$0xff]
        %v547 = vld [vmem:[%s242 + $0x7b8] sm:$0xff]
        %v548 = vld [vmem:[%s242 + $0x7c0] sm:$0xff]
        %v549 = vld [vmem:[%s242 + $0x7c8] sm:$0xff]
        %v550 = vld [vmem:[%s242 + $0x7d0] sm:$0xff]
        %v551 = vld [vmem:[%s242 + $0x7d8] sm:$0xff]
        %v552 = vld [vmem:[%s242 + $0x7e0] sm:$0xff]
        %v553 = vld [vmem:[%s242 + $0x7e8] sm:$0xff]
        %v554 = vld [vmem:[%s242 + $0x7f0] sm:$0xff]
        %v555 = vld [vmem:[%s242 + $0x7f8] sm:$0xff]
        %v556 = vld [vmem:[%s242 + $0x800] sm:$0xff]
        %v557 = vld [vmem:[%s242 + $0x808] sm:$0xff]
        %v558 = vld [vmem:[%s242 + $0x810] sm:$0xff]
        %v559 = vld [vmem:[%s242 + $0x818] sm:$0xff]
        %v560 = vld [vmem:[%s242 + $0x820] sm:$0xff]
        %v561 = vld [vmem:[%s242 + $0x828] sm:$0xff]
        %v562 = vld [vmem:[%s242 + $0x830] sm:$0xff]
        %v563 = vld [vmem:[%s242 + $0x838] sm:$0xff]
        %v564 = vld [vmem:[%s242 + $0x840] sm:$0xff]
        %v565 = vld [vmem:[%s242 + $0x848] sm:$0xff]
        %v566 = vld [vmem:[%s242 + $0x850] sm:$0xff]
        %v567 = vld [vmem:[%s242 + $0x858] sm:$0xff]
        %v568 = vld [vmem:[%s242 + $0x860] sm:$0xff]
        %v569 = vld [vmem:[%s242 + $0x868] sm:$0xff]
        %v570 = vld [vmem:[%s242 + $0x870] sm:$0xff]
        %v571 = vld [vmem:[%s242 + $0x878] sm:$0xff]
        %v572 = vld [vmem:[%s242 + $0x880] sm:$0xff]
        %v573 = vld [vmem:[%s242 + $0x888] sm:$0xff]
        %v574 = vld [vmem:[%s242 + $0x890] sm:$0xff]
        %v575 = vld [vmem:[%s242 + $0x898] sm:$0xff]
        %v576 = vld [vmem:[%s242 + $0x8a0] sm:$0xff]
        %v577 = vld [vmem:[%s242 + $0x8a8] sm:$0xff]
        %v578 = vld [vmem:[%s242 + $0x8b0] sm:$0xff]
        %v579 = vld [vmem:[%s242 + $0x8b8] sm:$0xff]
        %v580 = vld [vmem:[%s242 + $0x8c0] sm:$0xff]
        %v581 = vld [vmem:[%s242 + $0x8c8] sm:$0xff]
        %v582 = vld [vmem:[%s242 + $0x8d0] sm:$0xff]
        %v583 = vld [vmem:[%s242 + $0x8d8] sm:$0xff]
        %v584 = vld [vmem:[%s242 + $0x8e0] sm:$0xff]
        %v585 = vld [vmem:[%s242 + $0x8e8] sm:$0xff]
        %v586 = vld [vmem:[%s242 + $0x8f0] sm:$0xff]
        %v587 = vld [vmem:[%s242 + $0x8f8] sm:$0xff]
        %v588 = vld [vmem:[%s242 + $0x900] sm:$0xff]
        %v589 = vld [vmem:[%s242 + $0x908] sm:$0xff]
        %v590 = vld [vmem:[%s242 + $0x910] sm:$0xff]
        %v591 = vld [vmem:[%s242 + $0x918] sm:$0xff]
        %v592 = vld [vmem:[%s242 + $0x920] sm:$0xff]
        %v593 = vld [vmem:[%s242 + $0x928] sm:$0xff]
        %v594 = vld [vmem:[%s242 + $0x930] sm:$0xff]
        %v595 = vld [vmem:[%s242 + $0x938] sm:$0xff]
        %v596 = vld [vmem:[%s242 + $0x940] sm:$0xff]
        %v597 = vld [vmem:[%s242 + $0x948] sm:$0xff]
        %v598 = vld [vmem:[%s242 + $0x950] sm:$0xff]
        %v599 = vld [vmem:[%s242 + $0x958] sm:$0xff]
        %v600 = vld [vmem:[%s242 + $0x960] sm:$0xff]
        %v601 = vld [vmem:[%s242 + $0x968] sm:$0xff]
        %v602 = vld [vmem:[%s242 + $0x970] sm:$0xff]
        %v603 = vld [vmem:[%s242 + $0x978] sm:$0xff]
        %v604 = vld [vmem:[%s242 + $0x980] sm:$0xff]
        %v605 = vld [vmem:[%s242 + $0x988] sm:$0xff]
        %v606 = vld [vmem:[%s242 + $0x990] sm:$0xff]
        %v607 = vld [vmem:[%s242 + $0x998] sm:$0xff]
        %v608 = vld [vmem:[%s242 + $0x9a0] sm:$0xff]
        %v609 = vld [vmem:[%s242 + $0x9a8] sm:$0xff]
        %v610 = vld [vmem:[%s242 + $0x9b0] sm:$0xff]
        %v611 = vld [vmem:[%s242 + $0x9b8] sm:$0xff]
        %v612 = vld [vmem:[%s242 + $0x9c0] sm:$0xff]
        %v613 = vld [vmem:[%s242 + $0x9c8] sm:$0xff]
        %v614 = vld [vmem:[%s242 + $0x9d0] sm:$0xff]
        %v615 = vld [vmem:[%s242 + $0x9d8] sm:$0xff]
        %v616 = vld [vmem:[%s242 + $0x9e0] sm:$0xff]
        %v617 = vld [vmem:[%s242 + $0x9e8] sm:$0xff]
        %v618 = vld [vmem:[%s242 + $0x9f0] sm:$0xff]
        %v619 = vld [vmem:[%s242 + $0x9f8] sm:$0xff]
        %v620 = vld [vmem:[%s242 + $0xa00] sm:$0xff]
        %v621 = vld [vmem:[%s242 + $0xa08] sm:$0xff]
        %v622 = vld [vmem:[%s242 + $0xa10] sm:$0xff]
        %v623 = vld [vmem:[%s242 + $0xa18] sm:$0xff]
        %v624 = vld [vmem:[%s242 + $0xa20] sm:$0xff]
        %v625 = vld [vmem:[%s242 + $0xa28] sm:$0xff]
        %v626 = vld [vmem:[%s242 + $0xa30] sm:$0xff]
        %v627 = vld [vmem:[%s242 + $0xa38] sm:$0xff]
        %v628 = vld [vmem:[%s242 + $0xa40] sm:$0xff]
        %v629 = vld [vmem:[%s242 + $0xa48] sm:$0xff]
        %v630 = vld [vmem:[%s242 + $0xa50] sm:$0xff]
        %v631 = vld [vmem:[%s242 + $0xa58] sm:$0xff]
        %v632 = vld [vmem:[%s242 + $0xa60] sm:$0xff]
        %v633 = vld [vmem:[%s242 + $0xa68] sm:$0xff]
        %v634 = vld [vmem:[%s242 + $0xa70] sm:$0xff]
        %v635 = vld [vmem:[%s242 + $0xa78] sm:$0xff]
        %v636 = vld [vmem:[%s242 + $0xa80] sm:$0xff]
        %v637 = vld [vmem:[%s242 + $0xa88] sm:$0xff]
        %v638 = vld [vmem:[%s242 + $0xa90] sm:$0xff]
        %v639 = vld [vmem:[%s242 + $0xa98] sm:$0xff]
        %v640 = vld [vmem:[%s242 + $0xaa0] sm:$0xff]
        %v641 = vld [vmem:[%s242 + $0xaa8] sm:$0xff]
        %v642 = vld [vmem:[%s242 + $0xab0] sm:$0xff]
        %v643 = vld [vmem:[%s242 + $0xab8] sm:$0xff]
        %v644 = vld [vmem:[%s242 + $0xac0] sm:$0xff]
        %v645 = vld [vmem:[%s242 + $0xac8] sm:$0xff]
        %v646 = vld [vmem:[%s242 + $0xad0] sm:$0xff]
        %v647 = vld [vmem:[%s242 + $0xad8] sm:$0xff]
        %v648 = vld [vmem:[%s242 + $0xae0] sm:$0xff]
        %v649 = vld [vmem:[%s242 + $0xae8] sm:$0xff]
        %v650 = vld [vmem:[%s242 + $0xaf0] sm:$0xff]
        %v651 = vld [vmem:[%s242 + $0xaf8] sm:$0xff]
        %v652 = vld [vmem:[%s242 + $0xb00] sm:$0xff]
        %v653 = vld [vmem:[%s242 + $0xb08] sm:$0xff]
        %v654 = vld [vmem:[%s242 + $0xb10] sm:$0xff]
        %v655 = vld [vmem:[%s242 + $0xb18] sm:$0xff]
        %v656 = vld [vmem:[%s242 + $0xb20] sm:$0xff]
        %v657 = vld [vmem:[%s242 + $0xb28] sm:$0xff]
        %v658 = vld [vmem:[%s242 + $0xb30] sm:$0xff]
        %v659 = vld [vmem:[%s242 + $0xb38] sm:$0xff]
        %v660 = vld [vmem:[%s242 + $0xb40] sm:$0xff]
        %v661 = vld [vmem:[%s242 + $0xb48] sm:$0xff]
        %v662 = vld [vmem:[%s242 + $0xb50] sm:$0xff]
        %v663 = vld [vmem:[%s242 + $0xb58] sm:$0xff]
        %v664 = vld [vmem:[%s242 + $0xb60] sm:$0xff]
        %v665 = vld [vmem:[%s242 + $0xb68] sm:$0xff]
        %v666 = vld [vmem:[%s242 + $0xb70] sm:$0xff]
        %v667 = vld [vmem:[%s242 + $0xb78] sm:$0xff]
        %v668 = vld [vmem:[%s242 + $0xb80] sm:$0xff]
        %v669 = vld [vmem:[%s242 + $0xb88] sm:$0xff]
        %v670 = vld [vmem:[%s242 + $0xb90] sm:$0xff]
        %v671 = vld [vmem:[%s242 + $0xb98] sm:$0xff]
        %v672 = vld [vmem:[%s242 + $0xba0] sm:$0xff]
        %v673 = vld [vmem:[%s242 + $0xba8] sm:$0xff]
        %v674 = vld [vmem:[%s242 + $0xbb0] sm:$0xff]
        %v675 = vld [vmem:[%s242 + $0xbb8] sm:$0xff]
        %v676 = vld [vmem:[%s242 + $0xbc0] sm:$0xff]
        %v677 = vld [vmem:[%s242 + $0xbc8] sm:$0xff]
        %v678 = vld [vmem:[%s242 + $0xbd0] sm:$0xff]
        %v679 = vld [vmem:[%s242 + $0xbd8] sm:$0xff]
        %v680 = vld [vmem:[%s242 + $0xbe0] sm:$0xff]
        %v681 = vld [vmem:[%s242 + $0xbe8] sm:$0xff]
        %v682 = vld [vmem:[%s242 + $0xbf0] sm:$0xff]
        %v683 = vld [vmem:[%s242 + $0xbf8] sm:$0xff]
        %v684 = vld [vmem:[%s242 + $0xc00] sm:$0xff]
        %v685 = vld [vmem:[%s242 + $0xc08] sm:$0xff]
        %v686 = vld [vmem:[%s242 + $0xc10] sm:$0xff]
        %v687 = vld [vmem:[%s242 + $0xc18] sm:$0xff]
        %v688 = vld [vmem:[%s242 + $0xc20] sm:$0xff]
        %v689 = vld [vmem:[%s242 + $0xc28] sm:$0xff]
        %v690 = vld [vmem:[%s242 + $0xc30] sm:$0xff]
        %v691 = vld [vmem:[%s242 + $0xc38] sm:$0xff]
        %v692 = vld [vmem:[%s242 + $0xc40] sm:$0xff]
        %v693 = vld [vmem:[%s242 + $0xc48] sm:$0xff]
        %v694 = vld [vmem:[%s242 + $0xc50] sm:$0xff]
        %v695 = vld [vmem:[%s242 + $0xc58] sm:$0xff]
        %v696 = vld [vmem:[%s242 + $0xc60] sm:$0xff]
        %v697 = vld [vmem:[%s242 + $0xc68] sm:$0xff]
        %v698 = vld [vmem:[%s242 + $0xc70] sm:$0xff]
        %v699 = vld [vmem:[%s242 + $0xc78] sm:$0xff]
        %v700 = vld [vmem:[%s242 + $0xc80] sm:$0xff]
        %v701 = vld [vmem:[%s242 + $0xc88] sm:$0xff]
        %v702 = vld [vmem:[%s242 + $0xc90] sm:$0xff]
        %v703 = vld [vmem:[%s242 + $0xc98] sm:$0xff]
        %v704 = vld [vmem:[%s242 + $0xca0] sm:$0xff]
        %v705 = vld [vmem:[%s242 + $0xca8] sm:$0xff]
        %v706 = vld [vmem:[%s242 + $0xcb0] sm:$0xff]
        %v707 = vld [vmem:[%s242 + $0xcb8] sm:$0xff]
        %v708 = vld [vmem:[%s242 + $0xcc0] sm:$0xff]
        %v709 = vld [vmem:[%s242 + $0xcc8] sm:$0xff]
        %v710 = vld [vmem:[%s242 + $0xcd0] sm:$0xff]
        %v711 = vld [vmem:[%s242 + $0xcd8] sm:$0xff]
        %v712 = vld [vmem:[%s242 + $0xce0] sm:$0xff]
        %v713 = vld [vmem:[%s242 + $0xce8] sm:$0xff]
        %v714 = vld [vmem:[%s242 + $0xcf0] sm:$0xff]
        %v715 = vld [vmem:[%s242 + $0xcf8] sm:$0xff]
        %v716 = vld [vmem:[%s242 + $0xd00] sm:$0xff]
        %v717 = vld [vmem:[%s242 + $0xd08] sm:$0xff]
        %v718 = vld [vmem:[%s242 + $0xd10] sm:$0xff]
        %v719 = vld [vmem:[%s242 + $0xd18] sm:$0xff]
        %v720 = vld [vmem:[%s242 + $0xd20] sm:$0xff]
        %v721 = vld [vmem:[%s242 + $0xd28] sm:$0xff]
        %v722 = vld [vmem:[%s242 + $0xd30] sm:$0xff]
        %v723 = vld [vmem:[%s242 + $0xd38] sm:$0xff]
        %v724 = vld [vmem:[%s242 + $0xd40] sm:$0xff]
        %v725 = vld [vmem:[%s242 + $0xd48] sm:$0xff]
        %v726 = vld [vmem:[%s242 + $0xd50] sm:$0xff]
        %v727 = vld [vmem:[%s242 + $0xd58] sm:$0xff]
        %v728 = vld [vmem:[%s242 + $0xd60] sm:$0xff]
        %v729 = vld [vmem:[%s242 + $0xd68] sm:$0xff]
        %v730 = vld [vmem:[%s242 + $0xd70] sm:$0xff]
        %v731 = vld [vmem:[%s242 + $0xd78] sm:$0xff]
        %v732 = vld [vmem:[%s242 + $0xd80] sm:$0xff]
        %v733 = vld [vmem:[%s242 + $0xd88] sm:$0xff]
        %v734 = vld [vmem:[%s242 + $0xd90] sm:$0xff]
        %v735 = vld [vmem:[%s242 + $0xd98] sm:$0xff]
        %v736 = vld [vmem:[%s242 + $0xda0] sm:$0xff]
        %v737 = vld [vmem:[%s242 + $0xda8] sm:$0xff]
        %v738 = vld [vmem:[%s242 + $0xdb0] sm:$0xff]
        %v739 = vld [vmem:[%s242 + $0xdb8] sm:$0xff]
        %v740 = vld [vmem:[%s242 + $0xdc0] sm:$0xff]
        %v741 = vld [vmem:[%s242 + $0xdc8] sm:$0xff]
        %v742 = vld [vmem:[%s242 + $0xdd0] sm:$0xff]
        %v743 = vld [vmem:[%s242 + $0xdd8] sm:$0xff]
        %v744 = vld [vmem:[%s242 + $0xde0] sm:$0xff]
        %v745 = vld [vmem:[%s242 + $0xde8] sm:$0xff]
        %v746 = vld [vmem:[%s242 + $0xdf0] sm:$0xff]
        %v747 = vld [vmem:[%s242 + $0xdf8] sm:$0xff]
        %v748 = vld [vmem:[%s242 + $0xe00] sm:$0xff]
        %v749 = vld [vmem:[%s242 + $0xe08] sm:$0xff]
        %v750 = vld [vmem:[%s242 + $0xe10] sm:$0xff]
        %v751 = vld [vmem:[%s242 + $0xe18] sm:$0xff]
        %v752 = vld [vmem:[%s242 + $0xe20] sm:$0xff]
        %v753 = vld [vmem:[%s242 + $0xe28] sm:$0xff]
        %v754 = vld [vmem:[%s242 + $0xe30] sm:$0xff]
        %v755 = vld [vmem:[%s242 + $0xe38] sm:$0xff]
        %v756 = vld [vmem:[%s242 + $0xe40] sm:$0xff]
        %v757 = vld [vmem:[%s242 + $0xe48] sm:$0xff]
        %v758 = vld [vmem:[%s242 + $0xe50] sm:$0xff]
        %v759 = vld [vmem:[%s242 + $0xe58] sm:$0xff]
        %v760 = vld [vmem:[%s242 + $0xe60] sm:$0xff]
        %v761 = vld [vmem:[%s242 + $0xe68] sm:$0xff]
        %v762 = vld [vmem:[%s242 + $0xe70] sm:$0xff]
        %v763 = vld [vmem:[%s242 + $0xe78] sm:$0xff]
        %v764 = vld [vmem:[%s242 + $0xe80] sm:$0xff]
        %v765 = vld [vmem:[%s242 + $0xe88] sm:$0xff]
        %v766 = vld [vmem:[%s242 + $0xe90] sm:$0xff]
        %v767 = vld [vmem:[%s242 + $0xe98] sm:$0xff]
        %v768 = vld [vmem:[%s242 + $0xea0] sm:$0xff]
        %v769 = vld [vmem:[%s242 + $0xea8] sm:$0xff]
        %v770 = vld [vmem:[%s242 + $0xeb0] sm:$0xff]
        %v771 = vld [vmem:[%s242 + $0xeb8] sm:$0xff]
        %v772 = vld [vmem:[%s242 + $0xec0] sm:$0xff]
        %v773 = vld [vmem:[%s242 + $0xec8] sm:$0xff]
        %v774 = vld [vmem:[%s242 + $0xed0] sm:$0xff]
        %v775 = vld [vmem:[%s242 + $0xed8] sm:$0xff]
        %v776 = vld [vmem:[%s242 + $0xee0] sm:$0xff]
        %v777 = vld [vmem:[%s242 + $0xee8] sm:$0xff]
        %v778 = vld [vmem:[%s242 + $0xef0] sm:$0xff]
        %v779 = vld [vmem:[%s242 + $0xef8] sm:$0xff]
        %v780 = vld [vmem:[%s242 + $0xf00] sm:$0xff]
        %v781 = vld [vmem:[%s242 + $0xf08] sm:$0xff]
        %v782 = vld [vmem:[%s242 + $0xf10] sm:$0xff]
        %v783 = vld [vmem:[%s242 + $0xf18] sm:$0xff]
        %v784 = vld [vmem:[%s242 + $0xf20] sm:$0xff]
        %v785 = vld [vmem:[%s242 + $0xf28] sm:$0xff]
        %v786 = vld [vmem:[%s242 + $0xf30] sm:$0xff]
        %v787 = vld [vmem:[%s242 + $0xf38] sm:$0xff]
        %v788 = vld [vmem:[%s242 + $0xf40] sm:$0xff]
        %v789 = vld [vmem:[%s242 + $0xf48] sm:$0xff]
        %v790 = vld [vmem:[%s242 + $0xf50] sm:$0xff]
        %v791 = vld [vmem:[%s242 + $0xf58] sm:$0xff]
        %v792 = vld [vmem:[%s242 + $0xf60] sm:$0xff]
        %v793 = vld [vmem:[%s242 + $0xf68] sm:$0xff]
        %v794 = vld [vmem:[%s242 + $0xf70] sm:$0xff]
        %v795 = vld [vmem:[%s242 + $0xf78] sm:$0xff]
        %v796 = vld [vmem:[%s242 + $0xf80] sm:$0xff]
        %v797 = vld [vmem:[%s242 + $0xf88] sm:$0xff]
        %v798 = vld [vmem:[%s242 + $0xf90] sm:$0xff]
        %v799 = vld [vmem:[%s242 + $0xf98] sm:$0xff]
        %v800 = vld [vmem:[%s242 + $0xfa0] sm:$0xff]
        %v801 = vld [vmem:[%s242 + $0xfa8] sm:$0xff]
        %v802 = vld [vmem:[%s242 + $0xfb0] sm:$0xff]
        %v803 = vld [vmem:[%s242 + $0xfb8] sm:$0xff]
        %v804 = vld [vmem:[%s242 + $0xfc0] sm:$0xff]
        %v805 = vld [vmem:[%s242 + $0xfc8] sm:$0xff]
        %v806 = vld [vmem:[%s242 + $0xfd0] sm:$0xff]
        %v807 = vld [vmem:[%s242 + $0xfd8] sm:$0xff]
        %v808 = vld [vmem:[%s242 + $0xfe0] sm:$0xff]
        %v809 = vld [vmem:[%s242 + $0xfe8] sm:$0xff]
        %v810 = vld [vmem:[%s242 + $0xff0] sm:$0xff]
        %v811 = vld [vmem:[%s242 + $0xff8] sm:$0xff]
        %v812 = vld [vmem:[%s242 + $0x1000] sm:$0xff]
        %v813 = vld [vmem:[%s242 + $0x1008] sm:$0xff]
        %v814 = vld [vmem:[%s242 + $0x1010] sm:$0xff]
        %v815 = vld [vmem:[%s242 + $0x1018] sm:$0xff]
        %v816 = vld [vmem:[%s242 + $0x1020] sm:$0xff]
        %v817 = vld [vmem:[%s242 + $0x1028] sm:$0xff]
        %v818 = vld [vmem:[%s242 + $0x1030] sm:$0xff]
        %v819 = vld [vmem:[%s242 + $0x1038] sm:$0xff]
        %v820 = vld [vmem:[%s242 + $0x1040] sm:$0xff]
        %v821 = vld [vmem:[%s242 + $0x1048] sm:$0xff]
        %v822 = vld [vmem:[%s242 + $0x1050] sm:$0xff]
        %v823 = vld [vmem:[%s242 + $0x1058] sm:$0xff]
        %v824 = vld [vmem:[%s242 + $0x1060] sm:$0xff]
        %v825 = vld [vmem:[%s242 + $0x1068] sm:$0xff]
        %v826 = vld [vmem:[%s242 + $0x1070] sm:$0xff]
        %v827 = vld [vmem:[%s242 + $0x1078] sm:$0xff]
        %v828 = vld [vmem:[%s242 + $0x1080] sm:$0xff]
        %v829 = vld [vmem:[%s242 + $0x1088] sm:$0xff]
        %v830 = vld [vmem:[%s242 + $0x1090] sm:$0xff]
        %v831 = vld [vmem:[%s242 + $0x1098] sm:$0xff]
        %v832 = vld [vmem:[%s242 + $0x10a0] sm:$0xff]
        %v833 = vld [vmem:[%s242 + $0x10a8] sm:$0xff]
        %v834 = vld [vmem:[%s242 + $0x10b0] sm:$0xff]
        %v835 = vld [vmem:[%s242 + $0x10b8] sm:$0xff]
        %v836 = vld [vmem:[%s242 + $0x10c0] sm:$0xff]
        %v837 = vld [vmem:[%s242 + $0x10c8] sm:$0xff]
        %v838 = vld [vmem:[%s242 + $0x10d0] sm:$0xff]
        %v839 = vld [vmem:[%s242 + $0x10d8] sm:$0xff]
        %v840 = vld [vmem:[%s242 + $0x10e0] sm:$0xff]
        %v841 = vld [vmem:[%s242 + $0x10e8] sm:$0xff]
        %v842 = vld [vmem:[%s242 + $0x10f0] sm:$0xff]
        %v843 = vld [vmem:[%s242 + $0x10f8] sm:$0xff]
        %v844 = vld [vmem:[%s242 + $0x1100] sm:$0xff]
        %v845 = vld [vmem:[%s242 + $0x1108] sm:$0xff]
        %v846 = vld [vmem:[%s242 + $0x1110] sm:$0xff]
        %v847 = vld [vmem:[%s242 + $0x1118] sm:$0xff]
        %v848 = vld [vmem:[%s242 + $0x1120] sm:$0xff]
        %v849 = vld [vmem:[%s242 + $0x1128] sm:$0xff]
        %v850 = vld [vmem:[%s242 + $0x1130] sm:$0xff]
        %v851 = vld [vmem:[%s242 + $0x1138] sm:$0xff]
        %v852 = vld [vmem:[%s242 + $0x1140] sm:$0xff]
        %v853 = vld [vmem:[%s242 + $0x1148] sm:$0xff]
        %v854 = vld [vmem:[%s242 + $0x1150] sm:$0xff]
        %v855 = vld [vmem:[%s242 + $0x1158] sm:$0xff]
        %v856 = vld [vmem:[%s242 + $0x1160] sm:$0xff]
        %v857 = vld [vmem:[%s242 + $0x1168] sm:$0xff]
        %v858 = vld [vmem:[%s242 + $0x1170] sm:$0xff]
        %v859 = vld [vmem:[%s242 + $0x1178] sm:$0xff]
        %v860 = vld [vmem:[%s242 + $0x1180] sm:$0xff]
        %v861 = vld [vmem:[%s242 + $0x1188] sm:$0xff]
        %v862 = vld [vmem:[%s242 + $0x1190] sm:$0xff]
        %v863 = vld [vmem:[%s242 + $0x1198] sm:$0xff]
        %v864 = vld [vmem:[%s242 + $0x11a0] sm:$0xff]
        %v865 = vld [vmem:[%s242 + $0x11a8] sm:$0xff]
        %v866 = vld [vmem:[%s242 + $0x11b0] sm:$0xff]
        %v867 = vld [vmem:[%s242 + $0x11b8] sm:$0xff]
        %v868 = vld [vmem:[%s242 + $0x11c0] sm:$0xff]
        %v869 = vld [vmem:[%s242 + $0x11c8] sm:$0xff]
        %v870 = vld [vmem:[%s242 + $0x11d0] sm:$0xff]
        %v871 = vld [vmem:[%s242 + $0x11d8] sm:$0xff]
        %v872 = vld [vmem:[%s242 + $0x11e0] sm:$0xff]
        %v873 = vld [vmem:[%s242 + $0x11e8] sm:$0xff]
        %v874 = vld [vmem:[%s242 + $0x11f0] sm:$0xff]
        %v875 = vld [vmem:[%s242 + $0x11f8] sm:$0xff]
        %v876 = vld [vmem:[%s242 + $0x1200] sm:$0xff]
        %v877 = vld [vmem:[%s242 + $0x1208] sm:$0xff]
        %v878 = vld [vmem:[%s242 + $0x1210] sm:$0xff]
        %v879 = vld [vmem:[%s242 + $0x1218] sm:$0xff]
        %v880 = vld [vmem:[%s242 + $0x1220] sm:$0xff]
        %v881 = vld [vmem:[%s242 + $0x1228] sm:$0xff]
        %v882 = vld [vmem:[%s242 + $0x1230] sm:$0xff]
        %v883 = vld [vmem:[%s242 + $0x1238] sm:$0xff]
        %v884 = vld [vmem:[%s242 + $0x1240] sm:$0xff]
        %v885 = vld [vmem:[%s242 + $0x1248] sm:$0xff]
        %v886 = vld [vmem:[%s242 + $0x1250] sm:$0xff]
        %v887 = vld [vmem:[%s242 + $0x1258] sm:$0xff]
        %v888 = vld [vmem:[%s242 + $0x1260] sm:$0xff]
        %v889 = vld [vmem:[%s242 + $0x1268] sm:$0xff]
        %v890 = vld [vmem:[%s242 + $0x1270] sm:$0xff]
        %v891 = vld [vmem:[%s242 + $0x1278] sm:$0xff]
        %v892 = vld [vmem:[%s242 + $0x1280] sm:$0xff]
        %v893 = vld [vmem:[%s242 + $0x1288] sm:$0xff]
        %v894 = vld [vmem:[%s242 + $0x1290] sm:$0xff]
        %v895 = vld [vmem:[%s242 + $0x1298] sm:$0xff]
        %v896 = vld [vmem:[%s242 + $0x12a0] sm:$0xff]
        %v897 = vld [vmem:[%s242 + $0x12a8] sm:$0xff]
        %v898 = vld [vmem:[%s242 + $0x12b0] sm:$0xff]
        %v899 = vld [vmem:[%s242 + $0x12b8] sm:$0xff]
        %v900 = vld [vmem:[%s242 + $0x12c0] sm:$0xff]
        %v901 = vld [vmem:[%s242 + $0x12c8] sm:$0xff]
        %v902 = vld [vmem:[%s242 + $0x12d0] sm:$0xff]
        %v903 = vld [vmem:[%s242 + $0x12d8] sm:$0xff]
        %v904 = vld [vmem:[%s242 + $0x12e0] sm:$0xff]
        %v905 = vld [vmem:[%s242 + $0x12e8] sm:$0xff]
        %v906 = vld [vmem:[%s242 + $0x12f0] sm:$0xff]
        %v907 = vld [vmem:[%s242 + $0x12f8] sm:$0xff]
        %v908 = vld [vmem:[%s242 + $0x1300] sm:$0xff]
        %v909 = vld [vmem:[%s242 + $0x1308] sm:$0xff]
        %v910 = vld [vmem:[%s242 + $0x1310] sm:$0xff]
        %v911 = vld [vmem:[%s242 + $0x1318] sm:$0xff]
        %v912 = vld [vmem:[%s242 + $0x1320] sm:$0xff]
        %v913 = vld [vmem:[%s242 + $0x1328] sm:$0xff]
        %v914 = vld [vmem:[%s242 + $0x1330] sm:$0xff]
        %v915 = vld [vmem:[%s242 + $0x1338] sm:$0xff]
        %v916 = vld [vmem:[%s242 + $0x1340] sm:$0xff]
        %v917 = vld [vmem:[%s242 + $0x1348] sm:$0xff]
        %v918 = vld [vmem:[%s242 + $0x1350] sm:$0xff]
        %v919 = vld [vmem:[%s242 + $0x1358] sm:$0xff]
        %v920 = vld [vmem:[%s242 + $0x1360] sm:$0xff]
        %v921 = vld [vmem:[%s242 + $0x1368] sm:$0xff]
        %v922 = vld [vmem:[%s242 + $0x1370] sm:$0xff]
        %v923 = vld [vmem:[%s242 + $0x1378] sm:$0xff]
        %v924 = vld [vmem:[%s242 + $0x1380] sm:$0xff]
        %v925 = vld [vmem:[%s242 + $0x1388] sm:$0xff]
        %v926 = vld [vmem:[%s242 + $0x1390] sm:$0xff]
        %v927 = vld [vmem:[%s242 + $0x1398] sm:$0xff]
        %v928 = vld [vmem:[%s242 + $0x13a0] sm:$0xff]
        %v929 = vld [vmem:[%s242 + $0x13a8] sm:$0xff]
        %v930 = vld [vmem:[%s242 + $0x13b0] sm:$0xff]
        %v931 = vld [vmem:[%s242 + $0x13b8] sm:$0xff]
        %v932 = vld [vmem:[%s242 + $0x13c0] sm:$0xff]
        %v933 = vld [vmem:[%s242 + $0x13c8] sm:$0xff]
        %v934 = vld [vmem:[%s242 + $0x13d0] sm:$0xff]
        %v935 = vld [vmem:[%s242 + $0x13d8] sm:$0xff]
        %v936 = vld [vmem:[%s242 + $0x13e0] sm:$0xff]
        %v937 = vld [vmem:[%s242 + $0x13e8] sm:$0xff]
        %v938 = vld [vmem:[%s242 + $0x13f0] sm:$0xff]
        %v939 = vld [vmem:[%s242 + $0x13f8] sm:$0xff]
        %v940 = vld [vmem:[%s242 + $0x1400] sm:$0xff]
        %v941 = vld [vmem:[%s242 + $0x1408] sm:$0xff]
        %v942 = vld [vmem:[%s242 + $0x1410] sm:$0xff]
        %v943 = vld [vmem:[%s242 + $0x1418] sm:$0xff]
        %v944 = vld [vmem:[%s242 + $0x1420] sm:$0xff]
        %v945 = vld [vmem:[%s242 + $0x1428] sm:$0xff]
        %v946 = vld [vmem:[%s242 + $0x1430] sm:$0xff]
        %v947 = vld [vmem:[%s242 + $0x1438] sm:$0xff]
        %v948 = vld [vmem:[%s242 + $0x1440] sm:$0xff]
        %v949 = vld [vmem:[%s242 + $0x1448] sm:$0xff]
        %v950 = vld [vmem:[%s242 + $0x1450] sm:$0xff]
        %v951 = vld [vmem:[%s242 + $0x1458] sm:$0xff]
        %v952 = vld [vmem:[%s242 + $0x1460] sm:$0xff]
        %v953 = vld [vmem:[%s242 + $0x1468] sm:$0xff]
        %v954 = vld [vmem:[%s242 + $0x1470] sm:$0xff]
        %v955 = vld [vmem:[%s242 + $0x1478] sm:$0xff]
        %v956 = vld [vmem:[%s242 + $0x1480] sm:$0xff]
        %v957 = vld [vmem:[%s242 + $0x1488] sm:$0xff]
        %v958 = vld [vmem:[%s242 + $0x1490] sm:$0xff]
        %v959 = vld [vmem:[%s242 + $0x1498] sm:$0xff]
        %v960 = vld [vmem:[%s242 + $0x14a0] sm:$0xff]
        %v961 = vld [vmem:[%s242 + $0x14a8] sm:$0xff]
        %v962 = vld [vmem:[%s242 + $0x14b0] sm:$0xff]
        %v963 = vld [vmem:[%s242 + $0x14b8] sm:$0xff]
        %v964 = vld [vmem:[%s242 + $0x14c0] sm:$0xff]
        %v965 = vld [vmem:[%s242 + $0x14c8] sm:$0xff]
        %v966 = vld [vmem:[%s242 + $0x14d0] sm:$0xff]
        %v967 = vld [vmem:[%s242 + $0x14d8] sm:$0xff]
        %v968 = vld [vmem:[%s242 + $0x14e0] sm:$0xff]
        %v969 = vld [vmem:[%s242 + $0x14e8] sm:$0xff]
        %v970 = vld [vmem:[%s242 + $0x14f0] sm:$0xff]
        %v971 = vld [vmem:[%s242 + $0x14f8] sm:$0xff]
        %v972 = vld [vmem:[%s242 + $0x1500] sm:$0xff]
        %v973 = vld [vmem:[%s242 + $0x1508] sm:$0xff]
        %v974 = vld [vmem:[%s242 + $0x1510] sm:$0xff]
        %v975 = vld [vmem:[%s242 + $0x1518] sm:$0xff]
        %v976 = vld [vmem:[%s242 + $0x1520] sm:$0xff]
        %v977 = vld [vmem:[%s242 + $0x1528] sm:$0xff]
        %v978 = vld [vmem:[%s242 + $0x1530] sm:$0xff]
        %v979 = vld [vmem:[%s242 + $0x1538] sm:$0xff]
        %v980 = vld [vmem:[%s242 + $0x1540] sm:$0xff]
        %v981 = vld [vmem:[%s242 + $0x1548] sm:$0xff]
        %v982 = vld [vmem:[%s242 + $0x1550] sm:$0xff]
        %v983 = vld [vmem:[%s242 + $0x1558] sm:$0xff]
        %v984 = vld [vmem:[%s242 + $0x1560] sm:$0xff]
        %v985 = vld [vmem:[%s242 + $0x1568] sm:$0xff]
        %v986 = vld [vmem:[%s242 + $0x1570] sm:$0xff]
        %v987 = vld [vmem:[%s242 + $0x1578] sm:$0xff]
        %v988 = vld [vmem:[%s242 + $0x1580] sm:$0xff]
        %v989 = vld [vmem:[%s242 + $0x1588] sm:$0xff]
        %v990 = vld [vmem:[%s242 + $0x1590] sm:$0xff]
        %v991 = vld [vmem:[%s242 + $0x1598] sm:$0xff]
        %v992 = vld [vmem:[%s242 + $0x15a0] sm:$0xff]
        %v993 = vld [vmem:[%s242 + $0x15a8] sm:$0xff]
        %v994 = vld [vmem:[%s242 + $0x15b0] sm:$0xff]
        %v995 = vld [vmem:[%s242 + $0x15b8] sm:$0xff]
        %v996 = vld [vmem:[%s242 + $0x15c0] sm:$0xff]
        %v997 = vld [vmem:[%s242 + $0x15c8] sm:$0xff]
        %v998 = vld [vmem:[%s242 + $0x15d0] sm:$0xff]
        %v999 = vld [vmem:[%s242 + $0x15d8] sm:$0xff]
        %v1000 = vld [vmem:[%s242 + $0x15e0] sm:$0xff]
        %v1001 = vld [vmem:[%s242 + $0x15e8] sm:$0xff]
        %v1002 = vld [vmem:[%s242 + $0x15f0] sm:$0xff]
        %v1003 = vld [vmem:[%s242 + $0x15f8] sm:$0xff]
        %v1004 = vld [vmem:[%s242 + $0x1600] sm:$0xff]
        %v1005 = vld [vmem:[%s242 + $0x1608] sm:$0xff]
        %v1006 = vld [vmem:[%s242 + $0x1610] sm:$0xff]
        %v1007 = vld [vmem:[%s242 + $0x1618] sm:$0xff]
        %v1008 = vld [vmem:[%s242 + $0x1620] sm:$0xff]
        %v1009 = vld [vmem:[%s242 + $0x1628] sm:$0xff]
        %v1010 = vld [vmem:[%s242 + $0x1630] sm:$0xff]
        %v1011 = vld [vmem:[%s242 + $0x1638] sm:$0xff]
        %v1012 = vld [vmem:[%s242 + $0x1640] sm:$0xff]
        %v1013 = vld [vmem:[%s242 + $0x1648] sm:$0xff]
        %v1014 = vld [vmem:[%s242 + $0x1650] sm:$0xff]
        %v1015 = vld [vmem:[%s242 + $0x1658] sm:$0xff]
        %v1016 = vld [vmem:[%s242 + $0x1660] sm:$0xff]
        %v1017 = vld [vmem:[%s242 + $0x1668] sm:$0xff]
        %v1018 = vld [vmem:[%s242 + $0x1670] sm:$0xff]
        %v1019 = vld [vmem:[%s242 + $0x1678] sm:$0xff]
        %v1020 = vld [vmem:[%s242 + $0x1680] sm:$0xff]
        %v1021 = vld [vmem:[%s242 + $0x1688] sm:$0xff]
        %v1022 = vld [vmem:[%s242 + $0x1690] sm:$0xff]
        %v1023 = vld [vmem:[%s242 + $0x1698] sm:$0xff]
        %v1024 = vld [vmem:[%s242 + $0x16a0] sm:$0xff]
        %v1025 = vld [vmem:[%s242 + $0x16a8] sm:$0xff]
        %v1026 = vld [vmem:[%s242 + $0x16b0] sm:$0xff]
        %v1027 = vld [vmem:[%s242 + $0x16b8] sm:$0xff]
        %v1028 = vld [vmem:[%s242 + $0x16c0] sm:$0xff]
        %v1029 = vld [vmem:[%s242 + $0x16c8] sm:$0xff]
        %v1030 = vld [vmem:[%s242 + $0x16d0] sm:$0xff]
        %v1031 = vld [vmem:[%s242 + $0x16d8] sm:$0xff]
        %v1032 = vld [vmem:[%s242 + $0x16e0] sm:$0xff]
        %v1033 = vld [vmem:[%s242 + $0x16e8] sm:$0xff]
        %v1034 = vld [vmem:[%s242 + $0x16f0] sm:$0xff]
        %v1035 = vld [vmem:[%s242 + $0x16f8] sm:$0xff]
        %v1036 = vld [vmem:[%s242 + $0x1700] sm:$0xff]
        %v1037 = vld [vmem:[%s242 + $0x1708] sm:$0xff]
        %v1038 = vld [vmem:[%s242 + $0x1710] sm:$0xff]
        %v1039 = vld [vmem:[%s242 + $0x1718] sm:$0xff]
        %v1040 = vld [vmem:[%s242 + $0x1720] sm:$0xff]
        %v1041 = vld [vmem:[%s242 + $0x1728] sm:$0xff]
        %v1042 = vld [vmem:[%s242 + $0x1730] sm:$0xff]
        %v1043 = vld [vmem:[%s242 + $0x1738] sm:$0xff]
        %v1044 = vld [vmem:[%s242 + $0x1740] sm:$0xff]
        %v1045 = vld [vmem:[%s242 + $0x1748] sm:$0xff]
        %v1046 = vld [vmem:[%s242 + $0x1750] sm:$0xff]
        %v1047 = vld [vmem:[%s242 + $0x1758] sm:$0xff]
        %v1048 = vld [vmem:[%s242 + $0x1760] sm:$0xff]
        %v1049 = vld [vmem:[%s242 + $0x1768] sm:$0xff]
        %v1050 = vld [vmem:[%s242 + $0x1770] sm:$0xff]
        %v1051 = vld [vmem:[%s242 + $0x1778] sm:$0xff]
        %v1052 = vld [vmem:[%s242 + $0x1780] sm:$0xff]
        %v1053 = vld [vmem:[%s242 + $0x1788] sm:$0xff]
        %v1054 = vld [vmem:[%s242 + $0x1790] sm:$0xff]
        %v1055 = vld [vmem:[%s242 + $0x1798] sm:$0xff]
        %v1056 = vld [vmem:[%s242 + $0x17a0] sm:$0xff]
        %v1057 = vld [vmem:[%s242 + $0x17a8] sm:$0xff]
        %v1058 = vld [vmem:[%s242 + $0x17b0] sm:$0xff]
        %v1059 = vld [vmem:[%s242 + $0x17b8] sm:$0xff]
        %v1060 = vld [vmem:[%s242 + $0x17c0] sm:$0xff]
        %v1061 = vld [vmem:[%s242 + $0x17c8] sm:$0xff]
        %v1062 = vld [vmem:[%s242 + $0x17d0] sm:$0xff]
        %v1063 = vld [vmem:[%s242 + $0x17d8] sm:$0xff]
        %v1064 = vld [vmem:[%s242 + $0x17e0] sm:$0xff]
        %v1065 = vld [vmem:[%s242 + $0x17e8] sm:$0xff]
        %v1066 = vld [vmem:[%s242 + $0x17f0] sm:$0xff]
        %v1067 = vld [vmem:[%s242 + $0x17f8] sm:$0xff]
        %v1068 = vld [vmem:[%s232] sm:$0xff]
        %v1069 = vld [vmem:[%s232 + $0x8] sm:$0xff]
        %v1070 = vld [vmem:[%s232 + $0x10] sm:$0xff]
        %v1071 = vld [vmem:[%s232 + $0x18] sm:$0xff]
        %v1072 = vld [vmem:[%s232 + $0x20] sm:$0xff]
        %v1073 = vld [vmem:[%s232 + $0x28] sm:$0xff]
        %v1074 = vld [vmem:[%s232 + $0x30] sm:$0xff]
        %v1075 = vld [vmem:[%s232 + $0x38] sm:$0xff]
        %v1076 = vld [vmem:[%s232 + $0x40] sm:$0xff]
        %v1077 = vld [vmem:[%s232 + $0x48] sm:$0xff]
        %v1078 = vld [vmem:[%s232 + $0x50] sm:$0xff]
        %v1079 = vld [vmem:[%s232 + $0x58] sm:$0xff]
        %v1080 = vld [vmem:[%s232 + $0x60] sm:$0xff]
        %v1081 = vld [vmem:[%s232 + $0x68] sm:$0xff]
        %v1082 = vld [vmem:[%s232 + $0x70] sm:$0xff]
        %v1083 = vld [vmem:[%s232 + $0x78] sm:$0xff]
        %v1084 = vld [vmem:[%s232 + $0x80] sm:$0xff]
        %v1085 = vld [vmem:[%s232 + $0x88] sm:$0xff]
        %v1086 = vld [vmem:[%s232 + $0x90] sm:$0xff]
        %v1087 = vld [vmem:[%s232 + $0x98] sm:$0xff]
        %v1088 = vld [vmem:[%s232 + $0xa0] sm:$0xff]
        %v1089 = vld [vmem:[%s232 + $0xa8] sm:$0xff]
        %v1090 = vld [vmem:[%s232 + $0xb0] sm:$0xff]
        %v1091 = vld [vmem:[%s232 + $0xb8] sm:$0xff]
        %v1092 = vld [vmem:[%s232 + $0xc0] sm:$0xff]
        %v1093 = vld [vmem:[%s232 + $0xc8] sm:$0xff]
        %v1094 = vld [vmem:[%s232 + $0xd0] sm:$0xff]
        %v1095 = vld [vmem:[%s232 + $0xd8] sm:$0xff]
        %v1096 = vld [vmem:[%s232 + $0xe0] sm:$0xff]
        %v1097 = vld [vmem:[%s232 + $0xe8] sm:$0xff]
        %v1098 = vld [vmem:[%s232 + $0xf0] sm:$0xff]
        %v1099 = vld [vmem:[%s232 + $0xf8] sm:$0xff]
        %v1100 = vld [vmem:[%s232 + $0x100] sm:$0xff]
        %v1101 = vld [vmem:[%s232 + $0x108] sm:$0xff]
        %v1102 = vld [vmem:[%s232 + $0x110] sm:$0xff]
        %v1103 = vld [vmem:[%s232 + $0x118] sm:$0xff]
        %v1104 = vld [vmem:[%s232 + $0x120] sm:$0xff]
        %v1105 = vld [vmem:[%s232 + $0x128] sm:$0xff]
        %v1106 = vld [vmem:[%s232 + $0x130] sm:$0xff]
        %v1107 = vld [vmem:[%s232 + $0x138] sm:$0xff]
        %v1108 = vld [vmem:[%s232 + $0x140] sm:$0xff]
        %v1109 = vld [vmem:[%s232 + $0x148] sm:$0xff]
        %v1110 = vld [vmem:[%s232 + $0x150] sm:$0xff]
        %v1111 = vld [vmem:[%s232 + $0x158] sm:$0xff]
        %v1112 = vld [vmem:[%s232 + $0x160] sm:$0xff]
        %v1113 = vld [vmem:[%s232 + $0x168] sm:$0xff]
        %v1114 = vld [vmem:[%s232 + $0x170] sm:$0xff]
        %v1115 = vld [vmem:[%s232 + $0x178] sm:$0xff]
        %v1116 = vld [vmem:[%s232 + $0x180] sm:$0xff]
        %v1117 = vld [vmem:[%s232 + $0x188] sm:$0xff]
        %v1118 = vld [vmem:[%s232 + $0x190] sm:$0xff]
        %v1119 = vld [vmem:[%s232 + $0x198] sm:$0xff]
        %v1120 = vld [vmem:[%s232 + $0x1a0] sm:$0xff]
        %v1121 = vld [vmem:[%s232 + $0x1a8] sm:$0xff]
        %v1122 = vld [vmem:[%s232 + $0x1b0] sm:$0xff]
        %v1123 = vld [vmem:[%s232 + $0x1b8] sm:$0xff]
        %v1124 = vld [vmem:[%s232 + $0x1c0] sm:$0xff]
        %v1125 = vld [vmem:[%s232 + $0x1c8] sm:$0xff]
        %v1126 = vld [vmem:[%s232 + $0x1d0] sm:$0xff]
        %v1127 = vld [vmem:[%s232 + $0x1d8] sm:$0xff]
        %v1128 = vld [vmem:[%s232 + $0x1e0] sm:$0xff]
        %v1129 = vld [vmem:[%s232 + $0x1e8] sm:$0xff]
        %v1130 = vld [vmem:[%s232 + $0x1f0] sm:$0xff]
        %v1131 = vld [vmem:[%s232 + $0x1f8] sm:$0xff]
        %v1132 = vld [vmem:[%s232 + $0x200] sm:$0xff]
        %v1133 = vld [vmem:[%s232 + $0x208] sm:$0xff]
        %v1134 = vld [vmem:[%s232 + $0x210] sm:$0xff]
        %v1135 = vld [vmem:[%s232 + $0x218] sm:$0xff]
        %v1136 = vld [vmem:[%s232 + $0x220] sm:$0xff]
        %v1137 = vld [vmem:[%s232 + $0x228] sm:$0xff]
        %v1138 = vld [vmem:[%s232 + $0x230] sm:$0xff]
        %v1139 = vld [vmem:[%s232 + $0x238] sm:$0xff]
        %v1140 = vld [vmem:[%s232 + $0x240] sm:$0xff]
        %v1141 = vld [vmem:[%s232 + $0x248] sm:$0xff]
        %v1142 = vld [vmem:[%s232 + $0x250] sm:$0xff]
        %v1143 = vld [vmem:[%s232 + $0x258] sm:$0xff]
        %v1144 = vld [vmem:[%s232 + $0x260] sm:$0xff]
        %v1145 = vld [vmem:[%s232 + $0x268] sm:$0xff]
        %v1146 = vld [vmem:[%s232 + $0x270] sm:$0xff]
        %v1147 = vld [vmem:[%s232 + $0x278] sm:$0xff]
        %v1148 = vld [vmem:[%s232 + $0x280] sm:$0xff]
        %v1149 = vld [vmem:[%s232 + $0x288] sm:$0xff]
        %v1150 = vld [vmem:[%s232 + $0x290] sm:$0xff]
        %v1151 = vld [vmem:[%s232 + $0x298] sm:$0xff]
        %v1152 = vld [vmem:[%s232 + $0x2a0] sm:$0xff]
        %v1153 = vld [vmem:[%s232 + $0x2a8] sm:$0xff]
        %v1154 = vld [vmem:[%s232 + $0x2b0] sm:$0xff]
        %v1155 = vld [vmem:[%s232 + $0x2b8] sm:$0xff]
        %v1156 = vld [vmem:[%s232 + $0x2c0] sm:$0xff]
        %v1157 = vld [vmem:[%s232 + $0x2c8] sm:$0xff]
        %v1158 = vld [vmem:[%s232 + $0x2d0] sm:$0xff]
        %v1159 = vld [vmem:[%s232 + $0x2d8] sm:$0xff]
        %v1160 = vld [vmem:[%s232 + $0x2e0] sm:$0xff]
        %v1161 = vld [vmem:[%s232 + $0x2e8] sm:$0xff]
        %v1162 = vld [vmem:[%s232 + $0x2f0] sm:$0xff]
        %v1163 = vld [vmem:[%s232 + $0x2f8] sm:$0xff]
        %v1164 = vld [vmem:[%s232 + $0x300] sm:$0xff]
        %v1165 = vld [vmem:[%s232 + $0x308] sm:$0xff]
        %v1166 = vld [vmem:[%s232 + $0x310] sm:$0xff]
        %v1167 = vld [vmem:[%s232 + $0x318] sm:$0xff]
        %v1168 = vld [vmem:[%s232 + $0x320] sm:$0xff]
        %v1169 = vld [vmem:[%s232 + $0x328] sm:$0xff]
        %v1170 = vld [vmem:[%s232 + $0x330] sm:$0xff]
        %v1171 = vld [vmem:[%s232 + $0x338] sm:$0xff]
        %v1172 = vld [vmem:[%s232 + $0x340] sm:$0xff]
        %v1173 = vld [vmem:[%s232 + $0x348] sm:$0xff]
        %v1174 = vld [vmem:[%s232 + $0x350] sm:$0xff]
        %v1175 = vld [vmem:[%s232 + $0x358] sm:$0xff]
        %v1176 = vld [vmem:[%s232 + $0x360] sm:$0xff]
        %v1177 = vld [vmem:[%s232 + $0x368] sm:$0xff]
        %v1178 = vld [vmem:[%s232 + $0x370] sm:$0xff]
        %v1179 = vld [vmem:[%s232 + $0x378] sm:$0xff]
        %v1180 = vld [vmem:[%s232 + $0x380] sm:$0xff]
        %v1181 = vld [vmem:[%s232 + $0x388] sm:$0xff]
        %v1182 = vld [vmem:[%s232 + $0x390] sm:$0xff]
        %v1183 = vld [vmem:[%s232 + $0x398] sm:$0xff]
        %v1184 = vld [vmem:[%s232 + $0x3a0] sm:$0xff]
        %v1185 = vld [vmem:[%s232 + $0x3a8] sm:$0xff]
        %v1186 = vld [vmem:[%s232 + $0x3b0] sm:$0xff]
        %v1187 = vld [vmem:[%s232 + $0x3b8] sm:$0xff]
        %v1188 = vld [vmem:[%s232 + $0x3c0] sm:$0xff]
        %v1189 = vld [vmem:[%s232 + $0x3c8] sm:$0xff]
        %v1190 = vld [vmem:[%s232 + $0x3d0] sm:$0xff]
        %v1191 = vld [vmem:[%s232 + $0x3d8] sm:$0xff]
        %v1192 = vld [vmem:[%s232 + $0x3e0] sm:$0xff]
        %v1193 = vld [vmem:[%s232 + $0x3e8] sm:$0xff]
        %v1194 = vld [vmem:[%s232 + $0x3f0] sm:$0xff]
        %v1195 = vld [vmem:[%s232 + $0x3f8] sm:$0xff]
        %v1196 = vld [vmem:[%s232 + $0x400] sm:$0xff]
        %v1197 = vld [vmem:[%s232 + $0x408] sm:$0xff]
        %v1198 = vld [vmem:[%s232 + $0x410] sm:$0xff]
        %v1199 = vld [vmem:[%s232 + $0x418] sm:$0xff]
        %v1200 = vld [vmem:[%s232 + $0x420] sm:$0xff]
        %v1201 = vld [vmem:[%s232 + $0x428] sm:$0xff]
        %v1202 = vld [vmem:[%s232 + $0x430] sm:$0xff]
        %v1203 = vld [vmem:[%s232 + $0x438] sm:$0xff]
        %v1204 = vld [vmem:[%s232 + $0x440] sm:$0xff]
        %v1205 = vld [vmem:[%s232 + $0x448] sm:$0xff]
        %v1206 = vld [vmem:[%s232 + $0x450] sm:$0xff]
        %v1207 = vld [vmem:[%s232 + $0x458] sm:$0xff]
        %v1208 = vld [vmem:[%s232 + $0x460] sm:$0xff]
        %v1209 = vld [vmem:[%s232 + $0x468] sm:$0xff]
        %v1210 = vld [vmem:[%s232 + $0x470] sm:$0xff]
        %v1211 = vld [vmem:[%s232 + $0x478] sm:$0xff]
        %v1212 = vld [vmem:[%s232 + $0x480] sm:$0xff]
        %v1213 = vld [vmem:[%s232 + $0x488] sm:$0xff]
        %v1214 = vld [vmem:[%s232 + $0x490] sm:$0xff]
        %v1215 = vld [vmem:[%s232 + $0x498] sm:$0xff]
        %v1216 = vld [vmem:[%s232 + $0x4a0] sm:$0xff]
        %v1217 = vld [vmem:[%s232 + $0x4a8] sm:$0xff]
        %v1218 = vld [vmem:[%s232 + $0x4b0] sm:$0xff]
        %v1219 = vld [vmem:[%s232 + $0x4b8] sm:$0xff]
        %v1220 = vld [vmem:[%s232 + $0x4c0] sm:$0xff]
        %v1221 = vld [vmem:[%s232 + $0x4c8] sm:$0xff]
        %v1222 = vld [vmem:[%s232 + $0x4d0] sm:$0xff]
        %v1223 = vld [vmem:[%s232 + $0x4d8] sm:$0xff]
        %v1224 = vld [vmem:[%s232 + $0x4e0] sm:$0xff]
        %v1225 = vld [vmem:[%s232 + $0x4e8] sm:$0xff]
        %v1226 = vld [vmem:[%s232 + $0x4f0] sm:$0xff]
        %v1227 = vld [vmem:[%s232 + $0x4f8] sm:$0xff]
        %v1228 = vld [vmem:[%s232 + $0x500] sm:$0xff]
        %v1229 = vld [vmem:[%s232 + $0x508] sm:$0xff]
        %v1230 = vld [vmem:[%s232 + $0x510] sm:$0xff]
        %v1231 = vld [vmem:[%s232 + $0x518] sm:$0xff]
        %v1232 = vld [vmem:[%s232 + $0x520] sm:$0xff]
        %v1233 = vld [vmem:[%s232 + $0x528] sm:$0xff]
        %v1234 = vld [vmem:[%s232 + $0x530] sm:$0xff]
        %v1235 = vld [vmem:[%s232 + $0x538] sm:$0xff]
        %v1236 = vld [vmem:[%s232 + $0x540] sm:$0xff]
        %v1237 = vld [vmem:[%s232 + $0x548] sm:$0xff]
        %v1238 = vld [vmem:[%s232 + $0x550] sm:$0xff]
        %v1239 = vld [vmem:[%s232 + $0x558] sm:$0xff]
        %v1240 = vld [vmem:[%s232 + $0x560] sm:$0xff]
        %v1241 = vld [vmem:[%s232 + $0x568] sm:$0xff]
        %v1242 = vld [vmem:[%s232 + $0x570] sm:$0xff]
        %v1243 = vld [vmem:[%s232 + $0x578] sm:$0xff]
        %v1244 = vld [vmem:[%s232 + $0x580] sm:$0xff]
        %v1245 = vld [vmem:[%s232 + $0x588] sm:$0xff]
        %v1246 = vld [vmem:[%s232 + $0x590] sm:$0xff]
        %v1247 = vld [vmem:[%s232 + $0x598] sm:$0xff]
        %v1248 = vld [vmem:[%s232 + $0x5a0] sm:$0xff]
        %v1249 = vld [vmem:[%s232 + $0x5a8] sm:$0xff]
        %v1250 = vld [vmem:[%s232 + $0x5b0] sm:$0xff]
        %v1251 = vld [vmem:[%s232 + $0x5b8] sm:$0xff]
        %v1252 = vld [vmem:[%s232 + $0x5c0] sm:$0xff]
        %v1253 = vld [vmem:[%s232 + $0x5c8] sm:$0xff]
        %v1254 = vld [vmem:[%s232 + $0x5d0] sm:$0xff]
        %v1255 = vld [vmem:[%s232 + $0x5d8] sm:$0xff]
        %v1256 = vld [vmem:[%s232 + $0x5e0] sm:$0xff]
        %v1257 = vld [vmem:[%s232 + $0x5e8] sm:$0xff]
        %v1258 = vld [vmem:[%s232 + $0x5f0] sm:$0xff]
        %v1259 = vld [vmem:[%s232 + $0x5f8] sm:$0xff]
        %v1260 = vld [vmem:[%s232 + $0x600] sm:$0xff]
        %v1261 = vld [vmem:[%s232 + $0x608] sm:$0xff]
        %v1262 = vld [vmem:[%s232 + $0x610] sm:$0xff]
        %v1263 = vld [vmem:[%s232 + $0x618] sm:$0xff]
        %v1264 = vld [vmem:[%s232 + $0x620] sm:$0xff]
        %v1265 = vld [vmem:[%s232 + $0x628] sm:$0xff]
        %v1266 = vld [vmem:[%s232 + $0x630] sm:$0xff]
        %v1267 = vld [vmem:[%s232 + $0x638] sm:$0xff]
        %v1268 = vld [vmem:[%s232 + $0x640] sm:$0xff]
        %v1269 = vld [vmem:[%s232 + $0x648] sm:$0xff]
        %v1270 = vld [vmem:[%s232 + $0x650] sm:$0xff]
        %v1271 = vld [vmem:[%s232 + $0x658] sm:$0xff]
        %v1272 = vld [vmem:[%s232 + $0x660] sm:$0xff]
        %v1273 = vld [vmem:[%s232 + $0x668] sm:$0xff]
        %v1274 = vld [vmem:[%s232 + $0x670] sm:$0xff]
        %v1275 = vld [vmem:[%s232 + $0x678] sm:$0xff]
        %v1276 = vld [vmem:[%s232 + $0x680] sm:$0xff]
        %v1277 = vld [vmem:[%s232 + $0x688] sm:$0xff]
        %v1278 = vld [vmem:[%s232 + $0x690] sm:$0xff]
        %v1279 = vld [vmem:[%s232 + $0x698] sm:$0xff]
        %v1280 = vld [vmem:[%s232 + $0x6a0] sm:$0xff]
        %v1281 = vld [vmem:[%s232 + $0x6a8] sm:$0xff]
        %v1282 = vld [vmem:[%s232 + $0x6b0] sm:$0xff]
        %v1283 = vld [vmem:[%s232 + $0x6b8] sm:$0xff]
        %v1284 = vld [vmem:[%s232 + $0x6c0] sm:$0xff]
        %v1285 = vld [vmem:[%s232 + $0x6c8] sm:$0xff]
        %v1286 = vld [vmem:[%s232 + $0x6d0] sm:$0xff]
        %v1287 = vld [vmem:[%s232 + $0x6d8] sm:$0xff]
        %v1288 = vld [vmem:[%s232 + $0x6e0] sm:$0xff]
        %v1289 = vld [vmem:[%s232 + $0x6e8] sm:$0xff]
        %v1290 = vld [vmem:[%s232 + $0x6f0] sm:$0xff]
        %v1291 = vld [vmem:[%s232 + $0x6f8] sm:$0xff]
        %v1292 = vld [vmem:[%s232 + $0x700] sm:$0xff]
        %v1293 = vld [vmem:[%s232 + $0x708] sm:$0xff]
        %v1294 = vld [vmem:[%s232 + $0x710] sm:$0xff]
        %v1295 = vld [vmem:[%s232 + $0x718] sm:$0xff]
        %v1296 = vld [vmem:[%s232 + $0x720] sm:$0xff]
        %v1297 = vld [vmem:[%s232 + $0x728] sm:$0xff]
        %v1298 = vld [vmem:[%s232 + $0x730] sm:$0xff]
        %v1299 = vld [vmem:[%s232 + $0x738] sm:$0xff]
        %v1300 = vld [vmem:[%s232 + $0x740] sm:$0xff]
        %v1301 = vld [vmem:[%s232 + $0x748] sm:$0xff]
        %v1302 = vld [vmem:[%s232 + $0x750] sm:$0xff]
        %v1303 = vld [vmem:[%s232 + $0x758] sm:$0xff]
        %v1304 = vld [vmem:[%s232 + $0x760] sm:$0xff]
        %v1305 = vld [vmem:[%s232 + $0x768] sm:$0xff]
        %v1306 = vld [vmem:[%s232 + $0x770] sm:$0xff]
        %v1307 = vld [vmem:[%s232 + $0x778] sm:$0xff]
        %v1308 = vld [vmem:[%s232 + $0x780] sm:$0xff]
        %v1309 = vld [vmem:[%s232 + $0x788] sm:$0xff]
        %v1310 = vld [vmem:[%s232 + $0x790] sm:$0xff]
        %v1311 = vld [vmem:[%s232 + $0x798] sm:$0xff]
        %v1312 = vld [vmem:[%s232 + $0x7a0] sm:$0xff]
        %v1313 = vld [vmem:[%s232 + $0x7a8] sm:$0xff]
        %v1314 = vld [vmem:[%s232 + $0x7b0] sm:$0xff]
        %v1315 = vld [vmem:[%s232 + $0x7b8] sm:$0xff]
        %v1316 = vld [vmem:[%s232 + $0x7c0] sm:$0xff]
        %v1317 = vld [vmem:[%s232 + $0x7c8] sm:$0xff]
        %v1318 = vld [vmem:[%s232 + $0x7d0] sm:$0xff]
        %v1319 = vld [vmem:[%s232 + $0x7d8] sm:$0xff]
        %v1320 = vld [vmem:[%s232 + $0x7e0] sm:$0xff]
        %v1321 = vld [vmem:[%s232 + $0x7e8] sm:$0xff]
        %v1322 = vld [vmem:[%s232 + $0x7f0] sm:$0xff]
        %v1323 = vld [vmem:[%s232 + $0x7f8] sm:$0xff]
        %v1324 = vld [vmem:[%s232 + $0x800] sm:$0xff]
        %v1325 = vld [vmem:[%s232 + $0x808] sm:$0xff]
        %v1326 = vld [vmem:[%s232 + $0x810] sm:$0xff]
        %v1327 = vld [vmem:[%s232 + $0x818] sm:$0xff]
        %v1328 = vld [vmem:[%s232 + $0x820] sm:$0xff]
        %v1329 = vld [vmem:[%s232 + $0x828] sm:$0xff]
        %v1330 = vld [vmem:[%s232 + $0x830] sm:$0xff]
        %v1331 = vld [vmem:[%s232 + $0x838] sm:$0xff]
        %v1332 = vld [vmem:[%s232 + $0x840] sm:$0xff]
        %v1333 = vld [vmem:[%s232 + $0x848] sm:$0xff]
        %v1334 = vld [vmem:[%s232 + $0x850] sm:$0xff]
        %v1335 = vld [vmem:[%s232 + $0x858] sm:$0xff]
        %v1336 = vld [vmem:[%s232 + $0x860] sm:$0xff]
        %v1337 = vld [vmem:[%s232 + $0x868] sm:$0xff]
        %v1338 = vld [vmem:[%s232 + $0x870] sm:$0xff]
        %v1339 = vld [vmem:[%s232 + $0x878] sm:$0xff]
        %v1340 = vld [vmem:[%s232 + $0x880] sm:$0xff]
        %v1341 = vld [vmem:[%s232 + $0x888] sm:$0xff]
        %v1342 = vld [vmem:[%s232 + $0x890] sm:$0xff]
        %v1343 = vld [vmem:[%s232 + $0x898] sm:$0xff]
        %v1344 = vld [vmem:[%s232 + $0x8a0] sm:$0xff]
        %v1345 = vld [vmem:[%s232 + $0x8a8] sm:$0xff]
        %v1346 = vld [vmem:[%s232 + $0x8b0] sm:$0xff]
        %v1347 = vld [vmem:[%s232 + $0x8b8] sm:$0xff]
        %v1348 = vld [vmem:[%s232 + $0x8c0] sm:$0xff]
        %v1349 = vld [vmem:[%s232 + $0x8c8] sm:$0xff]
        %v1350 = vld [vmem:[%s232 + $0x8d0] sm:$0xff]
        %v1351 = vld [vmem:[%s232 + $0x8d8] sm:$0xff]
        %v1352 = vld [vmem:[%s232 + $0x8e0] sm:$0xff]
        %v1353 = vld [vmem:[%s232 + $0x8e8] sm:$0xff]
        %v1354 = vld [vmem:[%s232 + $0x8f0] sm:$0xff]
        %v1355 = vld [vmem:[%s232 + $0x8f8] sm:$0xff]
        %v1356 = vld [vmem:[%s232 + $0x900] sm:$0xff]
        %v1357 = vld [vmem:[%s232 + $0x908] sm:$0xff]
        %v1358 = vld [vmem:[%s232 + $0x910] sm:$0xff]
        %v1359 = vld [vmem:[%s232 + $0x918] sm:$0xff]
        %v1360 = vld [vmem:[%s232 + $0x920] sm:$0xff]
        %v1361 = vld [vmem:[%s232 + $0x928] sm:$0xff]
        %v1362 = vld [vmem:[%s232 + $0x930] sm:$0xff]
        %v1363 = vld [vmem:[%s232 + $0x938] sm:$0xff]
        %v1364 = vld [vmem:[%s232 + $0x940] sm:$0xff]
        %v1365 = vld [vmem:[%s232 + $0x948] sm:$0xff]
        %v1366 = vld [vmem:[%s232 + $0x950] sm:$0xff]
        %v1367 = vld [vmem:[%s232 + $0x958] sm:$0xff]
        %v1368 = vld [vmem:[%s232 + $0x960] sm:$0xff]
        %v1369 = vld [vmem:[%s232 + $0x968] sm:$0xff]
        %v1370 = vld [vmem:[%s232 + $0x970] sm:$0xff]
        %v1371 = vld [vmem:[%s232 + $0x978] sm:$0xff]
        %v1372 = vld [vmem:[%s232 + $0x980] sm:$0xff]
        %v1373 = vld [vmem:[%s232 + $0x988] sm:$0xff]
        %v1374 = vld [vmem:[%s232 + $0x990] sm:$0xff]
        %v1375 = vld [vmem:[%s232 + $0x998] sm:$0xff]
        %v1376 = vld [vmem:[%s232 + $0x9a0] sm:$0xff]
        %v1377 = vld [vmem:[%s232 + $0x9a8] sm:$0xff]
        %v1378 = vld [vmem:[%s232 + $0x9b0] sm:$0xff]
        %v1379 = vld [vmem:[%s232 + $0x9b8] sm:$0xff]
        %v1380 = vld [vmem:[%s232 + $0x9c0] sm:$0xff]
        %v1381 = vld [vmem:[%s232 + $0x9c8] sm:$0xff]
        %v1382 = vld [vmem:[%s232 + $0x9d0] sm:$0xff]
        %v1383 = vld [vmem:[%s232 + $0x9d8] sm:$0xff]
        %v1384 = vld [vmem:[%s232 + $0x9e0] sm:$0xff]
        %v1385 = vld [vmem:[%s232 + $0x9e8] sm:$0xff]
        %v1386 = vld [vmem:[%s232 + $0x9f0] sm:$0xff]
        %v1387 = vld [vmem:[%s232 + $0x9f8] sm:$0xff]
        %v1388 = vld [vmem:[%s232 + $0xa00] sm:$0xff]
        %v1389 = vld [vmem:[%s232 + $0xa08] sm:$0xff]
        %v1390 = vld [vmem:[%s232 + $0xa10] sm:$0xff]
        %v1391 = vld [vmem:[%s232 + $0xa18] sm:$0xff]
        %v1392 = vld [vmem:[%s232 + $0xa20] sm:$0xff]
        %v1393 = vld [vmem:[%s232 + $0xa28] sm:$0xff]
        %v1394 = vld [vmem:[%s232 + $0xa30] sm:$0xff]
        %v1395 = vld [vmem:[%s232 + $0xa38] sm:$0xff]
        %v1396 = vld [vmem:[%s232 + $0xa40] sm:$0xff]
        %v1397 = vld [vmem:[%s232 + $0xa48] sm:$0xff]
        %v1398 = vld [vmem:[%s232 + $0xa50] sm:$0xff]
        %v1399 = vld [vmem:[%s232 + $0xa58] sm:$0xff]
        %v1400 = vld [vmem:[%s232 + $0xa60] sm:$0xff]
        %v1401 = vld [vmem:[%s232 + $0xa68] sm:$0xff]
        %v1402 = vld [vmem:[%s232 + $0xa70] sm:$0xff]
        %v1403 = vld [vmem:[%s232 + $0xa78] sm:$0xff]
        %v1404 = vld [vmem:[%s232 + $0xa80] sm:$0xff]
        %v1405 = vld [vmem:[%s232 + $0xa88] sm:$0xff]
        %v1406 = vld [vmem:[%s232 + $0xa90] sm:$0xff]
        %v1407 = vld [vmem:[%s232 + $0xa98] sm:$0xff]
        %v1408 = vld [vmem:[%s232 + $0xaa0] sm:$0xff]
        %v1409 = vld [vmem:[%s232 + $0xaa8] sm:$0xff]
        %v1410 = vld [vmem:[%s232 + $0xab0] sm:$0xff]
        %v1411 = vld [vmem:[%s232 + $0xab8] sm:$0xff]
        %v1412 = vld [vmem:[%s232 + $0xac0] sm:$0xff]
        %v1413 = vld [vmem:[%s232 + $0xac8] sm:$0xff]
        %v1414 = vld [vmem:[%s232 + $0xad0] sm:$0xff]
        %v1415 = vld [vmem:[%s232 + $0xad8] sm:$0xff]
        %v1416 = vld [vmem:[%s232 + $0xae0] sm:$0xff]
        %v1417 = vld [vmem:[%s232 + $0xae8] sm:$0xff]
        %v1418 = vld [vmem:[%s232 + $0xaf0] sm:$0xff]
        %v1419 = vld [vmem:[%s232 + $0xaf8] sm:$0xff]
        %v1420 = vld [vmem:[%s232 + $0xb00] sm:$0xff]
        %v1421 = vld [vmem:[%s232 + $0xb08] sm:$0xff]
        %v1422 = vld [vmem:[%s232 + $0xb10] sm:$0xff]
        %v1423 = vld [vmem:[%s232 + $0xb18] sm:$0xff]
        %v1424 = vld [vmem:[%s232 + $0xb20] sm:$0xff]
        %v1425 = vld [vmem:[%s232 + $0xb28] sm:$0xff]
        %v1426 = vld [vmem:[%s232 + $0xb30] sm:$0xff]
        %v1427 = vld [vmem:[%s232 + $0xb38] sm:$0xff]
        %v1428 = vld [vmem:[%s232 + $0xb40] sm:$0xff]
        %v1429 = vld [vmem:[%s232 + $0xb48] sm:$0xff]
        %v1430 = vld [vmem:[%s232 + $0xb50] sm:$0xff]
        %v1431 = vld [vmem:[%s232 + $0xb58] sm:$0xff]
        %v1432 = vld [vmem:[%s232 + $0xb60] sm:$0xff]
        %v1433 = vld [vmem:[%s232 + $0xb68] sm:$0xff]
        %v1434 = vld [vmem:[%s232 + $0xb70] sm:$0xff]
        %v1435 = vld [vmem:[%s232 + $0xb78] sm:$0xff]
        %v1436 = vld [vmem:[%s232 + $0xb80] sm:$0xff]
        %v1437 = vld [vmem:[%s232 + $0xb88] sm:$0xff]
        %v1438 = vld [vmem:[%s232 + $0xb90] sm:$0xff]
        %v1439 = vld [vmem:[%s232 + $0xb98] sm:$0xff]
        %v1440 = vld [vmem:[%s232 + $0xba0] sm:$0xff]
        %v1441 = vld [vmem:[%s232 + $0xba8] sm:$0xff]
        %v1442 = vld [vmem:[%s232 + $0xbb0] sm:$0xff]
        %v1443 = vld [vmem:[%s232 + $0xbb8] sm:$0xff]
        %v1444 = vld [vmem:[%s232 + $0xbc0] sm:$0xff]
        %v1445 = vld [vmem:[%s232 + $0xbc8] sm:$0xff]
        %v1446 = vld [vmem:[%s232 + $0xbd0] sm:$0xff]
        %v1447 = vld [vmem:[%s232 + $0xbd8] sm:$0xff]
        %v1448 = vld [vmem:[%s232 + $0xbe0] sm:$0xff]
        %v1449 = vld [vmem:[%s232 + $0xbe8] sm:$0xff]
        %v1450 = vld [vmem:[%s232 + $0xbf0] sm:$0xff]
        %v1451 = vld [vmem:[%s232 + $0xbf8] sm:$0xff]
        %v1452 = vld [vmem:[%s232 + $0xc00] sm:$0xff]
        %v1453 = vld [vmem:[%s232 + $0xc08] sm:$0xff]
        %v1454 = vld [vmem:[%s232 + $0xc10] sm:$0xff]
        %v1455 = vld [vmem:[%s232 + $0xc18] sm:$0xff]
        %v1456 = vld [vmem:[%s232 + $0xc20] sm:$0xff]
        %v1457 = vld [vmem:[%s232 + $0xc28] sm:$0xff]
        %v1458 = vld [vmem:[%s232 + $0xc30] sm:$0xff]
        %v1459 = vld [vmem:[%s232 + $0xc38] sm:$0xff]
        %v1460 = vld [vmem:[%s232 + $0xc40] sm:$0xff]
        %v1461 = vld [vmem:[%s232 + $0xc48] sm:$0xff]
        %v1462 = vld [vmem:[%s232 + $0xc50] sm:$0xff]
        %v1463 = vld [vmem:[%s232 + $0xc58] sm:$0xff]
        %v1464 = vld [vmem:[%s232 + $0xc60] sm:$0xff]
        %v1465 = vld [vmem:[%s232 + $0xc68] sm:$0xff]
        %v1466 = vld [vmem:[%s232 + $0xc70] sm:$0xff]
        %v1467 = vld [vmem:[%s232 + $0xc78] sm:$0xff]
        %v1468 = vld [vmem:[%s232 + $0xc80] sm:$0xff]
        %v1469 = vld [vmem:[%s232 + $0xc88] sm:$0xff]
        %v1470 = vld [vmem:[%s232 + $0xc90] sm:$0xff]
        %v1471 = vld [vmem:[%s232 + $0xc98] sm:$0xff]
        %v1472 = vld [vmem:[%s232 + $0xca0] sm:$0xff]
        %v1473 = vld [vmem:[%s232 + $0xca8] sm:$0xff]
        %v1474 = vld [vmem:[%s232 + $0xcb0] sm:$0xff]
        %v1475 = vld [vmem:[%s232 + $0xcb8] sm:$0xff]
        %v1476 = vld [vmem:[%s232 + $0xcc0] sm:$0xff]
        %v1477 = vld [vmem:[%s232 + $0xcc8] sm:$0xff]
        %v1478 = vld [vmem:[%s232 + $0xcd0] sm:$0xff]
        %v1479 = vld [vmem:[%s232 + $0xcd8] sm:$0xff]
        %v1480 = vld [vmem:[%s232 + $0xce0] sm:$0xff]
        %v1481 = vld [vmem:[%s232 + $0xce8] sm:$0xff]
        %v1482 = vld [vmem:[%s232 + $0xcf0] sm:$0xff]
        %v1483 = vld [vmem:[%s232 + $0xcf8] sm:$0xff]
        %v1484 = vld [vmem:[%s232 + $0xd00] sm:$0xff]
        %v1485 = vld [vmem:[%s232 + $0xd08] sm:$0xff]
        %v1486 = vld [vmem:[%s232 + $0xd10] sm:$0xff]
        %v1487 = vld [vmem:[%s232 + $0xd18] sm:$0xff]
        %v1488 = vld [vmem:[%s232 + $0xd20] sm:$0xff]
        %v1489 = vld [vmem:[%s232 + $0xd28] sm:$0xff]
        %v1490 = vld [vmem:[%s232 + $0xd30] sm:$0xff]
        %v1491 = vld [vmem:[%s232 + $0xd38] sm:$0xff]
        %v1492 = vld [vmem:[%s232 + $0xd40] sm:$0xff]
        %v1493 = vld [vmem:[%s232 + $0xd48] sm:$0xff]
        %v1494 = vld [vmem:[%s232 + $0xd50] sm:$0xff]
        %v1495 = vld [vmem:[%s232 + $0xd58] sm:$0xff]
        %v1496 = vld [vmem:[%s232 + $0xd60] sm:$0xff]
        %v1497 = vld [vmem:[%s232 + $0xd68] sm:$0xff]
        %v1498 = vld [vmem:[%s232 + $0xd70] sm:$0xff]
        %v1499 = vld [vmem:[%s232 + $0xd78] sm:$0xff]
        %v1500 = vld [vmem:[%s232 + $0xd80] sm:$0xff]
        %v1501 = vld [vmem:[%s232 + $0xd88] sm:$0xff]
        %v1502 = vld [vmem:[%s232 + $0xd90] sm:$0xff]
        %v1503 = vld [vmem:[%s232 + $0xd98] sm:$0xff]
        %v1504 = vld [vmem:[%s232 + $0xda0] sm:$0xff]
        %v1505 = vld [vmem:[%s232 + $0xda8] sm:$0xff]
        %v1506 = vld [vmem:[%s232 + $0xdb0] sm:$0xff]
        %v1507 = vld [vmem:[%s232 + $0xdb8] sm:$0xff]
        %v1508 = vld [vmem:[%s232 + $0xdc0] sm:$0xff]
        %v1509 = vld [vmem:[%s232 + $0xdc8] sm:$0xff]
        %v1510 = vld [vmem:[%s232 + $0xdd0] sm:$0xff]
        %v1511 = vld [vmem:[%s232 + $0xdd8] sm:$0xff]
        %v1512 = vld [vmem:[%s232 + $0xde0] sm:$0xff]
        %v1513 = vld [vmem:[%s232 + $0xde8] sm:$0xff]
        %v1514 = vld [vmem:[%s232 + $0xdf0] sm:$0xff]
        %v1515 = vld [vmem:[%s232 + $0xdf8] sm:$0xff]
        %v1516 = vld [vmem:[%s232 + $0xe00] sm:$0xff]
        %v1517 = vld [vmem:[%s232 + $0xe08] sm:$0xff]
        %v1518 = vld [vmem:[%s232 + $0xe10] sm:$0xff]
        %v1519 = vld [vmem:[%s232 + $0xe18] sm:$0xff]
        %v1520 = vld [vmem:[%s232 + $0xe20] sm:$0xff]
        %v1521 = vld [vmem:[%s232 + $0xe28] sm:$0xff]
        %v1522 = vld [vmem:[%s232 + $0xe30] sm:$0xff]
        %v1523 = vld [vmem:[%s232 + $0xe38] sm:$0xff]
        %v1524 = vld [vmem:[%s232 + $0xe40] sm:$0xff]
        %v1525 = vld [vmem:[%s232 + $0xe48] sm:$0xff]
        %v1526 = vld [vmem:[%s232 + $0xe50] sm:$0xff]
        %v1527 = vld [vmem:[%s232 + $0xe58] sm:$0xff]
        %v1528 = vld [vmem:[%s232 + $0xe60] sm:$0xff]
        %v1529 = vld [vmem:[%s232 + $0xe68] sm:$0xff]
        %v1530 = vld [vmem:[%s232 + $0xe70] sm:$0xff]
        %v1531 = vld [vmem:[%s232 + $0xe78] sm:$0xff]
        %v1532 = vld [vmem:[%s232 + $0xe80] sm:$0xff]
        %v1533 = vld [vmem:[%s232 + $0xe88] sm:$0xff]
        %v1534 = vld [vmem:[%s232 + $0xe90] sm:$0xff]
        %v1535 = vld [vmem:[%s232 + $0xe98] sm:$0xff]
        %v1536 = vld [vmem:[%s232 + $0xea0] sm:$0xff]
        %v1537 = vld [vmem:[%s232 + $0xea8] sm:$0xff]
        %v1538 = vld [vmem:[%s232 + $0xeb0] sm:$0xff]
        %v1539 = vld [vmem:[%s232 + $0xeb8] sm:$0xff]
        %v1540 = vld [vmem:[%s232 + $0xec0] sm:$0xff]
        %v1541 = vld [vmem:[%s232 + $0xec8] sm:$0xff]
        %v1542 = vld [vmem:[%s232 + $0xed0] sm:$0xff]
        %v1543 = vld [vmem:[%s232 + $0xed8] sm:$0xff]
        %v1544 = vld [vmem:[%s232 + $0xee0] sm:$0xff]
        %v1545 = vld [vmem:[%s232 + $0xee8] sm:$0xff]
        %v1546 = vld [vmem:[%s232 + $0xef0] sm:$0xff]
        %v1547 = vld [vmem:[%s232 + $0xef8] sm:$0xff]
        %v1548 = vld [vmem:[%s232 + $0xf00] sm:$0xff]
        %v1549 = vld [vmem:[%s232 + $0xf08] sm:$0xff]
        %v1550 = vld [vmem:[%s232 + $0xf10] sm:$0xff]
        %v1551 = vld [vmem:[%s232 + $0xf18] sm:$0xff]
        %v1552 = vld [vmem:[%s232 + $0xf20] sm:$0xff]
        %v1553 = vld [vmem:[%s232 + $0xf28] sm:$0xff]
        %v1554 = vld [vmem:[%s232 + $0xf30] sm:$0xff]
        %v1555 = vld [vmem:[%s232 + $0xf38] sm:$0xff]
        %v1556 = vld [vmem:[%s232 + $0xf40] sm:$0xff]
        %v1557 = vld [vmem:[%s232 + $0xf48] sm:$0xff]
        %v1558 = vld [vmem:[%s232 + $0xf50] sm:$0xff]
        %v1559 = vld [vmem:[%s232 + $0xf58] sm:$0xff]
        %v1560 = vld [vmem:[%s232 + $0xf60] sm:$0xff]
        %v1561 = vld [vmem:[%s232 + $0xf68] sm:$0xff]
        %v1562 = vld [vmem:[%s232 + $0xf70] sm:$0xff]
        %v1563 = vld [vmem:[%s232 + $0xf78] sm:$0xff]
        %v1564 = vld [vmem:[%s232 + $0xf80] sm:$0xff]
        %v1565 = vld [vmem:[%s232 + $0xf88] sm:$0xff]
        %v1566 = vld [vmem:[%s232 + $0xf90] sm:$0xff]
        %v1567 = vld [vmem:[%s232 + $0xf98] sm:$0xff]
        %v1568 = vld [vmem:[%s232 + $0xfa0] sm:$0xff]
        %v1569 = vld [vmem:[%s232 + $0xfa8] sm:$0xff]
        %v1570 = vld [vmem:[%s232 + $0xfb0] sm:$0xff]
        %v1571 = vld [vmem:[%s232 + $0xfb8] sm:$0xff]
        %v1572 = vld [vmem:[%s232 + $0xfc0] sm:$0xff]
        %v1573 = vld [vmem:[%s232 + $0xfc8] sm:$0xff]
        %v1574 = vld [vmem:[%s232 + $0xfd0] sm:$0xff]
        %v1575 = vld [vmem:[%s232 + $0xfd8] sm:$0xff]
        %v1576 = vld [vmem:[%s232 + $0xfe0] sm:$0xff]
        %v1577 = vld [vmem:[%s232 + $0xfe8] sm:$0xff]
        %v1578 = vld [vmem:[%s232 + $0xff0] sm:$0xff]
        %v1579 = vld [vmem:[%s232 + $0xff8] sm:$0xff]
        %v1580 = vld [vmem:[%s232 + $0x1000] sm:$0xff]
        %v1581 = vld [vmem:[%s232 + $0x1008] sm:$0xff]
        %v1582 = vld [vmem:[%s232 + $0x1010] sm:$0xff]
        %v1583 = vld [vmem:[%s232 + $0x1018] sm:$0xff]
        %v1584 = vld [vmem:[%s232 + $0x1020] sm:$0xff]
        %v1585 = vld [vmem:[%s232 + $0x1028] sm:$0xff]
        %v1586 = vld [vmem:[%s232 + $0x1030] sm:$0xff]
        %v1587 = vld [vmem:[%s232 + $0x1038] sm:$0xff]
        %v1588 = vld [vmem:[%s232 + $0x1040] sm:$0xff]
        %v1589 = vld [vmem:[%s232 + $0x1048] sm:$0xff]
        %v1590 = vld [vmem:[%s232 + $0x1050] sm:$0xff]
        %v1591 = vld [vmem:[%s232 + $0x1058] sm:$0xff]
        %v1592 = vld [vmem:[%s232 + $0x1060] sm:$0xff]
        %v1593 = vld [vmem:[%s232 + $0x1068] sm:$0xff]
        %v1594 = vld [vmem:[%s232 + $0x1070] sm:$0xff]
        %v1595 = vld [vmem:[%s232 + $0x1078] sm:$0xff]
        %v1596 = vld [vmem:[%s232 + $0x1080] sm:$0xff]
        %v1597 = vld [vmem:[%s232 + $0x1088] sm:$0xff]
        %v1598 = vld [vmem:[%s232 + $0x1090] sm:$0xff]
        %v1599 = vld [vmem:[%s232 + $0x1098] sm:$0xff]
        %v1600 = vld [vmem:[%s232 + $0x10a0] sm:$0xff]
        %v1601 = vld [vmem:[%s232 + $0x10a8] sm:$0xff]
        %v1602 = vld [vmem:[%s232 + $0x10b0] sm:$0xff]
        %v1603 = vld [vmem:[%s232 + $0x10b8] sm:$0xff]
        %v1604 = vld [vmem:[%s232 + $0x10c0] sm:$0xff]
        %v1605 = vld [vmem:[%s232 + $0x10c8] sm:$0xff]
        %v1606 = vld [vmem:[%s232 + $0x10d0] sm:$0xff]
        %v1607 = vld [vmem:[%s232 + $0x10d8] sm:$0xff]
        %v1608 = vld [vmem:[%s232 + $0x10e0] sm:$0xff]
        %v1609 = vld [vmem:[%s232 + $0x10e8] sm:$0xff]
        %v1610 = vld [vmem:[%s232 + $0x10f0] sm:$0xff]
        %v1611 = vld [vmem:[%s232 + $0x10f8] sm:$0xff]
        %v1612 = vld [vmem:[%s232 + $0x1100] sm:$0xff]
        %v1613 = vld [vmem:[%s232 + $0x1108] sm:$0xff]
        %v1614 = vld [vmem:[%s232 + $0x1110] sm:$0xff]
        %v1615 = vld [vmem:[%s232 + $0x1118] sm:$0xff]
        %v1616 = vld [vmem:[%s232 + $0x1120] sm:$0xff]
        %v1617 = vld [vmem:[%s232 + $0x1128] sm:$0xff]
        %v1618 = vld [vmem:[%s232 + $0x1130] sm:$0xff]
        %v1619 = vld [vmem:[%s232 + $0x1138] sm:$0xff]
        %v1620 = vld [vmem:[%s232 + $0x1140] sm:$0xff]
        %v1621 = vld [vmem:[%s232 + $0x1148] sm:$0xff]
        %v1622 = vld [vmem:[%s232 + $0x1150] sm:$0xff]
        %v1623 = vld [vmem:[%s232 + $0x1158] sm:$0xff]
        %v1624 = vld [vmem:[%s232 + $0x1160] sm:$0xff]
        %v1625 = vld [vmem:[%s232 + $0x1168] sm:$0xff]
        %v1626 = vld [vmem:[%s232 + $0x1170] sm:$0xff]
        %v1627 = vld [vmem:[%s232 + $0x1178] sm:$0xff]
        %v1628 = vld [vmem:[%s232 + $0x1180] sm:$0xff]
        %v1629 = vld [vmem:[%s232 + $0x1188] sm:$0xff]
        %v1630 = vld [vmem:[%s232 + $0x1190] sm:$0xff]
        %v1631 = vld [vmem:[%s232 + $0x1198] sm:$0xff]
        %v1632 = vld [vmem:[%s232 + $0x11a0] sm:$0xff]
        %v1633 = vld [vmem:[%s232 + $0x11a8] sm:$0xff]
        %v1634 = vld [vmem:[%s232 + $0x11b0] sm:$0xff]
        %v1635 = vld [vmem:[%s232 + $0x11b8] sm:$0xff]
        %v1636 = vld [vmem:[%s232 + $0x11c0] sm:$0xff]
        %v1637 = vld [vmem:[%s232 + $0x11c8] sm:$0xff]
        %v1638 = vld [vmem:[%s232 + $0x11d0] sm:$0xff]
        %v1639 = vld [vmem:[%s232 + $0x11d8] sm:$0xff]
        %v1640 = vld [vmem:[%s232 + $0x11e0] sm:$0xff]
        %v1641 = vld [vmem:[%s232 + $0x11e8] sm:$0xff]
        %v1642 = vld [vmem:[%s232 + $0x11f0] sm:$0xff]
        %v1643 = vld [vmem:[%s232 + $0x11f8] sm:$0xff]
        %v1644 = vld [vmem:[%s232 + $0x1200] sm:$0xff]
        %v1645 = vld [vmem:[%s232 + $0x1208] sm:$0xff]
        %v1646 = vld [vmem:[%s232 + $0x1210] sm:$0xff]
        %v1647 = vld [vmem:[%s232 + $0x1218] sm:$0xff]
        %v1648 = vld [vmem:[%s232 + $0x1220] sm:$0xff]
        %v1649 = vld [vmem:[%s232 + $0x1228] sm:$0xff]
        %v1650 = vld [vmem:[%s232 + $0x1230] sm:$0xff]
        %v1651 = vld [vmem:[%s232 + $0x1238] sm:$0xff]
        %v1652 = vld [vmem:[%s232 + $0x1240] sm:$0xff]
        %v1653 = vld [vmem:[%s232 + $0x1248] sm:$0xff]
        %v1654 = vld [vmem:[%s232 + $0x1250] sm:$0xff]
        %v1655 = vld [vmem:[%s232 + $0x1258] sm:$0xff]
        %v1656 = vld [vmem:[%s232 + $0x1260] sm:$0xff]
        %v1657 = vld [vmem:[%s232 + $0x1268] sm:$0xff]
        %v1658 = vld [vmem:[%s232 + $0x1270] sm:$0xff]
        %v1659 = vld [vmem:[%s232 + $0x1278] sm:$0xff]
        %v1660 = vld [vmem:[%s232 + $0x1280] sm:$0xff]
        %v1661 = vld [vmem:[%s232 + $0x1288] sm:$0xff]
        %v1662 = vld [vmem:[%s232 + $0x1290] sm:$0xff]
        %v1663 = vld [vmem:[%s232 + $0x1298] sm:$0xff]
        %v1664 = vld [vmem:[%s232 + $0x12a0] sm:$0xff]
        %v1665 = vld [vmem:[%s232 + $0x12a8] sm:$0xff]
        %v1666 = vld [vmem:[%s232 + $0x12b0] sm:$0xff]
        %v1667 = vld [vmem:[%s232 + $0x12b8] sm:$0xff]
        %v1668 = vld [vmem:[%s232 + $0x12c0] sm:$0xff]
        %v1669 = vld [vmem:[%s232 + $0x12c8] sm:$0xff]
        %v1670 = vld [vmem:[%s232 + $0x12d0] sm:$0xff]
        %v1671 = vld [vmem:[%s232 + $0x12d8] sm:$0xff]
        %v1672 = vld [vmem:[%s232 + $0x12e0] sm:$0xff]
        %v1673 = vld [vmem:[%s232 + $0x12e8] sm:$0xff]
        %v1674 = vld [vmem:[%s232 + $0x12f0] sm:$0xff]
        %v1675 = vld [vmem:[%s232 + $0x12f8] sm:$0xff]
        %v1676 = vld [vmem:[%s232 + $0x1300] sm:$0xff]
        %v1677 = vld [vmem:[%s232 + $0x1308] sm:$0xff]
        %v1678 = vld [vmem:[%s232 + $0x1310] sm:$0xff]
        %v1679 = vld [vmem:[%s232 + $0x1318] sm:$0xff]
        %v1680 = vld [vmem:[%s232 + $0x1320] sm:$0xff]
        %v1681 = vld [vmem:[%s232 + $0x1328] sm:$0xff]
        %v1682 = vld [vmem:[%s232 + $0x1330] sm:$0xff]
        %v1683 = vld [vmem:[%s232 + $0x1338] sm:$0xff]
        %v1684 = vld [vmem:[%s232 + $0x1340] sm:$0xff]
        %v1685 = vld [vmem:[%s232 + $0x1348] sm:$0xff]
        %v1686 = vld [vmem:[%s232 + $0x1350] sm:$0xff]
        %v1687 = vld [vmem:[%s232 + $0x1358] sm:$0xff]
        %v1688 = vld [vmem:[%s232 + $0x1360] sm:$0xff]
        %v1689 = vld [vmem:[%s232 + $0x1368] sm:$0xff]
        %v1690 = vld [vmem:[%s232 + $0x1370] sm:$0xff]
        %v1691 = vld [vmem:[%s232 + $0x1378] sm:$0xff]
        %v1692 = vld [vmem:[%s232 + $0x1380] sm:$0xff]
        %v1693 = vld [vmem:[%s232 + $0x1388] sm:$0xff]
        %v1694 = vld [vmem:[%s232 + $0x1390] sm:$0xff]
        %v1695 = vld [vmem:[%s232 + $0x1398] sm:$0xff]
        %v1696 = vld [vmem:[%s232 + $0x13a0] sm:$0xff]
        %v1697 = vld [vmem:[%s232 + $0x13a8] sm:$0xff]
        %v1698 = vld [vmem:[%s232 + $0x13b0] sm:$0xff]
        %v1699 = vld [vmem:[%s232 + $0x13b8] sm:$0xff]
        %v1700 = vld [vmem:[%s232 + $0x13c0] sm:$0xff]
        %v1701 = vld [vmem:[%s232 + $0x13c8] sm:$0xff]
        %v1702 = vld [vmem:[%s232 + $0x13d0] sm:$0xff]
        %v1703 = vld [vmem:[%s232 + $0x13d8] sm:$0xff]
        %v1704 = vld [vmem:[%s232 + $0x13e0] sm:$0xff]
        %v1705 = vld [vmem:[%s232 + $0x13e8] sm:$0xff]
        %v1706 = vld [vmem:[%s232 + $0x13f0] sm:$0xff]
        %v1707 = vld [vmem:[%s232 + $0x13f8] sm:$0xff]
        %v1708 = vld [vmem:[%s232 + $0x1400] sm:$0xff]
        %v1709 = vld [vmem:[%s232 + $0x1408] sm:$0xff]
        %v1710 = vld [vmem:[%s232 + $0x1410] sm:$0xff]
        %v1711 = vld [vmem:[%s232 + $0x1418] sm:$0xff]
        %v1712 = vld [vmem:[%s232 + $0x1420] sm:$0xff]
        %v1713 = vld [vmem:[%s232 + $0x1428] sm:$0xff]
        %v1714 = vld [vmem:[%s232 + $0x1430] sm:$0xff]
        %v1715 = vld [vmem:[%s232 + $0x1438] sm:$0xff]
        %v1716 = vld [vmem:[%s232 + $0x1440] sm:$0xff]
        %v1717 = vld [vmem:[%s232 + $0x1448] sm:$0xff]
        %v1718 = vld [vmem:[%s232 + $0x1450] sm:$0xff]
        %v1719 = vld [vmem:[%s232 + $0x1458] sm:$0xff]
        %v1720 = vld [vmem:[%s232 + $0x1460] sm:$0xff]
        %v1721 = vld [vmem:[%s232 + $0x1468] sm:$0xff]
        %v1722 = vld [vmem:[%s232 + $0x1470] sm:$0xff]
        %v1723 = vld [vmem:[%s232 + $0x1478] sm:$0xff]
        %v1724 = vld [vmem:[%s232 + $0x1480] sm:$0xff]
        %v1725 = vld [vmem:[%s232 + $0x1488] sm:$0xff]
        %v1726 = vld [vmem:[%s232 + $0x1490] sm:$0xff]
        %v1727 = vld [vmem:[%s232 + $0x1498] sm:$0xff]
        %v1728 = vld [vmem:[%s232 + $0x14a0] sm:$0xff]
        %v1729 = vld [vmem:[%s232 + $0x14a8] sm:$0xff]
        %v1730 = vld [vmem:[%s232 + $0x14b0] sm:$0xff]
        %v1731 = vld [vmem:[%s232 + $0x14b8] sm:$0xff]
        %v1732 = vld [vmem:[%s232 + $0x14c0] sm:$0xff]
        %v1733 = vld [vmem:[%s232 + $0x14c8] sm:$0xff]
        %v1734 = vld [vmem:[%s232 + $0x14d0] sm:$0xff]
        %v1735 = vld [vmem:[%s232 + $0x14d8] sm:$0xff]
        %v1736 = vld [vmem:[%s232 + $0x14e0] sm:$0xff]
        %v1737 = vld [vmem:[%s232 + $0x14e8] sm:$0xff]
        %v1738 = vld [vmem:[%s232 + $0x14f0] sm:$0xff]
        %v1739 = vld [vmem:[%s232 + $0x14f8] sm:$0xff]
        %v1740 = vld [vmem:[%s232 + $0x1500] sm:$0xff]
        %v1741 = vld [vmem:[%s232 + $0x1508] sm:$0xff]
        %v1742 = vld [vmem:[%s232 + $0x1510] sm:$0xff]
        %v1743 = vld [vmem:[%s232 + $0x1518] sm:$0xff]
        %v1744 = vld [vmem:[%s232 + $0x1520] sm:$0xff]
        %v1745 = vld [vmem:[%s232 + $0x1528] sm:$0xff]
        %v1746 = vld [vmem:[%s232 + $0x1530] sm:$0xff]
        %v1747 = vld [vmem:[%s232 + $0x1538] sm:$0xff]
        %v1748 = vld [vmem:[%s232 + $0x1540] sm:$0xff]
        %v1749 = vld [vmem:[%s232 + $0x1548] sm:$0xff]
        %v1750 = vld [vmem:[%s232 + $0x1550] sm:$0xff]
        %v1751 = vld [vmem:[%s232 + $0x1558] sm:$0xff]
        %v1752 = vld [vmem:[%s232 + $0x1560] sm:$0xff]
        %v1753 = vld [vmem:[%s232 + $0x1568] sm:$0xff]
        %v1754 = vld [vmem:[%s232 + $0x1570] sm:$0xff]
        %v1755 = vld [vmem:[%s232 + $0x1578] sm:$0xff]
        %v1756 = vld [vmem:[%s232 + $0x1580] sm:$0xff]
        %v1757 = vld [vmem:[%s232 + $0x1588] sm:$0xff]
        %v1758 = vld [vmem:[%s232 + $0x1590] sm:$0xff]
        %v1759 = vld [vmem:[%s232 + $0x1598] sm:$0xff]
        %v1760 = vld [vmem:[%s232 + $0x15a0] sm:$0xff]
        %v1761 = vld [vmem:[%s232 + $0x15a8] sm:$0xff]
        %v1762 = vld [vmem:[%s232 + $0x15b0] sm:$0xff]
        %v1763 = vld [vmem:[%s232 + $0x15b8] sm:$0xff]
        %v1764 = vld [vmem:[%s232 + $0x15c0] sm:$0xff]
        %v1765 = vld [vmem:[%s232 + $0x15c8] sm:$0xff]
        %v1766 = vld [vmem:[%s232 + $0x15d0] sm:$0xff]
        %v1767 = vld [vmem:[%s232 + $0x15d8] sm:$0xff]
        %v1768 = vld [vmem:[%s232 + $0x15e0] sm:$0xff]
        %v1769 = vld [vmem:[%s232 + $0x15e8] sm:$0xff]
        %v1770 = vld [vmem:[%s232 + $0x15f0] sm:$0xff]
        %v1771 = vld [vmem:[%s232 + $0x15f8] sm:$0xff]
        %v1772 = vld [vmem:[%s232 + $0x1600] sm:$0xff]
        %v1773 = vld [vmem:[%s232 + $0x1608] sm:$0xff]
        %v1774 = vld [vmem:[%s232 + $0x1610] sm:$0xff]
        %v1775 = vld [vmem:[%s232 + $0x1618] sm:$0xff]
        %v1776 = vld [vmem:[%s232 + $0x1620] sm:$0xff]
        %v1777 = vld [vmem:[%s232 + $0x1628] sm:$0xff]
        %v1778 = vld [vmem:[%s232 + $0x1630] sm:$0xff]
        %v1779 = vld [vmem:[%s232 + $0x1638] sm:$0xff]
        %v1780 = vld [vmem:[%s232 + $0x1640] sm:$0xff]
        %v1781 = vld [vmem:[%s232 + $0x1648] sm:$0xff]
        %v1782 = vld [vmem:[%s232 + $0x1650] sm:$0xff]
        %v1783 = vld [vmem:[%s232 + $0x1658] sm:$0xff]
        %v1784 = vld [vmem:[%s232 + $0x1660] sm:$0xff]
        %v1785 = vld [vmem:[%s232 + $0x1668] sm:$0xff]
        %v1786 = vld [vmem:[%s232 + $0x1670] sm:$0xff]
        %v1787 = vld [vmem:[%s232 + $0x1678] sm:$0xff]
        %v1788 = vld [vmem:[%s232 + $0x1680] sm:$0xff]
        %v1789 = vld [vmem:[%s232 + $0x1688] sm:$0xff]
        %v1790 = vld [vmem:[%s232 + $0x1690] sm:$0xff]
        %v1791 = vld [vmem:[%s232 + $0x1698] sm:$0xff]
        %v1792 = vld [vmem:[%s232 + $0x16a0] sm:$0xff]
        %v1793 = vld [vmem:[%s232 + $0x16a8] sm:$0xff]
        %v1794 = vld [vmem:[%s232 + $0x16b0] sm:$0xff]
        %v1795 = vld [vmem:[%s232 + $0x16b8] sm:$0xff]
        %v1796 = vld [vmem:[%s232 + $0x16c0] sm:$0xff]
        %v1797 = vld [vmem:[%s232 + $0x16c8] sm:$0xff]
        %v1798 = vld [vmem:[%s232 + $0x16d0] sm:$0xff]
        %v1799 = vld [vmem:[%s232 + $0x16d8] sm:$0xff]
        %v1800 = vld [vmem:[%s232 + $0x16e0] sm:$0xff]
        %v1801 = vld [vmem:[%s232 + $0x16e8] sm:$0xff]
        %v1802 = vld [vmem:[%s232 + $0x16f0] sm:$0xff]
        %v1803 = vld [vmem:[%s232 + $0x16f8] sm:$0xff]
        %v1804 = vld [vmem:[%s232 + $0x1700] sm:$0xff]
        %v1805 = vld [vmem:[%s232 + $0x1708] sm:$0xff]
        %v1806 = vld [vmem:[%s232 + $0x1710] sm:$0xff]
        %v1807 = vld [vmem:[%s232 + $0x1718] sm:$0xff]
        %v1808 = vld [vmem:[%s232 + $0x1720] sm:$0xff]
        %v1809 = vld [vmem:[%s232 + $0x1728] sm:$0xff]
        %v1810 = vld [vmem:[%s232 + $0x1730] sm:$0xff]
        %v1811 = vld [vmem:[%s232 + $0x1738] sm:$0xff]
        %v1812 = vld [vmem:[%s232 + $0x1740] sm:$0xff]
        %v1813 = vld [vmem:[%s232 + $0x1748] sm:$0xff]
        %v1814 = vld [vmem:[%s232 + $0x1750] sm:$0xff]
        %v1815 = vld [vmem:[%s232 + $0x1758] sm:$0xff]
        %v1816 = vld [vmem:[%s232 + $0x1760] sm:$0xff]
        %v1817 = vld [vmem:[%s232 + $0x1768] sm:$0xff]
        %v1818 = vld [vmem:[%s232 + $0x1770] sm:$0xff]
        %v1819 = vld [vmem:[%s232 + $0x1778] sm:$0xff]
        %v1820 = vld [vmem:[%s232 + $0x1780] sm:$0xff]
        %v1821 = vld [vmem:[%s232 + $0x1788] sm:$0xff]
        %v1822 = vld [vmem:[%s232 + $0x1790] sm:$0xff]
        %v1823 = vld [vmem:[%s232 + $0x1798] sm:$0xff]
        %v1824 = vld [vmem:[%s232 + $0x17a0] sm:$0xff]
        %v1825 = vld [vmem:[%s232 + $0x17a8] sm:$0xff]
        %v1826 = vld [vmem:[%s232 + $0x17b0] sm:$0xff]
        %v1827 = vld [vmem:[%s232 + $0x17b8] sm:$0xff]
        %v1828 = vld [vmem:[%s232 + $0x17c0] sm:$0xff]
        %v1829 = vld [vmem:[%s232 + $0x17c8] sm:$0xff]
        %v1830 = vld [vmem:[%s232 + $0x17d0] sm:$0xff]
        %v1831 = vld [vmem:[%s232 + $0x17d8] sm:$0xff]
        %v1832 = vld [vmem:[%s232 + $0x17e0] sm:$0xff]
        %v1833 = vld [vmem:[%s232 + $0x17e8] sm:$0xff]
        %v1834 = vld [vmem:[%s232 + $0x17f0] sm:$0xff]
        %v1835 = vld [vmem:[%s232 + $0x17f8] sm:$0xff]
        %v1836 = vsub.f32 %v300, %v1068
        %v1837 = vsub.f32 %v301, %v1069
        %v1838 = vsub.f32 %v302, %v1070
        %v1839 = vsub.f32 %v303, %v1071
        %v1840 = vsub.f32 %v304, %v1072
        %v1841 = vsub.f32 %v305, %v1073
        %v1842 = vsub.f32 %v306, %v1074
        %v1843 = vsub.f32 %v307, %v1075
        %v1844 = vsub.f32 %v308, %v1076
        %v1845 = vsub.f32 %v309, %v1077
        %v1846 = vsub.f32 %v310, %v1078
        %v1847 = vsub.f32 %v311, %v1079
        %v1848 = vsub.f32 %v312, %v1080
        %v1849 = vsub.f32 %v313, %v1081
        %v1850 = vsub.f32 %v314, %v1082
        %v1851 = vsub.f32 %v315, %v1083
        %v1852 = vsub.f32 %v316, %v1084
        %v1853 = vsub.f32 %v317, %v1085
        %v1854 = vsub.f32 %v318, %v1086
        %v1855 = vsub.f32 %v319, %v1087
        %v1856 = vsub.f32 %v320, %v1088
        %v1857 = vsub.f32 %v321, %v1089
        %v1858 = vsub.f32 %v322, %v1090
        %v1859 = vsub.f32 %v323, %v1091
        %v1860 = vsub.f32 %v324, %v1092
        %v1861 = vsub.f32 %v325, %v1093
        %v1862 = vsub.f32 %v326, %v1094
        %v1863 = vsub.f32 %v327, %v1095
        %v1864 = vsub.f32 %v328, %v1096
        %v1865 = vsub.f32 %v329, %v1097
        %v1866 = vsub.f32 %v330, %v1098
        %v1867 = vsub.f32 %v331, %v1099
        %v1868 = vsub.f32 %v332, %v1100
        %v1869 = vsub.f32 %v333, %v1101
        %v1870 = vsub.f32 %v334, %v1102
        %v1871 = vsub.f32 %v335, %v1103
        %v1872 = vsub.f32 %v336, %v1104
        %v1873 = vsub.f32 %v337, %v1105
        %v1874 = vsub.f32 %v338, %v1106
        %v1875 = vsub.f32 %v339, %v1107
        %v1876 = vsub.f32 %v340, %v1108
        %v1877 = vsub.f32 %v341, %v1109
        %v1878 = vsub.f32 %v342, %v1110
        %v1879 = vsub.f32 %v343, %v1111
        %v1880 = vsub.f32 %v344, %v1112
        %v1881 = vsub.f32 %v345, %v1113
        %v1882 = vsub.f32 %v346, %v1114
        %v1883 = vsub.f32 %v347, %v1115
        %v1884 = vsub.f32 %v348, %v1116
        %v1885 = vsub.f32 %v349, %v1117
        %v1886 = vsub.f32 %v350, %v1118
        %v1887 = vsub.f32 %v351, %v1119
        %v1888 = vsub.f32 %v352, %v1120
        %v1889 = vsub.f32 %v353, %v1121
        %v1890 = vsub.f32 %v354, %v1122
        %v1891 = vsub.f32 %v355, %v1123
        %v1892 = vsub.f32 %v356, %v1124
        %v1893 = vsub.f32 %v357, %v1125
        %v1894 = vsub.f32 %v358, %v1126
        %v1895 = vsub.f32 %v359, %v1127
        %v1896 = vsub.f32 %v360, %v1128
        %v1897 = vsub.f32 %v361, %v1129
        %v1898 = vsub.f32 %v362, %v1130
        %v1899 = vsub.f32 %v363, %v1131
        %v1900 = vsub.f32 %v364, %v1132
        %v1901 = vsub.f32 %v365, %v1133
        %v1902 = vsub.f32 %v366, %v1134
        %v1903 = vsub.f32 %v367, %v1135
        %v1904 = vsub.f32 %v368, %v1136
        %v1905 = vsub.f32 %v369, %v1137
        %v1906 = vsub.f32 %v370, %v1138
        %v1907 = vsub.f32 %v371, %v1139
        %v1908 = vsub.f32 %v372, %v1140
        %v1909 = vsub.f32 %v373, %v1141
        %v1910 = vsub.f32 %v374, %v1142
        %v1911 = vsub.f32 %v375, %v1143
        %v1912 = vsub.f32 %v376, %v1144
        %v1913 = vsub.f32 %v377, %v1145
        %v1914 = vsub.f32 %v378, %v1146
        %v1915 = vsub.f32 %v379, %v1147
        %v1916 = vsub.f32 %v380, %v1148
        %v1917 = vsub.f32 %v381, %v1149
        %v1918 = vsub.f32 %v382, %v1150
        %v1919 = vsub.f32 %v383, %v1151
        %v1920 = vsub.f32 %v384, %v1152
        %v1921 = vsub.f32 %v385, %v1153
        %v1922 = vsub.f32 %v386, %v1154
        %v1923 = vsub.f32 %v387, %v1155
        %v1924 = vsub.f32 %v388, %v1156
        %v1925 = vsub.f32 %v389, %v1157
        %v1926 = vsub.f32 %v390, %v1158
        %v1927 = vsub.f32 %v391, %v1159
        %v1928 = vsub.f32 %v392, %v1160
        %v1929 = vsub.f32 %v393, %v1161
        %v1930 = vsub.f32 %v394, %v1162
        %v1931 = vsub.f32 %v395, %v1163
        %v1932 = vsub.f32 %v396, %v1164
        %v1933 = vsub.f32 %v397, %v1165
        %v1934 = vsub.f32 %v398, %v1166
        %v1935 = vsub.f32 %v399, %v1167
        %v1936 = vsub.f32 %v400, %v1168
        %v1937 = vsub.f32 %v401, %v1169
        %v1938 = vsub.f32 %v402, %v1170
        %v1939 = vsub.f32 %v403, %v1171
        %v1940 = vsub.f32 %v404, %v1172
        %v1941 = vsub.f32 %v405, %v1173
        %v1942 = vsub.f32 %v406, %v1174
        %v1943 = vsub.f32 %v407, %v1175
        %v1944 = vsub.f32 %v408, %v1176
        %v1945 = vsub.f32 %v409, %v1177
        %v1946 = vsub.f32 %v410, %v1178
        %v1947 = vsub.f32 %v411, %v1179
        %v1948 = vsub.f32 %v412, %v1180
        %v1949 = vsub.f32 %v413, %v1181
        %v1950 = vsub.f32 %v414, %v1182
        %v1951 = vsub.f32 %v415, %v1183
        %v1952 = vsub.f32 %v416, %v1184
        %v1953 = vsub.f32 %v417, %v1185
        %v1954 = vsub.f32 %v418, %v1186
        %v1955 = vsub.f32 %v419, %v1187
        %v1956 = vsub.f32 %v420, %v1188
        %v1957 = vsub.f32 %v421, %v1189
        %v1958 = vsub.f32 %v422, %v1190
        %v1959 = vsub.f32 %v423, %v1191
        %v1960 = vsub.f32 %v424, %v1192
        %v1961 = vsub.f32 %v425, %v1193
        %v1962 = vsub.f32 %v426, %v1194
        %v1963 = vsub.f32 %v427, %v1195
        %v1964 = vsub.f32 %v428, %v1196
        %v1965 = vsub.f32 %v429, %v1197
        %v1966 = vsub.f32 %v430, %v1198
        %v1967 = vsub.f32 %v431, %v1199
        %v1968 = vsub.f32 %v432, %v1200
        %v1969 = vsub.f32 %v433, %v1201
        %v1970 = vsub.f32 %v434, %v1202
        %v1971 = vsub.f32 %v435, %v1203
        %v1972 = vsub.f32 %v436, %v1204
        %v1973 = vsub.f32 %v437, %v1205
        %v1974 = vsub.f32 %v438, %v1206
        %v1975 = vsub.f32 %v439, %v1207
        %v1976 = vsub.f32 %v440, %v1208
        %v1977 = vsub.f32 %v441, %v1209
        %v1978 = vsub.f32 %v442, %v1210
        %v1979 = vsub.f32 %v443, %v1211
        %v1980 = vsub.f32 %v444, %v1212
        %v1981 = vsub.f32 %v445, %v1213
        %v1982 = vsub.f32 %v446, %v1214
        %v1983 = vsub.f32 %v447, %v1215
        %v1984 = vsub.f32 %v448, %v1216
        %v1985 = vsub.f32 %v449, %v1217
        %v1986 = vsub.f32 %v450, %v1218
        %v1987 = vsub.f32 %v451, %v1219
        %v1988 = vsub.f32 %v452, %v1220
        %v1989 = vsub.f32 %v453, %v1221
        %v1990 = vsub.f32 %v454, %v1222
        %v1991 = vsub.f32 %v455, %v1223
        %v1992 = vsub.f32 %v456, %v1224
        %v1993 = vsub.f32 %v457, %v1225
        %v1994 = vsub.f32 %v458, %v1226
        %v1995 = vsub.f32 %v459, %v1227
        %v1996 = vsub.f32 %v460, %v1228
        %v1997 = vsub.f32 %v461, %v1229
        %v1998 = vsub.f32 %v462, %v1230
        %v1999 = vsub.f32 %v463, %v1231
        %v2000 = vsub.f32 %v464, %v1232
        %v2001 = vsub.f32 %v465, %v1233
        %v2002 = vsub.f32 %v466, %v1234
        %v2003 = vsub.f32 %v467, %v1235
        %v2004 = vsub.f32 %v468, %v1236
        %v2005 = vsub.f32 %v469, %v1237
        %v2006 = vsub.f32 %v470, %v1238
        %v2007 = vsub.f32 %v471, %v1239
        %v2008 = vsub.f32 %v472, %v1240
        %v2009 = vsub.f32 %v473, %v1241
        %v2010 = vsub.f32 %v474, %v1242
        %v2011 = vsub.f32 %v475, %v1243
        %v2012 = vsub.f32 %v476, %v1244
        %v2013 = vsub.f32 %v477, %v1245
        %v2014 = vsub.f32 %v478, %v1246
        %v2015 = vsub.f32 %v479, %v1247
        %v2016 = vsub.f32 %v480, %v1248
        %v2017 = vsub.f32 %v481, %v1249
        %v2018 = vsub.f32 %v482, %v1250
        %v2019 = vsub.f32 %v483, %v1251
        %v2020 = vsub.f32 %v484, %v1252
        %v2021 = vsub.f32 %v485, %v1253
        %v2022 = vsub.f32 %v486, %v1254
        %v2023 = vsub.f32 %v487, %v1255
        %v2024 = vsub.f32 %v488, %v1256
        %v2025 = vsub.f32 %v489, %v1257
        %v2026 = vsub.f32 %v490, %v1258
        %v2027 = vsub.f32 %v491, %v1259
        %v2028 = vsub.f32 %v492, %v1260
        %v2029 = vsub.f32 %v493, %v1261
        %v2030 = vsub.f32 %v494, %v1262
        %v2031 = vsub.f32 %v495, %v1263
        %v2032 = vsub.f32 %v496, %v1264
        %v2033 = vsub.f32 %v497, %v1265
        %v2034 = vsub.f32 %v498, %v1266
        %v2035 = vsub.f32 %v499, %v1267
        %v2036 = vsub.f32 %v500, %v1268
        %v2037 = vsub.f32 %v501, %v1269
        %v2038 = vsub.f32 %v502, %v1270
        %v2039 = vsub.f32 %v503, %v1271
        %v2040 = vsub.f32 %v504, %v1272
        %v2041 = vsub.f32 %v505, %v1273
        %v2042 = vsub.f32 %v506, %v1274
        %v2043 = vsub.f32 %v507, %v1275
        %v2044 = vsub.f32 %v508, %v1276
        %v2045 = vsub.f32 %v509, %v1277
        %v2046 = vsub.f32 %v510, %v1278
        %v2047 = vsub.f32 %v511, %v1279
        %v2048 = vsub.f32 %v512, %v1280
        %v2049 = vsub.f32 %v513, %v1281
        %v2050 = vsub.f32 %v514, %v1282
        %v2051 = vsub.f32 %v515, %v1283
        %v2052 = vsub.f32 %v516, %v1284
        %v2053 = vsub.f32 %v517, %v1285
        %v2054 = vsub.f32 %v518, %v1286
        %v2055 = vsub.f32 %v519, %v1287
        %v2056 = vsub.f32 %v520, %v1288
        %v2057 = vsub.f32 %v521, %v1289
        %v2058 = vsub.f32 %v522, %v1290
        %v2059 = vsub.f32 %v523, %v1291
        %v2060 = vsub.f32 %v524, %v1292
        %v2061 = vsub.f32 %v525, %v1293
        %v2062 = vsub.f32 %v526, %v1294
        %v2063 = vsub.f32 %v527, %v1295
        %v2064 = vsub.f32 %v528, %v1296
        %v2065 = vsub.f32 %v529, %v1297
        %v2066 = vsub.f32 %v530, %v1298
        %v2067 = vsub.f32 %v531, %v1299
        %v2068 = vsub.f32 %v532, %v1300
        %v2069 = vsub.f32 %v533, %v1301
        %v2070 = vsub.f32 %v534, %v1302
        %v2071 = vsub.f32 %v535, %v1303
        %v2072 = vsub.f32 %v536, %v1304
        %v2073 = vsub.f32 %v537, %v1305
        %v2074 = vsub.f32 %v538, %v1306
        %v2075 = vsub.f32 %v539, %v1307
        %v2076 = vsub.f32 %v540, %v1308
        %v2077 = vsub.f32 %v541, %v1309
        %v2078 = vsub.f32 %v542, %v1310
        %v2079 = vsub.f32 %v543, %v1311
        %v2080 = vsub.f32 %v544, %v1312
        %v2081 = vsub.f32 %v545, %v1313
        %v2082 = vsub.f32 %v546, %v1314
        %v2083 = vsub.f32 %v547, %v1315
        %v2084 = vsub.f32 %v548, %v1316
        %v2085 = vsub.f32 %v549, %v1317
        %v2086 = vsub.f32 %v550, %v1318
        %v2087 = vsub.f32 %v551, %v1319
        %v2088 = vsub.f32 %v552, %v1320
        %v2089 = vsub.f32 %v553, %v1321
        %v2090 = vsub.f32 %v554, %v1322
        %v2091 = vsub.f32 %v555, %v1323
        %v2092 = vsub.f32 %v556, %v1324
        %v2093 = vsub.f32 %v557, %v1325
        %v2094 = vsub.f32 %v558, %v1326
        %v2095 = vsub.f32 %v559, %v1327
        %v2096 = vsub.f32 %v560, %v1328
        %v2097 = vsub.f32 %v561, %v1329
        %v2098 = vsub.f32 %v562, %v1330
        %v2099 = vsub.f32 %v563, %v1331
        %v2100 = vsub.f32 %v564, %v1332
        %v2101 = vsub.f32 %v565, %v1333
        %v2102 = vsub.f32 %v566, %v1334
        %v2103 = vsub.f32 %v567, %v1335
        %v2104 = vsub.f32 %v568, %v1336
        %v2105 = vsub.f32 %v569, %v1337
        %v2106 = vsub.f32 %v570, %v1338
        %v2107 = vsub.f32 %v571, %v1339
        %v2108 = vsub.f32 %v572, %v1340
        %v2109 = vsub.f32 %v573, %v1341
        %v2110 = vsub.f32 %v574, %v1342
        %v2111 = vsub.f32 %v575, %v1343
        %v2112 = vsub.f32 %v576, %v1344
        %v2113 = vsub.f32 %v577, %v1345
        %v2114 = vsub.f32 %v578, %v1346
        %v2115 = vsub.f32 %v579, %v1347
        %v2116 = vsub.f32 %v580, %v1348
        %v2117 = vsub.f32 %v581, %v1349
        %v2118 = vsub.f32 %v582, %v1350
        %v2119 = vsub.f32 %v583, %v1351
        %v2120 = vsub.f32 %v584, %v1352
        %v2121 = vsub.f32 %v585, %v1353
        %v2122 = vsub.f32 %v586, %v1354
        %v2123 = vsub.f32 %v587, %v1355
        %v2124 = vsub.f32 %v588, %v1356
        %v2125 = vsub.f32 %v589, %v1357
        %v2126 = vsub.f32 %v590, %v1358
        %v2127 = vsub.f32 %v591, %v1359
        %v2128 = vsub.f32 %v592, %v1360
        %v2129 = vsub.f32 %v593, %v1361
        %v2130 = vsub.f32 %v594, %v1362
        %v2131 = vsub.f32 %v595, %v1363
        %v2132 = vsub.f32 %v596, %v1364
        %v2133 = vsub.f32 %v597, %v1365
        %v2134 = vsub.f32 %v598, %v1366
        %v2135 = vsub.f32 %v599, %v1367
        %v2136 = vsub.f32 %v600, %v1368
        %v2137 = vsub.f32 %v601, %v1369
        %v2138 = vsub.f32 %v602, %v1370
        %v2139 = vsub.f32 %v603, %v1371
        %v2140 = vsub.f32 %v604, %v1372
        %v2141 = vsub.f32 %v605, %v1373
        %v2142 = vsub.f32 %v606, %v1374
        %v2143 = vsub.f32 %v607, %v1375
        %v2144 = vsub.f32 %v608, %v1376
        %v2145 = vsub.f32 %v609, %v1377
        %v2146 = vsub.f32 %v610, %v1378
        %v2147 = vsub.f32 %v611, %v1379
        %v2148 = vsub.f32 %v612, %v1380
        %v2149 = vsub.f32 %v613, %v1381
        %v2150 = vsub.f32 %v614, %v1382
        %v2151 = vsub.f32 %v615, %v1383
        %v2152 = vsub.f32 %v616, %v1384
        %v2153 = vsub.f32 %v617, %v1385
        %v2154 = vsub.f32 %v618, %v1386
        %v2155 = vsub.f32 %v619, %v1387
        %v2156 = vsub.f32 %v620, %v1388
        %v2157 = vsub.f32 %v621, %v1389
        %v2158 = vsub.f32 %v622, %v1390
        %v2159 = vsub.f32 %v623, %v1391
        %v2160 = vsub.f32 %v624, %v1392
        %v2161 = vsub.f32 %v625, %v1393
        %v2162 = vsub.f32 %v626, %v1394
        %v2163 = vsub.f32 %v627, %v1395
        %v2164 = vsub.f32 %v628, %v1396
        %v2165 = vsub.f32 %v629, %v1397
        %v2166 = vsub.f32 %v630, %v1398
        %v2167 = vsub.f32 %v631, %v1399
        %v2168 = vsub.f32 %v632, %v1400
        %v2169 = vsub.f32 %v633, %v1401
        %v2170 = vsub.f32 %v634, %v1402
        %v2171 = vsub.f32 %v635, %v1403
        %v2172 = vsub.f32 %v636, %v1404
        %v2173 = vsub.f32 %v637, %v1405
        %v2174 = vsub.f32 %v638, %v1406
        %v2175 = vsub.f32 %v639, %v1407
        %v2176 = vsub.f32 %v640, %v1408
        %v2177 = vsub.f32 %v641, %v1409
        %v2178 = vsub.f32 %v642, %v1410
        %v2179 = vsub.f32 %v643, %v1411
        %v2180 = vsub.f32 %v644, %v1412
        %v2181 = vsub.f32 %v645, %v1413
        %v2182 = vsub.f32 %v646, %v1414
        %v2183 = vsub.f32 %v647, %v1415
        %v2184 = vsub.f32 %v648, %v1416
        %v2185 = vsub.f32 %v649, %v1417
        %v2186 = vsub.f32 %v650, %v1418
        %v2187 = vsub.f32 %v651, %v1419
        %v2188 = vsub.f32 %v652, %v1420
        %v2189 = vsub.f32 %v653, %v1421
        %v2190 = vsub.f32 %v654, %v1422
        %v2191 = vsub.f32 %v655, %v1423
        %v2192 = vsub.f32 %v656, %v1424
        %v2193 = vsub.f32 %v657, %v1425
        %v2194 = vsub.f32 %v658, %v1426
        %v2195 = vsub.f32 %v659, %v1427
        %v2196 = vsub.f32 %v660, %v1428
        %v2197 = vsub.f32 %v661, %v1429
        %v2198 = vsub.f32 %v662, %v1430
        %v2199 = vsub.f32 %v663, %v1431
        %v2200 = vsub.f32 %v664, %v1432
        %v2201 = vsub.f32 %v665, %v1433
        %v2202 = vsub.f32 %v666, %v1434
        %v2203 = vsub.f32 %v667, %v1435
        %v2204 = vsub.f32 %v668, %v1436
        %v2205 = vsub.f32 %v669, %v1437
        %v2206 = vsub.f32 %v670, %v1438
        %v2207 = vsub.f32 %v671, %v1439
        %v2208 = vsub.f32 %v672, %v1440
        %v2209 = vsub.f32 %v673, %v1441
        %v2210 = vsub.f32 %v674, %v1442
        %v2211 = vsub.f32 %v675, %v1443
        %v2212 = vsub.f32 %v676, %v1444
        %v2213 = vsub.f32 %v677, %v1445
        %v2214 = vsub.f32 %v678, %v1446
        %v2215 = vsub.f32 %v679, %v1447
        %v2216 = vsub.f32 %v680, %v1448
        %v2217 = vsub.f32 %v681, %v1449
        %v2218 = vsub.f32 %v682, %v1450
        %v2219 = vsub.f32 %v683, %v1451
        %v2220 = vsub.f32 %v684, %v1452
        %v2221 = vsub.f32 %v685, %v1453
        %v2222 = vsub.f32 %v686, %v1454
        %v2223 = vsub.f32 %v687, %v1455
        %v2224 = vsub.f32 %v688, %v1456
        %v2225 = vsub.f32 %v689, %v1457
        %v2226 = vsub.f32 %v690, %v1458
        %v2227 = vsub.f32 %v691, %v1459
        %v2228 = vsub.f32 %v692, %v1460
        %v2229 = vsub.f32 %v693, %v1461
        %v2230 = vsub.f32 %v694, %v1462
        %v2231 = vsub.f32 %v695, %v1463
        %v2232 = vsub.f32 %v696, %v1464
        %v2233 = vsub.f32 %v697, %v1465
        %v2234 = vsub.f32 %v698, %v1466
        %v2235 = vsub.f32 %v699, %v1467
        %v2236 = vsub.f32 %v700, %v1468
        %v2237 = vsub.f32 %v701, %v1469
        %v2238 = vsub.f32 %v702, %v1470
        %v2239 = vsub.f32 %v703, %v1471
        %v2240 = vsub.f32 %v704, %v1472
        %v2241 = vsub.f32 %v705, %v1473
        %v2242 = vsub.f32 %v706, %v1474
        %v2243 = vsub.f32 %v707, %v1475
        %v2244 = vsub.f32 %v708, %v1476
        %v2245 = vsub.f32 %v709, %v1477
        %v2246 = vsub.f32 %v710, %v1478
        %v2247 = vsub.f32 %v711, %v1479
        %v2248 = vsub.f32 %v712, %v1480
        %v2249 = vsub.f32 %v713, %v1481
        %v2250 = vsub.f32 %v714, %v1482
        %v2251 = vsub.f32 %v715, %v1483
        %v2252 = vsub.f32 %v716, %v1484
        %v2253 = vsub.f32 %v717, %v1485
        %v2254 = vsub.f32 %v718, %v1486
        %v2255 = vsub.f32 %v719, %v1487
        %v2256 = vsub.f32 %v720, %v1488
        %v2257 = vsub.f32 %v721, %v1489
        %v2258 = vsub.f32 %v722, %v1490
        %v2259 = vsub.f32 %v723, %v1491
        %v2260 = vsub.f32 %v724, %v1492
        %v2261 = vsub.f32 %v725, %v1493
        %v2262 = vsub.f32 %v726, %v1494
        %v2263 = vsub.f32 %v727, %v1495
        %v2264 = vsub.f32 %v728, %v1496
        %v2265 = vsub.f32 %v729, %v1497
        %v2266 = vsub.f32 %v730, %v1498
        %v2267 = vsub.f32 %v731, %v1499
        %v2268 = vsub.f32 %v732, %v1500
        %v2269 = vsub.f32 %v733, %v1501
        %v2270 = vsub.f32 %v734, %v1502
        %v2271 = vsub.f32 %v735, %v1503
        %v2272 = vsub.f32 %v736, %v1504
        %v2273 = vsub.f32 %v737, %v1505
        %v2274 = vsub.f32 %v738, %v1506
        %v2275 = vsub.f32 %v739, %v1507
        %v2276 = vsub.f32 %v740, %v1508
        %v2277 = vsub.f32 %v741, %v1509
        %v2278 = vsub.f32 %v742, %v1510
        %v2279 = vsub.f32 %v743, %v1511
        %v2280 = vsub.f32 %v744, %v1512
        %v2281 = vsub.f32 %v745, %v1513
        %v2282 = vsub.f32 %v746, %v1514
        %v2283 = vsub.f32 %v747, %v1515
        %v2284 = vsub.f32 %v748, %v1516
        %v2285 = vsub.f32 %v749, %v1517
        %v2286 = vsub.f32 %v750, %v1518
        %v2287 = vsub.f32 %v751, %v1519
        %v2288 = vsub.f32 %v752, %v1520
        %v2289 = vsub.f32 %v753, %v1521
        %v2290 = vsub.f32 %v754, %v1522
        %v2291 = vsub.f32 %v755, %v1523
        %v2292 = vsub.f32 %v756, %v1524
        %v2293 = vsub.f32 %v757, %v1525
        %v2294 = vsub.f32 %v758, %v1526
        %v2295 = vsub.f32 %v759, %v1527
        %v2296 = vsub.f32 %v760, %v1528
        %v2297 = vsub.f32 %v761, %v1529
        %v2298 = vsub.f32 %v762, %v1530
        %v2299 = vsub.f32 %v763, %v1531
        %v2300 = vsub.f32 %v764, %v1532
        %v2301 = vsub.f32 %v765, %v1533
        %v2302 = vsub.f32 %v766, %v1534
        %v2303 = vsub.f32 %v767, %v1535
        %v2304 = vsub.f32 %v768, %v1536
        %v2305 = vsub.f32 %v769, %v1537
        %v2306 = vsub.f32 %v770, %v1538
        %v2307 = vsub.f32 %v771, %v1539
        %v2308 = vsub.f32 %v772, %v1540
        %v2309 = vsub.f32 %v773, %v1541
        %v2310 = vsub.f32 %v774, %v1542
        %v2311 = vsub.f32 %v775, %v1543
        %v2312 = vsub.f32 %v776, %v1544
        %v2313 = vsub.f32 %v777, %v1545
        %v2314 = vsub.f32 %v778, %v1546
        %v2315 = vsub.f32 %v779, %v1547
        %v2316 = vsub.f32 %v780, %v1548
        %v2317 = vsub.f32 %v781, %v1549
        %v2318 = vsub.f32 %v782, %v1550
        %v2319 = vsub.f32 %v783, %v1551
        %v2320 = vsub.f32 %v784, %v1552
        %v2321 = vsub.f32 %v785, %v1553
        %v2322 = vsub.f32 %v786, %v1554
        %v2323 = vsub.f32 %v787, %v1555
        %v2324 = vsub.f32 %v788, %v1556
        %v2325 = vsub.f32 %v789, %v1557
        %v2326 = vsub.f32 %v790, %v1558
        %v2327 = vsub.f32 %v791, %v1559
        %v2328 = vsub.f32 %v792, %v1560
        %v2329 = vsub.f32 %v793, %v1561
        %v2330 = vsub.f32 %v794, %v1562
        %v2331 = vsub.f32 %v795, %v1563
        %v2332 = vsub.f32 %v796, %v1564
        %v2333 = vsub.f32 %v797, %v1565
        %v2334 = vsub.f32 %v798, %v1566
        %v2335 = vsub.f32 %v799, %v1567
        %v2336 = vsub.f32 %v800, %v1568
        %v2337 = vsub.f32 %v801, %v1569
        %v2338 = vsub.f32 %v802, %v1570
        %v2339 = vsub.f32 %v803, %v1571
        %v2340 = vsub.f32 %v804, %v1572
        %v2341 = vsub.f32 %v805, %v1573
        %v2342 = vsub.f32 %v806, %v1574
        %v2343 = vsub.f32 %v807, %v1575
        %v2344 = vsub.f32 %v808, %v1576
        %v2345 = vsub.f32 %v809, %v1577
        %v2346 = vsub.f32 %v810, %v1578
        %v2347 = vsub.f32 %v811, %v1579
        %v2348 = vsub.f32 %v812, %v1580
        %v2349 = vsub.f32 %v813, %v1581
        %v2350 = vsub.f32 %v814, %v1582
        %v2351 = vsub.f32 %v815, %v1583
        %v2352 = vsub.f32 %v816, %v1584
        %v2353 = vsub.f32 %v817, %v1585
        %v2354 = vsub.f32 %v818, %v1586
        %v2355 = vsub.f32 %v819, %v1587
        %v2356 = vsub.f32 %v820, %v1588
        %v2357 = vsub.f32 %v821, %v1589
        %v2358 = vsub.f32 %v822, %v1590
        %v2359 = vsub.f32 %v823, %v1591
        %v2360 = vsub.f32 %v824, %v1592
        %v2361 = vsub.f32 %v825, %v1593
        %v2362 = vsub.f32 %v826, %v1594
        %v2363 = vsub.f32 %v827, %v1595
        %v2364 = vsub.f32 %v828, %v1596
        %v2365 = vsub.f32 %v829, %v1597
        %v2366 = vsub.f32 %v830, %v1598
        %v2367 = vsub.f32 %v831, %v1599
        %v2368 = vsub.f32 %v832, %v1600
        %v2369 = vsub.f32 %v833, %v1601
        %v2370 = vsub.f32 %v834, %v1602
        %v2371 = vsub.f32 %v835, %v1603
        %v2372 = vsub.f32 %v836, %v1604
        %v2373 = vsub.f32 %v837, %v1605
        %v2374 = vsub.f32 %v838, %v1606
        %v2375 = vsub.f32 %v839, %v1607
        %v2376 = vsub.f32 %v840, %v1608
        %v2377 = vsub.f32 %v841, %v1609
        %v2378 = vsub.f32 %v842, %v1610
        %v2379 = vsub.f32 %v843, %v1611
        %v2380 = vsub.f32 %v844, %v1612
        %v2381 = vsub.f32 %v845, %v1613
        %v2382 = vsub.f32 %v846, %v1614
        %v2383 = vsub.f32 %v847, %v1615
        %v2384 = vsub.f32 %v848, %v1616
        %v2385 = vsub.f32 %v849, %v1617
        %v2386 = vsub.f32 %v850, %v1618
        %v2387 = vsub.f32 %v851, %v1619
        %v2388 = vsub.f32 %v852, %v1620
        %v2389 = vsub.f32 %v853, %v1621
        %v2390 = vsub.f32 %v854, %v1622
        %v2391 = vsub.f32 %v855, %v1623
        %v2392 = vsub.f32 %v856, %v1624
        %v2393 = vsub.f32 %v857, %v1625
        %v2394 = vsub.f32 %v858, %v1626
        %v2395 = vsub.f32 %v859, %v1627
        %v2396 = vsub.f32 %v860, %v1628
        %v2397 = vsub.f32 %v861, %v1629
        %v2398 = vsub.f32 %v862, %v1630
        %v2399 = vsub.f32 %v863, %v1631
        %v2400 = vsub.f32 %v864, %v1632
        %v2401 = vsub.f32 %v865, %v1633
        %v2402 = vsub.f32 %v866, %v1634
        %v2403 = vsub.f32 %v867, %v1635
        %v2404 = vsub.f32 %v868, %v1636
        %v2405 = vsub.f32 %v869, %v1637
        %v2406 = vsub.f32 %v870, %v1638
        %v2407 = vsub.f32 %v871, %v1639
        %v2408 = vsub.f32 %v872, %v1640
        %v2409 = vsub.f32 %v873, %v1641
        %v2410 = vsub.f32 %v874, %v1642
        %v2411 = vsub.f32 %v875, %v1643
        %v2412 = vsub.f32 %v876, %v1644
        %v2413 = vsub.f32 %v877, %v1645
        %v2414 = vsub.f32 %v878, %v1646
        %v2415 = vsub.f32 %v879, %v1647
        %v2416 = vsub.f32 %v880, %v1648
        %v2417 = vsub.f32 %v881, %v1649
        %v2418 = vsub.f32 %v882, %v1650
        %v2419 = vsub.f32 %v883, %v1651
        %v2420 = vsub.f32 %v884, %v1652
        %v2421 = vsub.f32 %v885, %v1653
        %v2422 = vsub.f32 %v886, %v1654
        %v2423 = vsub.f32 %v887, %v1655
        %v2424 = vsub.f32 %v888, %v1656
        %v2425 = vsub.f32 %v889, %v1657
        %v2426 = vsub.f32 %v890, %v1658
        %v2427 = vsub.f32 %v891, %v1659
        %v2428 = vsub.f32 %v892, %v1660
        %v2429 = vsub.f32 %v893, %v1661
        %v2430 = vsub.f32 %v894, %v1662
        %v2431 = vsub.f32 %v895, %v1663
        %v2432 = vsub.f32 %v896, %v1664
        %v2433 = vsub.f32 %v897, %v1665
        %v2434 = vsub.f32 %v898, %v1666
        %v2435 = vsub.f32 %v899, %v1667
        %v2436 = vsub.f32 %v900, %v1668
        %v2437 = vsub.f32 %v901, %v1669
        %v2438 = vsub.f32 %v902, %v1670
        %v2439 = vsub.f32 %v903, %v1671
        %v2440 = vsub.f32 %v904, %v1672
        %v2441 = vsub.f32 %v905, %v1673
        %v2442 = vsub.f32 %v906, %v1674
        %v2443 = vsub.f32 %v907, %v1675
        %v2444 = vsub.f32 %v908, %v1676
        %v2445 = vsub.f32 %v909, %v1677
        %v2446 = vsub.f32 %v910, %v1678
        %v2447 = vsub.f32 %v911, %v1679
        %v2448 = vsub.f32 %v912, %v1680
        %v2449 = vsub.f32 %v913, %v1681
        %v2450 = vsub.f32 %v914, %v1682
        %v2451 = vsub.f32 %v915, %v1683
        %v2452 = vsub.f32 %v916, %v1684
        %v2453 = vsub.f32 %v917, %v1685
        %v2454 = vsub.f32 %v918, %v1686
        %v2455 = vsub.f32 %v919, %v1687
        %v2456 = vsub.f32 %v920, %v1688
        %v2457 = vsub.f32 %v921, %v1689
        %v2458 = vsub.f32 %v922, %v1690
        %v2459 = vsub.f32 %v923, %v1691
        %v2460 = vsub.f32 %v924, %v1692
        %v2461 = vsub.f32 %v925, %v1693
        %v2462 = vsub.f32 %v926, %v1694
        %v2463 = vsub.f32 %v927, %v1695
        %v2464 = vsub.f32 %v928, %v1696
        %v2465 = vsub.f32 %v929, %v1697
        %v2466 = vsub.f32 %v930, %v1698
        %v2467 = vsub.f32 %v931, %v1699
        %v2468 = vsub.f32 %v932, %v1700
        %v2469 = vsub.f32 %v933, %v1701
        %v2470 = vsub.f32 %v934, %v1702
        %v2471 = vsub.f32 %v935, %v1703
        %v2472 = vsub.f32 %v936, %v1704
        %v2473 = vsub.f32 %v937, %v1705
        %v2474 = vsub.f32 %v938, %v1706
        %v2475 = vsub.f32 %v939, %v1707
        %v2476 = vsub.f32 %v940, %v1708
        %v2477 = vsub.f32 %v941, %v1709
        %v2478 = vsub.f32 %v942, %v1710
        %v2479 = vsub.f32 %v943, %v1711
        %v2480 = vsub.f32 %v944, %v1712
        %v2481 = vsub.f32 %v945, %v1713
        %v2482 = vsub.f32 %v946, %v1714
        %v2483 = vsub.f32 %v947, %v1715
        %v2484 = vsub.f32 %v948, %v1716
        %v2485 = vsub.f32 %v949, %v1717
        %v2486 = vsub.f32 %v950, %v1718
        %v2487 = vsub.f32 %v951, %v1719
        %v2488 = vsub.f32 %v952, %v1720
        %v2489 = vsub.f32 %v953, %v1721
        %v2490 = vsub.f32 %v954, %v1722
        %v2491 = vsub.f32 %v955, %v1723
        %v2492 = vsub.f32 %v956, %v1724
        %v2493 = vsub.f32 %v957, %v1725
        %v2494 = vsub.f32 %v958, %v1726
        %v2495 = vsub.f32 %v959, %v1727
        %v2496 = vsub.f32 %v960, %v1728
        %v2497 = vsub.f32 %v961, %v1729
        %v2498 = vsub.f32 %v962, %v1730
        %v2499 = vsub.f32 %v963, %v1731
        %v2500 = vsub.f32 %v964, %v1732
        %v2501 = vsub.f32 %v965, %v1733
        %v2502 = vsub.f32 %v966, %v1734
        %v2503 = vsub.f32 %v967, %v1735
        %v2504 = vsub.f32 %v968, %v1736
        %v2505 = vsub.f32 %v969, %v1737
        %v2506 = vsub.f32 %v970, %v1738
        %v2507 = vsub.f32 %v971, %v1739
        %v2508 = vsub.f32 %v972, %v1740
        %v2509 = vsub.f32 %v973, %v1741
        %v2510 = vsub.f32 %v974, %v1742
        %v2511 = vsub.f32 %v975, %v1743
        %v2512 = vsub.f32 %v976, %v1744
        %v2513 = vsub.f32 %v977, %v1745
        %v2514 = vsub.f32 %v978, %v1746
        %v2515 = vsub.f32 %v979, %v1747
        %v2516 = vsub.f32 %v980, %v1748
        %v2517 = vsub.f32 %v981, %v1749
        %v2518 = vsub.f32 %v982, %v1750
        %v2519 = vsub.f32 %v983, %v1751
        %v2520 = vsub.f32 %v984, %v1752
        %v2521 = vsub.f32 %v985, %v1753
        %v2522 = vsub.f32 %v986, %v1754
        %v2523 = vsub.f32 %v987, %v1755
        %v2524 = vsub.f32 %v988, %v1756
        %v2525 = vsub.f32 %v989, %v1757
        %v2526 = vsub.f32 %v990, %v1758
        %v2527 = vsub.f32 %v991, %v1759
        %v2528 = vsub.f32 %v992, %v1760
        %v2529 = vsub.f32 %v993, %v1761
        %v2530 = vsub.f32 %v994, %v1762
        %v2531 = vsub.f32 %v995, %v1763
        %v2532 = vsub.f32 %v996, %v1764
        %v2533 = vsub.f32 %v997, %v1765
        %v2534 = vsub.f32 %v998, %v1766
        %v2535 = vsub.f32 %v999, %v1767
        %v2536 = vsub.f32 %v1000, %v1768
        %v2537 = vsub.f32 %v1001, %v1769
        %v2538 = vsub.f32 %v1002, %v1770
        %v2539 = vsub.f32 %v1003, %v1771
        %v2540 = vsub.f32 %v1004, %v1772
        %v2541 = vsub.f32 %v1005, %v1773
        %v2542 = vsub.f32 %v1006, %v1774
        %v2543 = vsub.f32 %v1007, %v1775
        %v2544 = vsub.f32 %v1008, %v1776
        %v2545 = vsub.f32 %v1009, %v1777
        %v2546 = vsub.f32 %v1010, %v1778
        %v2547 = vsub.f32 %v1011, %v1779
        %v2548 = vsub.f32 %v1012, %v1780
        %v2549 = vsub.f32 %v1013, %v1781
        %v2550 = vsub.f32 %v1014, %v1782
        %v2551 = vsub.f32 %v1015, %v1783
        %v2552 = vsub.f32 %v1016, %v1784
        %v2553 = vsub.f32 %v1017, %v1785
        %v2554 = vsub.f32 %v1018, %v1786
        %v2555 = vsub.f32 %v1019, %v1787
        %v2556 = vsub.f32 %v1020, %v1788
        %v2557 = vsub.f32 %v1021, %v1789
        %v2558 = vsub.f32 %v1022, %v1790
        %v2559 = vsub.f32 %v1023, %v1791
        %v2560 = vsub.f32 %v1024, %v1792
        %v2561 = vsub.f32 %v1025, %v1793
        %v2562 = vsub.f32 %v1026, %v1794
        %v2563 = vsub.f32 %v1027, %v1795
        %v2564 = vsub.f32 %v1028, %v1796
        %v2565 = vsub.f32 %v1029, %v1797
        %v2566 = vsub.f32 %v1030, %v1798
        %v2567 = vsub.f32 %v1031, %v1799
        %v2568 = vsub.f32 %v1032, %v1800
        %v2569 = vsub.f32 %v1033, %v1801
        %v2570 = vsub.f32 %v1034, %v1802
        %v2571 = vsub.f32 %v1035, %v1803
        %v2572 = vsub.f32 %v1036, %v1804
        %v2573 = vsub.f32 %v1037, %v1805
        %v2574 = vsub.f32 %v1038, %v1806
        %v2575 = vsub.f32 %v1039, %v1807
        %v2576 = vsub.f32 %v1040, %v1808
        %v2577 = vsub.f32 %v1041, %v1809
        %v2578 = vsub.f32 %v1042, %v1810
        %v2579 = vsub.f32 %v1043, %v1811
        %v2580 = vsub.f32 %v1044, %v1812
        %v2581 = vsub.f32 %v1045, %v1813
        %v2582 = vsub.f32 %v1046, %v1814
        %v2583 = vsub.f32 %v1047, %v1815
        %v2584 = vsub.f32 %v1048, %v1816
        %v2585 = vsub.f32 %v1049, %v1817
        %v2586 = vsub.f32 %v1050, %v1818
        %v2587 = vsub.f32 %v1051, %v1819
        %v2588 = vsub.f32 %v1052, %v1820
        %v2589 = vsub.f32 %v1053, %v1821
        %v2590 = vsub.f32 %v1054, %v1822
        %v2591 = vsub.f32 %v1055, %v1823
        %v2592 = vsub.f32 %v1056, %v1824
        %v2593 = vsub.f32 %v1057, %v1825
        %v2594 = vsub.f32 %v1058, %v1826
        %v2595 = vsub.f32 %v1059, %v1827
        %v2596 = vsub.f32 %v1060, %v1828
        %v2597 = vsub.f32 %v1061, %v1829
        %v2598 = vsub.f32 %v1062, %v1830
        %v2599 = vsub.f32 %v1063, %v1831
        %v2600 = vsub.f32 %v1064, %v1832
        %v2601 = vsub.f32 %v1065, %v1833
        %v2602 = vsub.f32 %v1066, %v1834
        %v2603 = vsub.f32 %v1067, %v1835
        %v2604 = vld [vmem:[#allocation2] sm:$0xff]
        %v2605 = vld [vmem:[#allocation2 + $0x8] sm:$0xff]
        %v2606 = vld [vmem:[#allocation2 + $0x10] sm:$0xff]
        %v2607 = vld [vmem:[#allocation2 + $0x18] sm:$0xff]
        %v2608 = vand.u32 2147483647, %v1836
        %v2609 = vand.u32 2147483647, %v1837
        %v2610 = vand.u32 2147483647, %v1838
        %v2611 = vand.u32 2147483647, %v1839
        %v2612 = vand.u32 2147483647, %v1840
        %v2613 = vand.u32 2147483647, %v1841
        %v2614 = vand.u32 2147483647, %v1842
        %v2615 = vand.u32 2147483647, %v1843
        %v2616 = vand.u32 2147483647, %v1844
        %v2617 = vand.u32 2147483647, %v1845
        %v2618 = vand.u32 2147483647, %v1846
        %v2619 = vand.u32 2147483647, %v1847
        %v2620 = vand.u32 2147483647, %v1848
        %v2621 = vand.u32 2147483647, %v1849
        %v2622 = vand.u32 2147483647, %v1850
        %v2623 = vand.u32 2147483647, %v1851
        %v2624 = vand.u32 2147483647, %v1852
        %v2625 = vand.u32 2147483647, %v1853
        %v2626 = vand.u32 2147483647, %v1854
        %v2627 = vand.u32 2147483647, %v1855
        %v2628 = vand.u32 2147483647, %v1856
        %v2629 = vand.u32 2147483647, %v1857
        %v2630 = vand.u32 2147483647, %v1858
        %v2631 = vand.u32 2147483647, %v1859
        %v2632 = vand.u32 2147483647, %v1860
        %v2633 = vand.u32 2147483647, %v1861
        %v2634 = vand.u32 2147483647, %v1862
        %v2635 = vand.u32 2147483647, %v1863
        %v2636 = vand.u32 2147483647, %v1864
        %v2637 = vand.u32 2147483647, %v1865
        %v2638 = vand.u32 2147483647, %v1866
        %v2639 = vand.u32 2147483647, %v1867
        %v2640 = vand.u32 2147483647, %v1868
        %v2641 = vand.u32 2147483647, %v1869
        %v2642 = vand.u32 2147483647, %v1870
        %v2643 = vand.u32 2147483647, %v1871
        %v2644 = vand.u32 2147483647, %v1872
        %v2645 = vand.u32 2147483647, %v1873
        %v2646 = vand.u32 2147483647, %v1874
        %v2647 = vand.u32 2147483647, %v1875
        %v2648 = vand.u32 2147483647, %v1876
        %v2649 = vand.u32 2147483647, %v1877
        %v2650 = vand.u32 2147483647, %v1878
        %v2651 = vand.u32 2147483647, %v1879
        %v2652 = vand.u32 2147483647, %v1880
        %v2653 = vand.u32 2147483647, %v1881
        %v2654 = vand.u32 2147483647, %v1882
        %v2655 = vand.u32 2147483647, %v1883
        %v2656 = vand.u32 2147483647, %v1884
        %v2657 = vand.u32 2147483647, %v1885
        %v2658 = vand.u32 2147483647, %v1886
        %v2659 = vand.u32 2147483647, %v1887
        %v2660 = vand.u32 2147483647, %v1888
        %v2661 = vand.u32 2147483647, %v1889
        %v2662 = vand.u32 2147483647, %v1890
        %v2663 = vand.u32 2147483647, %v1891
        %v2664 = vand.u32 2147483647, %v1892
        %v2665 = vand.u32 2147483647, %v1893
        %v2666 = vand.u32 2147483647, %v1894
        %v2667 = vand.u32 2147483647, %v1895
        %v2668 = vand.u32 2147483647, %v1896
        %v2669 = vand.u32 2147483647, %v1897
        %v2670 = vand.u32 2147483647, %v1898
        %v2671 = vand.u32 2147483647, %v1899
        %v2672 = vand.u32 2147483647, %v1900
        %v2673 = vand.u32 2147483647, %v1901
        %v2674 = vand.u32 2147483647, %v1902
        %v2675 = vand.u32 2147483647, %v1903
        %v2676 = vand.u32 2147483647, %v1904
        %v2677 = vand.u32 2147483647, %v1905
        %v2678 = vand.u32 2147483647, %v1906
        %v2679 = vand.u32 2147483647, %v1907
        %v2680 = vand.u32 2147483647, %v1908
        %v2681 = vand.u32 2147483647, %v1909
        %v2682 = vand.u32 2147483647, %v1910
        %v2683 = vand.u32 2147483647, %v1911
        %v2684 = vand.u32 2147483647, %v1912
        %v2685 = vand.u32 2147483647, %v1913
        %v2686 = vand.u32 2147483647, %v1914
        %v2687 = vand.u32 2147483647, %v1915
        %v2688 = vand.u32 2147483647, %v1916
        %v2689 = vand.u32 2147483647, %v1917
        %v2690 = vand.u32 2147483647, %v1918
        %v2691 = vand.u32 2147483647, %v1919
        %v2692 = vand.u32 2147483647, %v1920
        %v2693 = vand.u32 2147483647, %v1921
        %v2694 = vand.u32 2147483647, %v1922
        %v2695 = vand.u32 2147483647, %v1923
        %v2696 = vand.u32 2147483647, %v1924
        %v2697 = vand.u32 2147483647, %v1925
        %v2698 = vand.u32 2147483647, %v1926
        %v2699 = vand.u32 2147483647, %v1927
        %v2700 = vand.u32 2147483647, %v1928
        %v2701 = vand.u32 2147483647, %v1929
        %v2702 = vand.u32 2147483647, %v1930
        %v2703 = vand.u32 2147483647, %v1931
        %v2704 = vand.u32 2147483647, %v1932
        %v2705 = vand.u32 2147483647, %v1933
        %v2706 = vand.u32 2147483647, %v1934
        %v2707 = vand.u32 2147483647, %v1935
        %v2708 = vand.u32 2147483647, %v1936
        %v2709 = vand.u32 2147483647, %v1937
        %v2710 = vand.u32 2147483647, %v1938
        %v2711 = vand.u32 2147483647, %v1939
        %v2712 = vand.u32 2147483647, %v1940
        %v2713 = vand.u32 2147483647, %v1941
        %v2714 = vand.u32 2147483647, %v1942
        %v2715 = vand.u32 2147483647, %v1943
        %v2716 = vand.u32 2147483647, %v1944
        %v2717 = vand.u32 2147483647, %v1945
        %v2718 = vand.u32 2147483647, %v1946
        %v2719 = vand.u32 2147483647, %v1947
        %v2720 = vand.u32 2147483647, %v1948
        %v2721 = vand.u32 2147483647, %v1949
        %v2722 = vand.u32 2147483647, %v1950
        %v2723 = vand.u32 2147483647, %v1951
        %v2724 = vand.u32 2147483647, %v1952
        %v2725 = vand.u32 2147483647, %v1953
        %v2726 = vand.u32 2147483647, %v1954
        %v2727 = vand.u32 2147483647, %v1955
        %v2728 = vand.u32 2147483647, %v1956
        %v2729 = vand.u32 2147483647, %v1957
        %v2730 = vand.u32 2147483647, %v1958
        %v2731 = vand.u32 2147483647, %v1959
        %v2732 = vand.u32 2147483647, %v1960
        %v2733 = vand.u32 2147483647, %v1961
        %v2734 = vand.u32 2147483647, %v1962
        %v2735 = vand.u32 2147483647, %v1963
        %v2736 = vand.u32 2147483647, %v1964
        %v2737 = vand.u32 2147483647, %v1965
        %v2738 = vand.u32 2147483647, %v1966
        %v2739 = vand.u32 2147483647, %v1967
        %v2740 = vand.u32 2147483647, %v1968
        %v2741 = vand.u32 2147483647, %v1969
        %v2742 = vand.u32 2147483647, %v1970
        %v2743 = vand.u32 2147483647, %v1971
        %v2744 = vand.u32 2147483647, %v1972
        %v2745 = vand.u32 2147483647, %v1973
        %v2746 = vand.u32 2147483647, %v1974
        %v2747 = vand.u32 2147483647, %v1975
        %v2748 = vand.u32 2147483647, %v1976
        %v2749 = vand.u32 2147483647, %v1977
        %v2750 = vand.u32 2147483647, %v1978
        %v2751 = vand.u32 2147483647, %v1979
        %v2752 = vand.u32 2147483647, %v1980
        %v2753 = vand.u32 2147483647, %v1981
        %v2754 = vand.u32 2147483647, %v1982
        %v2755 = vand.u32 2147483647, %v1983
        %v2756 = vand.u32 2147483647, %v1984
        %v2757 = vand.u32 2147483647, %v1985
        %v2758 = vand.u32 2147483647, %v1986
        %v2759 = vand.u32 2147483647, %v1987
        %v2760 = vand.u32 2147483647, %v1988
        %v2761 = vand.u32 2147483647, %v1989
        %v2762 = vand.u32 2147483647, %v1990
        %v2763 = vand.u32 2147483647, %v1991
        %v2764 = vand.u32 2147483647, %v1992
        %v2765 = vand.u32 2147483647, %v1993
        %v2766 = vand.u32 2147483647, %v1994
        %v2767 = vand.u32 2147483647, %v1995
        %v2768 = vand.u32 2147483647, %v1996
        %v2769 = vand.u32 2147483647, %v1997
        %v2770 = vand.u32 2147483647, %v1998
        %v2771 = vand.u32 2147483647, %v1999
        %v2772 = vand.u32 2147483647, %v2000
        %v2773 = vand.u32 2147483647, %v2001
        %v2774 = vand.u32 2147483647, %v2002
        %v2775 = vand.u32 2147483647, %v2003
        %v2776 = vand.u32 2147483647, %v2004
        %v2777 = vand.u32 2147483647, %v2005
        %v2778 = vand.u32 2147483647, %v2006
        %v2779 = vand.u32 2147483647, %v2007
        %v2780 = vand.u32 2147483647, %v2008
        %v2781 = vand.u32 2147483647, %v2009
        %v2782 = vand.u32 2147483647, %v2010
        %v2783 = vand.u32 2147483647, %v2011
        %v2784 = vand.u32 2147483647, %v2012
        %v2785 = vand.u32 2147483647, %v2013
        %v2786 = vand.u32 2147483647, %v2014
        %v2787 = vand.u32 2147483647, %v2015
        %v2788 = vand.u32 2147483647, %v2016
        %v2789 = vand.u32 2147483647, %v2017
        %v2790 = vand.u32 2147483647, %v2018
        %v2791 = vand.u32 2147483647, %v2019
        %v2792 = vand.u32 2147483647, %v2020
        %v2793 = vand.u32 2147483647, %v2021
        %v2794 = vand.u32 2147483647, %v2022
        %v2795 = vand.u32 2147483647, %v2023
        %v2796 = vand.u32 2147483647, %v2024
        %v2797 = vand.u32 2147483647, %v2025
        %v2798 = vand.u32 2147483647, %v2026
        %v2799 = vand.u32 2147483647, %v2027
        %v2800 = vand.u32 2147483647, %v2028
        %v2801 = vand.u32 2147483647, %v2029
        %v2802 = vand.u32 2147483647, %v2030
        %v2803 = vand.u32 2147483647, %v2031
        %v2804 = vand.u32 2147483647, %v2032
        %v2805 = vand.u32 2147483647, %v2033
        %v2806 = vand.u32 2147483647, %v2034
        %v2807 = vand.u32 2147483647, %v2035
        %v2808 = vand.u32 2147483647, %v2036
        %v2809 = vand.u32 2147483647, %v2037
        %v2810 = vand.u32 2147483647, %v2038
        %v2811 = vand.u32 2147483647, %v2039
        %v2812 = vand.u32 2147483647, %v2040
        %v2813 = vand.u32 2147483647, %v2041
        %v2814 = vand.u32 2147483647, %v2042
        %v2815 = vand.u32 2147483647, %v2043
        %v2816 = vand.u32 2147483647, %v2044
        %v2817 = vand.u32 2147483647, %v2045
        %v2818 = vand.u32 2147483647, %v2046
        %v2819 = vand.u32 2147483647, %v2047
        %v2820 = vand.u32 2147483647, %v2048
        %v2821 = vand.u32 2147483647, %v2049
        %v2822 = vand.u32 2147483647, %v2050
        %v2823 = vand.u32 2147483647, %v2051
        %v2824 = vand.u32 2147483647, %v2052
        %v2825 = vand.u32 2147483647, %v2053
        %v2826 = vand.u32 2147483647, %v2054
        %v2827 = vand.u32 2147483647, %v2055
        %v2828 = vand.u32 2147483647, %v2056
        %v2829 = vand.u32 2147483647, %v2057
        %v2830 = vand.u32 2147483647, %v2058
        %v2831 = vand.u32 2147483647, %v2059
        %v2832 = vand.u32 2147483647, %v2060
        %v2833 = vand.u32 2147483647, %v2061
        %v2834 = vand.u32 2147483647, %v2062
        %v2835 = vand.u32 2147483647, %v2063
        %v2836 = vand.u32 2147483647, %v2064
        %v2837 = vand.u32 2147483647, %v2065
        %v2838 = vand.u32 2147483647, %v2066
        %v2839 = vand.u32 2147483647, %v2067
        %v2840 = vand.u32 2147483647, %v2068
        %v2841 = vand.u32 2147483647, %v2069
        %v2842 = vand.u32 2147483647, %v2070
        %v2843 = vand.u32 2147483647, %v2071
        %v2844 = vand.u32 2147483647, %v2072
        %v2845 = vand.u32 2147483647, %v2073
        %v2846 = vand.u32 2147483647, %v2074
        %v2847 = vand.u32 2147483647, %v2075
        %v2848 = vand.u32 2147483647, %v2076
        %v2849 = vand.u32 2147483647, %v2077
        %v2850 = vand.u32 2147483647, %v2078
        %v2851 = vand.u32 2147483647, %v2079
        %v2852 = vand.u32 2147483647, %v2080
        %v2853 = vand.u32 2147483647, %v2081
        %v2854 = vand.u32 2147483647, %v2082
        %v2855 = vand.u32 2147483647, %v2083
        %v2856 = vand.u32 2147483647, %v2084
        %v2857 = vand.u32 2147483647, %v2085
        %v2858 = vand.u32 2147483647, %v2086
        %v2859 = vand.u32 2147483647, %v2087
        %v2860 = vand.u32 2147483647, %v2088
        %v2861 = vand.u32 2147483647, %v2089
        %v2862 = vand.u32 2147483647, %v2090
        %v2863 = vand.u32 2147483647, %v2091
        %v2864 = vand.u32 2147483647, %v2092
        %v2865 = vand.u32 2147483647, %v2093
        %v2866 = vand.u32 2147483647, %v2094
        %v2867 = vand.u32 2147483647, %v2095
        %v2868 = vand.u32 2147483647, %v2096
        %v2869 = vand.u32 2147483647, %v2097
        %v2870 = vand.u32 2147483647, %v2098
        %v2871 = vand.u32 2147483647, %v2099
        %v2872 = vand.u32 2147483647, %v2100
        %v2873 = vand.u32 2147483647, %v2101
        %v2874 = vand.u32 2147483647, %v2102
        %v2875 = vand.u32 2147483647, %v2103
        %v2876 = vand.u32 2147483647, %v2104
        %v2877 = vand.u32 2147483647, %v2105
        %v2878 = vand.u32 2147483647, %v2106
        %v2879 = vand.u32 2147483647, %v2107
        %v2880 = vand.u32 2147483647, %v2108
        %v2881 = vand.u32 2147483647, %v2109
        %v2882 = vand.u32 2147483647, %v2110
        %v2883 = vand.u32 2147483647, %v2111
        %v2884 = vand.u32 2147483647, %v2112
        %v2885 = vand.u32 2147483647, %v2113
        %v2886 = vand.u32 2147483647, %v2114
        %v2887 = vand.u32 2147483647, %v2115
        %v2888 = vand.u32 2147483647, %v2116
        %v2889 = vand.u32 2147483647, %v2117
        %v2890 = vand.u32 2147483647, %v2118
        %v2891 = vand.u32 2147483647, %v2119
        %v2892 = vand.u32 2147483647, %v2120
        %v2893 = vand.u32 2147483647, %v2121
        %v2894 = vand.u32 2147483647, %v2122
        %v2895 = vand.u32 2147483647, %v2123
        %v2896 = vand.u32 2147483647, %v2124
        %v2897 = vand.u32 2147483647, %v2125
        %v2898 = vand.u32 2147483647, %v2126
        %v2899 = vand.u32 2147483647, %v2127
        %v2900 = vand.u32 2147483647, %v2128
        %v2901 = vand.u32 2147483647, %v2129
        %v2902 = vand.u32 2147483647, %v2130
        %v2903 = vand.u32 2147483647, %v2131
        %v2904 = vand.u32 2147483647, %v2132
        %v2905 = vand.u32 2147483647, %v2133
        %v2906 = vand.u32 2147483647, %v2134
        %v2907 = vand.u32 2147483647, %v2135
        %v2908 = vand.u32 2147483647, %v2136
        %v2909 = vand.u32 2147483647, %v2137
        %v2910 = vand.u32 2147483647, %v2138
        %v2911 = vand.u32 2147483647, %v2139
        %v2912 = vand.u32 2147483647, %v2140
        %v2913 = vand.u32 2147483647, %v2141
        %v2914 = vand.u32 2147483647, %v2142
        %v2915 = vand.u32 2147483647, %v2143
        %v2916 = vand.u32 2147483647, %v2144
        %v2917 = vand.u32 2147483647, %v2145
        %v2918 = vand.u32 2147483647, %v2146
        %v2919 = vand.u32 2147483647, %v2147
        %v2920 = vand.u32 2147483647, %v2148
        %v2921 = vand.u32 2147483647, %v2149
        %v2922 = vand.u32 2147483647, %v2150
        %v2923 = vand.u32 2147483647, %v2151
        %v2924 = vand.u32 2147483647, %v2152
        %v2925 = vand.u32 2147483647, %v2153
        %v2926 = vand.u32 2147483647, %v2154
        %v2927 = vand.u32 2147483647, %v2155
        %v2928 = vand.u32 2147483647, %v2156
        %v2929 = vand.u32 2147483647, %v2157
        %v2930 = vand.u32 2147483647, %v2158
        %v2931 = vand.u32 2147483647, %v2159
        %v2932 = vand.u32 2147483647, %v2160
        %v2933 = vand.u32 2147483647, %v2161
        %v2934 = vand.u32 2147483647, %v2162
        %v2935 = vand.u32 2147483647, %v2163
        %v2936 = vand.u32 2147483647, %v2164
        %v2937 = vand.u32 2147483647, %v2165
        %v2938 = vand.u32 2147483647, %v2166
        %v2939 = vand.u32 2147483647, %v2167
        %v2940 = vand.u32 2147483647, %v2168
        %v2941 = vand.u32 2147483647, %v2169
        %v2942 = vand.u32 2147483647, %v2170
        %v2943 = vand.u32 2147483647, %v2171
        %v2944 = vand.u32 2147483647, %v2172
        %v2945 = vand.u32 2147483647, %v2173
        %v2946 = vand.u32 2147483647, %v2174
        %v2947 = vand.u32 2147483647, %v2175
        %v2948 = vand.u32 2147483647, %v2176
        %v2949 = vand.u32 2147483647, %v2177
        %v2950 = vand.u32 2147483647, %v2178
        %v2951 = vand.u32 2147483647, %v2179
        %v2952 = vand.u32 2147483647, %v2180
        %v2953 = vand.u32 2147483647, %v2181
        %v2954 = vand.u32 2147483647, %v2182
        %v2955 = vand.u32 2147483647, %v2183
        %v2956 = vand.u32 2147483647, %v2184
        %v2957 = vand.u32 2147483647, %v2185
        %v2958 = vand.u32 2147483647, %v2186
        %v2959 = vand.u32 2147483647, %v2187
        %v2960 = vand.u32 2147483647, %v2188
        %v2961 = vand.u32 2147483647, %v2189
        %v2962 = vand.u32 2147483647, %v2190
        %v2963 = vand.u32 2147483647, %v2191
        %v2964 = vand.u32 2147483647, %v2192
        %v2965 = vand.u32 2147483647, %v2193
        %v2966 = vand.u32 2147483647, %v2194
        %v2967 = vand.u32 2147483647, %v2195
        %v2968 = vand.u32 2147483647, %v2196
        %v2969 = vand.u32 2147483647, %v2197
        %v2970 = vand.u32 2147483647, %v2198
        %v2971 = vand.u32 2147483647, %v2199
        %v2972 = vand.u32 2147483647, %v2200
        %v2973 = vand.u32 2147483647, %v2201
        %v2974 = vand.u32 2147483647, %v2202
        %v2975 = vand.u32 2147483647, %v2203
        %v2976 = vand.u32 2147483647, %v2204
        %v2977 = vand.u32 2147483647, %v2205
        %v2978 = vand.u32 2147483647, %v2206
        %v2979 = vand.u32 2147483647, %v2207
        %v2980 = vand.u32 2147483647, %v2208
        %v2981 = vand.u32 2147483647, %v2209
        %v2982 = vand.u32 2147483647, %v2210
        %v2983 = vand.u32 2147483647, %v2211
        %v2984 = vand.u32 2147483647, %v2212
        %v2985 = vand.u32 2147483647, %v2213
        %v2986 = vand.u32 2147483647, %v2214
        %v2987 = vand.u32 2147483647, %v2215
        %v2988 = vand.u32 2147483647, %v2216
        %v2989 = vand.u32 2147483647, %v2217
        %v2990 = vand.u32 2147483647, %v2218
        %v2991 = vand.u32 2147483647, %v2219
        %v2992 = vand.u32 2147483647, %v2220
        %v2993 = vand.u32 2147483647, %v2221
        %v2994 = vand.u32 2147483647, %v2222
        %v2995 = vand.u32 2147483647, %v2223
        %v2996 = vand.u32 2147483647, %v2224
        %v2997 = vand.u32 2147483647, %v2225
        %v2998 = vand.u32 2147483647, %v2226
        %v2999 = vand.u32 2147483647, %v2227
        %v3000 = vand.u32 2147483647, %v2228
        %v3001 = vand.u32 2147483647, %v2229
        %v3002 = vand.u32 2147483647, %v2230
        %v3003 = vand.u32 2147483647, %v2231
        %v3004 = vand.u32 2147483647, %v2232
        %v3005 = vand.u32 2147483647, %v2233
        %v3006 = vand.u32 2147483647, %v2234
        %v3007 = vand.u32 2147483647, %v2235
        %v3008 = vand.u32 2147483647, %v2236
        %v3009 = vand.u32 2147483647, %v2237
        %v3010 = vand.u32 2147483647, %v2238
        %v3011 = vand.u32 2147483647, %v2239
        %v3012 = vand.u32 2147483647, %v2240
        %v3013 = vand.u32 2147483647, %v2241
        %v3014 = vand.u32 2147483647, %v2242
        %v3015 = vand.u32 2147483647, %v2243
        %v3016 = vand.u32 2147483647, %v2244
        %v3017 = vand.u32 2147483647, %v2245
        %v3018 = vand.u32 2147483647, %v2246
        %v3019 = vand.u32 2147483647, %v2247
        %v3020 = vand.u32 2147483647, %v2248
        %v3021 = vand.u32 2147483647, %v2249
        %v3022 = vand.u32 2147483647, %v2250
        %v3023 = vand.u32 2147483647, %v2251
        %v3024 = vand.u32 2147483647, %v2252
        %v3025 = vand.u32 2147483647, %v2253
        %v3026 = vand.u32 2147483647, %v2254
        %v3027 = vand.u32 2147483647, %v2255
        %v3028 = vand.u32 2147483647, %v2256
        %v3029 = vand.u32 2147483647, %v2257
        %v3030 = vand.u32 2147483647, %v2258
        %v3031 = vand.u32 2147483647, %v2259
        %v3032 = vand.u32 2147483647, %v2260
        %v3033 = vand.u32 2147483647, %v2261
        %v3034 = vand.u32 2147483647, %v2262
        %v3035 = vand.u32 2147483647, %v2263
        %v3036 = vand.u32 2147483647, %v2264
        %v3037 = vand.u32 2147483647, %v2265
        %v3038 = vand.u32 2147483647, %v2266
        %v3039 = vand.u32 2147483647, %v2267
        %v3040 = vand.u32 2147483647, %v2268
        %v3041 = vand.u32 2147483647, %v2269
        %v3042 = vand.u32 2147483647, %v2270
        %v3043 = vand.u32 2147483647, %v2271
        %v3044 = vand.u32 2147483647, %v2272
        %v3045 = vand.u32 2147483647, %v2273
        %v3046 = vand.u32 2147483647, %v2274
        %v3047 = vand.u32 2147483647, %v2275
        %v3048 = vand.u32 2147483647, %v2276
        %v3049 = vand.u32 2147483647, %v2277
        %v3050 = vand.u32 2147483647, %v2278
        %v3051 = vand.u32 2147483647, %v2279
        %v3052 = vand.u32 2147483647, %v2280
        %v3053 = vand.u32 2147483647, %v2281
        %v3054 = vand.u32 2147483647, %v2282
        %v3055 = vand.u32 2147483647, %v2283
        %v3056 = vand.u32 2147483647, %v2284
        %v3057 = vand.u32 2147483647, %v2285
        %v3058 = vand.u32 2147483647, %v2286
        %v3059 = vand.u32 2147483647, %v2287
        %v3060 = vand.u32 2147483647, %v2288
        %v3061 = vand.u32 2147483647, %v2289
        %v3062 = vand.u32 2147483647, %v2290
        %v3063 = vand.u32 2147483647, %v2291
        %v3064 = vand.u32 2147483647, %v2292
        %v3065 = vand.u32 2147483647, %v2293
        %v3066 = vand.u32 2147483647, %v2294
        %v3067 = vand.u32 2147483647, %v2295
        %v3068 = vand.u32 2147483647, %v2296
        %v3069 = vand.u32 2147483647, %v2297
        %v3070 = vand.u32 2147483647, %v2298
        %v3071 = vand.u32 2147483647, %v2299
        %v3072 = vand.u32 2147483647, %v2300
        %v3073 = vand.u32 2147483647, %v2301
        %v3074 = vand.u32 2147483647, %v2302
        %v3075 = vand.u32 2147483647, %v2303
        %v3076 = vand.u32 2147483647, %v2304
        %v3077 = vand.u32 2147483647, %v2305
        %v3078 = vand.u32 2147483647, %v2306
        %v3079 = vand.u32 2147483647, %v2307
        %v3080 = vand.u32 2147483647, %v2308
        %v3081 = vand.u32 2147483647, %v2309
        %v3082 = vand.u32 2147483647, %v2310
        %v3083 = vand.u32 2147483647, %v2311
        %v3084 = vand.u32 2147483647, %v2312
        %v3085 = vand.u32 2147483647, %v2313
        %v3086 = vand.u32 2147483647, %v2314
        %v3087 = vand.u32 2147483647, %v2315
        %v3088 = vand.u32 2147483647, %v2316
        %v3089 = vand.u32 2147483647, %v2317
        %v3090 = vand.u32 2147483647, %v2318
        %v3091 = vand.u32 2147483647, %v2319
        %v3092 = vand.u32 2147483647, %v2320
        %v3093 = vand.u32 2147483647, %v2321
        %v3094 = vand.u32 2147483647, %v2322
        %v3095 = vand.u32 2147483647, %v2323
        %v3096 = vand.u32 2147483647, %v2324
        %v3097 = vand.u32 2147483647, %v2325
        %v3098 = vand.u32 2147483647, %v2326
        %v3099 = vand.u32 2147483647, %v2327
        %v3100 = vand.u32 2147483647, %v2328
        %v3101 = vand.u32 2147483647, %v2329
        %v3102 = vand.u32 2147483647, %v2330
        %v3103 = vand.u32 2147483647, %v2331
        %v3104 = vand.u32 2147483647, %v2332
        %v3105 = vand.u32 2147483647, %v2333
        %v3106 = vand.u32 2147483647, %v2334
        %v3107 = vand.u32 2147483647, %v2335
        %v3108 = vand.u32 2147483647, %v2336
        %v3109 = vand.u32 2147483647, %v2337
        %v3110 = vand.u32 2147483647, %v2338
        %v3111 = vand.u32 2147483647, %v2339
        %v3112 = vand.u32 2147483647, %v2340
        %v3113 = vand.u32 2147483647, %v2341
        %v3114 = vand.u32 2147483647, %v2342
        %v3115 = vand.u32 2147483647, %v2343
        %v3116 = vand.u32 2147483647, %v2344
        %v3117 = vand.u32 2147483647, %v2345
        %v3118 = vand.u32 2147483647, %v2346
        %v3119 = vand.u32 2147483647, %v2347
        %v3120 = vand.u32 2147483647, %v2348
        %v3121 = vand.u32 2147483647, %v2349
        %v3122 = vand.u32 2147483647, %v2350
        %v3123 = vand.u32 2147483647, %v2351
        %v3124 = vand.u32 2147483647, %v2352
        %v3125 = vand.u32 2147483647, %v2353
        %v3126 = vand.u32 2147483647, %v2354
        %v3127 = vand.u32 2147483647, %v2355
        %v3128 = vand.u32 2147483647, %v2356
        %v3129 = vand.u32 2147483647, %v2357
        %v3130 = vand.u32 2147483647, %v2358
        %v3131 = vand.u32 2147483647, %v2359
        %v3132 = vand.u32 2147483647, %v2360
        %v3133 = vand.u32 2147483647, %v2361
        %v3134 = vand.u32 2147483647, %v2362
        %v3135 = vand.u32 2147483647, %v2363
        %v3136 = vand.u32 2147483647, %v2364
        %v3137 = vand.u32 2147483647, %v2365
        %v3138 = vand.u32 2147483647, %v2366
        %v3139 = vand.u32 2147483647, %v2367
        %v3140 = vand.u32 2147483647, %v2368
        %v3141 = vand.u32 2147483647, %v2369
        %v3142 = vand.u32 2147483647, %v2370
        %v3143 = vand.u32 2147483647, %v2371
        %v3144 = vand.u32 2147483647, %v2372
        %v3145 = vand.u32 2147483647, %v2373
        %v3146 = vand.u32 2147483647, %v2374
        %v3147 = vand.u32 2147483647, %v2375
        %v3148 = vand.u32 2147483647, %v2376
        %v3149 = vand.u32 2147483647, %v2377
        %v3150 = vand.u32 2147483647, %v2378
        %v3151 = vand.u32 2147483647, %v2379
        %v3152 = vand.u32 2147483647, %v2380
        %v3153 = vand.u32 2147483647, %v2381
        %v3154 = vand.u32 2147483647, %v2382
        %v3155 = vand.u32 2147483647, %v2383
        %v3156 = vand.u32 2147483647, %v2384
        %v3157 = vand.u32 2147483647, %v2385
        %v3158 = vand.u32 2147483647, %v2386
        %v3159 = vand.u32 2147483647, %v2387
        %v3160 = vand.u32 2147483647, %v2388
        %v3161 = vand.u32 2147483647, %v2389
        %v3162 = vand.u32 2147483647, %v2390
        %v3163 = vand.u32 2147483647, %v2391
        %v3164 = vand.u32 2147483647, %v2392
        %v3165 = vand.u32 2147483647, %v2393
        %v3166 = vand.u32 2147483647, %v2394
        %v3167 = vand.u32 2147483647, %v2395
        %v3168 = vand.u32 2147483647, %v2396
        %v3169 = vand.u32 2147483647, %v2397
        %v3170 = vand.u32 2147483647, %v2398
        %v3171 = vand.u32 2147483647, %v2399
        %v3172 = vand.u32 2147483647, %v2400
        %v3173 = vand.u32 2147483647, %v2401
        %v3174 = vand.u32 2147483647, %v2402
        %v3175 = vand.u32 2147483647, %v2403
        %v3176 = vand.u32 2147483647, %v2404
        %v3177 = vand.u32 2147483647, %v2405
        %v3178 = vand.u32 2147483647, %v2406
        %v3179 = vand.u32 2147483647, %v2407
        %v3180 = vand.u32 2147483647, %v2408
        %v3181 = vand.u32 2147483647, %v2409
        %v3182 = vand.u32 2147483647, %v2410
        %v3183 = vand.u32 2147483647, %v2411
        %v3184 = vand.u32 2147483647, %v2412
        %v3185 = vand.u32 2147483647, %v2413
        %v3186 = vand.u32 2147483647, %v2414
        %v3187 = vand.u32 2147483647, %v2415
        %v3188 = vand.u32 2147483647, %v2416
        %v3189 = vand.u32 2147483647, %v2417
        %v3190 = vand.u32 2147483647, %v2418
        %v3191 = vand.u32 2147483647, %v2419
        %v3192 = vand.u32 2147483647, %v2420
        %v3193 = vand.u32 2147483647, %v2421
        %v3194 = vand.u32 2147483647, %v2422
        %v3195 = vand.u32 2147483647, %v2423
        %v3196 = vand.u32 2147483647, %v2424
        %v3197 = vand.u32 2147483647, %v2425
        %v3198 = vand.u32 2147483647, %v2426
        %v3199 = vand.u32 2147483647, %v2427
        %v3200 = vand.u32 2147483647, %v2428
        %v3201 = vand.u32 2147483647, %v2429
        %v3202 = vand.u32 2147483647, %v2430
        %v3203 = vand.u32 2147483647, %v2431
        %v3204 = vand.u32 2147483647, %v2432
        %v3205 = vand.u32 2147483647, %v2433
        %v3206 = vand.u32 2147483647, %v2434
        %v3207 = vand.u32 2147483647, %v2435
        %v3208 = vand.u32 2147483647, %v2436
        %v3209 = vand.u32 2147483647, %v2437
        %v3210 = vand.u32 2147483647, %v2438
        %v3211 = vand.u32 2147483647, %v2439
        %v3212 = vand.u32 2147483647, %v2440
        %v3213 = vand.u32 2147483647, %v2441
        %v3214 = vand.u32 2147483647, %v2442
        %v3215 = vand.u32 2147483647, %v2443
        %v3216 = vand.u32 2147483647, %v2444
        %v3217 = vand.u32 2147483647, %v2445
        %v3218 = vand.u32 2147483647, %v2446
        %v3219 = vand.u32 2147483647, %v2447
        %v3220 = vand.u32 2147483647, %v2448
        %v3221 = vand.u32 2147483647, %v2449
        %v3222 = vand.u32 2147483647, %v2450
        %v3223 = vand.u32 2147483647, %v2451
        %v3224 = vand.u32 2147483647, %v2452
        %v3225 = vand.u32 2147483647, %v2453
        %v3226 = vand.u32 2147483647, %v2454
        %v3227 = vand.u32 2147483647, %v2455
        %v3228 = vand.u32 2147483647, %v2456
        %v3229 = vand.u32 2147483647, %v2457
        %v3230 = vand.u32 2147483647, %v2458
        %v3231 = vand.u32 2147483647, %v2459
        %v3232 = vand.u32 2147483647, %v2460
        %v3233 = vand.u32 2147483647, %v2461
        %v3234 = vand.u32 2147483647, %v2462
        %v3235 = vand.u32 2147483647, %v2463
        %v3236 = vand.u32 2147483647, %v2464
        %v3237 = vand.u32 2147483647, %v2465
        %v3238 = vand.u32 2147483647, %v2466
        %v3239 = vand.u32 2147483647, %v2467
        %v3240 = vand.u32 2147483647, %v2468
        %v3241 = vand.u32 2147483647, %v2469
        %v3242 = vand.u32 2147483647, %v2470
        %v3243 = vand.u32 2147483647, %v2471
        %v3244 = vand.u32 2147483647, %v2472
        %v3245 = vand.u32 2147483647, %v2473
        %v3246 = vand.u32 2147483647, %v2474
        %v3247 = vand.u32 2147483647, %v2475
        %v3248 = vand.u32 2147483647, %v2476
        %v3249 = vand.u32 2147483647, %v2477
        %v3250 = vand.u32 2147483647, %v2478
        %v3251 = vand.u32 2147483647, %v2479
        %v3252 = vand.u32 2147483647, %v2480
        %v3253 = vand.u32 2147483647, %v2481
        %v3254 = vand.u32 2147483647, %v2482
        %v3255 = vand.u32 2147483647, %v2483
        %v3256 = vand.u32 2147483647, %v2484
        %v3257 = vand.u32 2147483647, %v2485
        %v3258 = vand.u32 2147483647, %v2486
        %v3259 = vand.u32 2147483647, %v2487
        %v3260 = vand.u32 2147483647, %v2488
        %v3261 = vand.u32 2147483647, %v2489
        %v3262 = vand.u32 2147483647, %v2490
        %v3263 = vand.u32 2147483647, %v2491
        %v3264 = vand.u32 2147483647, %v2492
        %v3265 = vand.u32 2147483647, %v2493
        %v3266 = vand.u32 2147483647, %v2494
        %v3267 = vand.u32 2147483647, %v2495
        %v3268 = vand.u32 2147483647, %v2496
        %v3269 = vand.u32 2147483647, %v2497
        %v3270 = vand.u32 2147483647, %v2498
        %v3271 = vand.u32 2147483647, %v2499
        %v3272 = vand.u32 2147483647, %v2500
        %v3273 = vand.u32 2147483647, %v2501
        %v3274 = vand.u32 2147483647, %v2502
        %v3275 = vand.u32 2147483647, %v2503
        %v3276 = vand.u32 2147483647, %v2504
        %v3277 = vand.u32 2147483647, %v2505
        %v3278 = vand.u32 2147483647, %v2506
        %v3279 = vand.u32 2147483647, %v2507
        %v3280 = vand.u32 2147483647, %v2508
        %v3281 = vand.u32 2147483647, %v2509
        %v3282 = vand.u32 2147483647, %v2510
        %v3283 = vand.u32 2147483647, %v2511
        %v3284 = vand.u32 2147483647, %v2512
        %v3285 = vand.u32 2147483647, %v2513
        %v3286 = vand.u32 2147483647, %v2514
        %v3287 = vand.u32 2147483647, %v2515
        %v3288 = vand.u32 2147483647, %v2516
        %v3289 = vand.u32 2147483647, %v2517
        %v3290 = vand.u32 2147483647, %v2518
        %v3291 = vand.u32 2147483647, %v2519
        %v3292 = vand.u32 2147483647, %v2520
        %v3293 = vand.u32 2147483647, %v2521
        %v3294 = vand.u32 2147483647, %v2522
        %v3295 = vand.u32 2147483647, %v2523
        %v3296 = vand.u32 2147483647, %v2524
        %v3297 = vand.u32 2147483647, %v2525
        %v3298 = vand.u32 2147483647, %v2526
        %v3299 = vand.u32 2147483647, %v2527
        %v3300 = vand.u32 2147483647, %v2528
        %v3301 = vand.u32 2147483647, %v2529
        %v3302 = vand.u32 2147483647, %v2530
        %v3303 = vand.u32 2147483647, %v2531
        %v3304 = vand.u32 2147483647, %v2532
        %v3305 = vand.u32 2147483647, %v2533
        %v3306 = vand.u32 2147483647, %v2534
        %v3307 = vand.u32 2147483647, %v2535
        %v3308 = vand.u32 2147483647, %v2536
        %v3309 = vand.u32 2147483647, %v2537
        %v3310 = vand.u32 2147483647, %v2538
        %v3311 = vand.u32 2147483647, %v2539
        %v3312 = vand.u32 2147483647, %v2540
        %v3313 = vand.u32 2147483647, %v2541
        %v3314 = vand.u32 2147483647, %v2542
        %v3315 = vand.u32 2147483647, %v2543
        %v3316 = vand.u32 2147483647, %v2544
        %v3317 = vand.u32 2147483647, %v2545
        %v3318 = vand.u32 2147483647, %v2546
        %v3319 = vand.u32 2147483647, %v2547
        %v3320 = vand.u32 2147483647, %v2548
        %v3321 = vand.u32 2147483647, %v2549
        %v3322 = vand.u32 2147483647, %v2550
        %v3323 = vand.u32 2147483647, %v2551
        %v3324 = vand.u32 2147483647, %v2552
        %v3325 = vand.u32 2147483647, %v2553
        %v3326 = vand.u32 2147483647, %v2554
        %v3327 = vand.u32 2147483647, %v2555
        %v3328 = vand.u32 2147483647, %v2556
        %v3329 = vand.u32 2147483647, %v2557
        %v3330 = vand.u32 2147483647, %v2558
        %v3331 = vand.u32 2147483647, %v2559
        %v3332 = vand.u32 2147483647, %v2560
        %v3333 = vand.u32 2147483647, %v2561
        %v3334 = vand.u32 2147483647, %v2562
        %v3335 = vand.u32 2147483647, %v2563
        %v3336 = vand.u32 2147483647, %v2564
        %v3337 = vand.u32 2147483647, %v2565
        %v3338 = vand.u32 2147483647, %v2566
        %v3339 = vand.u32 2147483647, %v2567
        %v3340 = vand.u32 2147483647, %v2568
        %v3341 = vand.u32 2147483647, %v2569
        %v3342 = vand.u32 2147483647, %v2570
        %v3343 = vand.u32 2147483647, %v2571
        %v3344 = vand.u32 2147483647, %v2572
        %v3345 = vand.u32 2147483647, %v2573
        %v3346 = vand.u32 2147483647, %v2574
        %v3347 = vand.u32 2147483647, %v2575
        %v3348 = vand.u32 2147483647, %v2576
        %v3349 = vand.u32 2147483647, %v2577
        %v3350 = vand.u32 2147483647, %v2578
        %v3351 = vand.u32 2147483647, %v2579
        %v3352 = vand.u32 2147483647, %v2580
        %v3353 = vand.u32 2147483647, %v2581
        %v3354 = vand.u32 2147483647, %v2582
        %v3355 = vand.u32 2147483647, %v2583
        %v3356 = vand.u32 2147483647, %v2584
        %v3357 = vand.u32 2147483647, %v2585
        %v3358 = vand.u32 2147483647, %v2586
        %v3359 = vand.u32 2147483647, %v2587
        %v3360 = vand.u32 2147483647, %v2588
        %v3361 = vand.u32 2147483647, %v2589
        %v3362 = vand.u32 2147483647, %v2590
        %v3363 = vand.u32 2147483647, %v2591
        %v3364 = vand.u32 2147483647, %v2592
        %v3365 = vand.u32 2147483647, %v2593
        %v3366 = vand.u32 2147483647, %v2594
        %v3367 = vand.u32 2147483647, %v2595
        %v3368 = vand.u32 2147483647, %v2596
        %v3369 = vand.u32 2147483647, %v2597
        %v3370 = vand.u32 2147483647, %v2598
        %v3371 = vand.u32 2147483647, %v2599
        %v3372 = vand.u32 2147483647, %v2600
        %v3373 = vand.u32 2147483647, %v2601
        %v3374 = vand.u32 2147483647, %v2602
        %v3375 = vand.u32 2147483647, %v2603
        %v3376 = vadd.f32 %v2608, %v2612
        %v3377 = vadd.f32 %v3376, %v2616
        %v3378 = vadd.f32 %v3377, %v2620
        %v3379 = vadd.f32 %v3378, %v2624
        %v3380 = vadd.f32 %v3379, %v2628
        %v3381 = vadd.f32 %v3380, %v2632
        %v3382 = vadd.f32 %v3381, %v2636
        %v3383 = vadd.f32 %v3382, %v2640
        %v3384 = vadd.f32 %v3383, %v2644
        %v3385 = vadd.f32 %v3384, %v2648
        %v3386 = vadd.f32 %v3385, %v2652
        %v3387 = vadd.f32 %v3386, %v2656
        %v3388 = vadd.f32 %v3387, %v2660
        %v3389 = vadd.f32 %v3388, %v2664
        %v3390 = vadd.f32 %v3389, %v2668
        %v3391 = vadd.f32 %v3390, %v2672
        %v3392 = vadd.f32 %v3391, %v2676
        %v3393 = vadd.f32 %v3392, %v2680
        %v3394 = vadd.f32 %v3393, %v2684
        %v3395 = vadd.f32 %v3394, %v2688
        %v3396 = vadd.f32 %v3395, %v2692
        %v3397 = vadd.f32 %v3396, %v2696
        %v3398 = vadd.f32 %v3397, %v2700
        %v3399 = vadd.f32 %v3398, %v2704
        %v3400 = vadd.f32 %v3399, %v2708
        %v3401 = vadd.f32 %v3400, %v2712
        %v3402 = vadd.f32 %v3401, %v2716
        %v3403 = vadd.f32 %v3402, %v2720
        %v3404 = vadd.f32 %v3403, %v2724
        %v3405 = vadd.f32 %v3404, %v2728
        %v3406 = vadd.f32 %v3405, %v2732
        %v3407 = vadd.f32 %v3406, %v2736
        %v3408 = vadd.f32 %v3407, %v2740
        %v3409 = vadd.f32 %v3408, %v2744
        %v3410 = vadd.f32 %v3409, %v2748
        %v3411 = vadd.f32 %v3410, %v2752
        %v3412 = vadd.f32 %v3411, %v2756
        %v3413 = vadd.f32 %v3412, %v2760
        %v3414 = vadd.f32 %v3413, %v2764
        %v3415 = vadd.f32 %v3414, %v2768
        %v3416 = vadd.f32 %v3415, %v2772
        %v3417 = vadd.f32 %v3416, %v2776
        %v3418 = vadd.f32 %v3417, %v2780
        %v3419 = vadd.f32 %v3418, %v2784
        %v3420 = vadd.f32 %v3419, %v2788
        %v3421 = vadd.f32 %v3420, %v2792
        %v3422 = vadd.f32 %v3421, %v2796
        %v3423 = vadd.f32 %v3422, %v2800
        %v3424 = vadd.f32 %v3423, %v2804
        %v3425 = vadd.f32 %v3424, %v2808
        %v3426 = vadd.f32 %v3425, %v2812
        %v3427 = vadd.f32 %v3426, %v2816
        %v3428 = vadd.f32 %v3427, %v2820
        %v3429 = vadd.f32 %v3428, %v2824
        %v3430 = vadd.f32 %v3429, %v2828
        %v3431 = vadd.f32 %v3430, %v2832
        %v3432 = vadd.f32 %v3431, %v2836
        %v3433 = vadd.f32 %v3432, %v2840
        %v3434 = vadd.f32 %v3433, %v2844
        %v3435 = vadd.f32 %v3434, %v2848
        %v3436 = vadd.f32 %v3435, %v2852
        %v3437 = vadd.f32 %v3436, %v2856
        %v3438 = vadd.f32 %v3437, %v2860
        %v3439 = vadd.f32 %v3438, %v2864
        %v3440 = vadd.f32 %v3439, %v2868
        %v3441 = vadd.f32 %v3440, %v2872
        %v3442 = vadd.f32 %v3441, %v2876
        %v3443 = vadd.f32 %v3442, %v2880
        %v3444 = vadd.f32 %v3443, %v2884
        %v3445 = vadd.f32 %v3444, %v2888
        %v3446 = vadd.f32 %v3445, %v2892
        %v3447 = vadd.f32 %v3446, %v2896
        %v3448 = vadd.f32 %v3447, %v2900
        %v3449 = vadd.f32 %v3448, %v2904
        %v3450 = vadd.f32 %v3449, %v2908
        %v3451 = vadd.f32 %v3450, %v2912
        %v3452 = vadd.f32 %v3451, %v2916
        %v3453 = vadd.f32 %v3452, %v2920
        %v3454 = vadd.f32 %v3453, %v2924
        %v3455 = vadd.f32 %v3454, %v2928
        %v3456 = vadd.f32 %v3455, %v2932
        %v3457 = vadd.f32 %v3456, %v2936
        %v3458 = vadd.f32 %v3457, %v2940
        %v3459 = vadd.f32 %v3458, %v2944
        %v3460 = vadd.f32 %v3459, %v2948
        %v3461 = vadd.f32 %v3460, %v2952
        %v3462 = vadd.f32 %v3461, %v2956
        %v3463 = vadd.f32 %v3462, %v2960
        %v3464 = vadd.f32 %v3463, %v2964
        %v3465 = vadd.f32 %v3464, %v2968
        %v3466 = vadd.f32 %v3465, %v2972
        %v3467 = vadd.f32 %v3466, %v2976
        %v3468 = vadd.f32 %v3467, %v2980
        %v3469 = vadd.f32 %v3468, %v2984
        %v3470 = vadd.f32 %v3469, %v2988
        %v3471 = vadd.f32 %v3470, %v2992
        %v3472 = vadd.f32 %v3471, %v2996
        %v3473 = vadd.f32 %v3472, %v3000
        %v3474 = vadd.f32 %v3473, %v3004
        %v3475 = vadd.f32 %v3474, %v3008
        %v3476 = vadd.f32 %v3475, %v3012
        %v3477 = vadd.f32 %v3476, %v3016
        %v3478 = vadd.f32 %v3477, %v3020
        %v3479 = vadd.f32 %v3478, %v3024
        %v3480 = vadd.f32 %v3479, %v3028
        %v3481 = vadd.f32 %v3480, %v3032
        %v3482 = vadd.f32 %v3481, %v3036
        %v3483 = vadd.f32 %v3482, %v3040
        %v3484 = vadd.f32 %v3483, %v3044
        %v3485 = vadd.f32 %v3484, %v3048
        %v3486 = vadd.f32 %v3485, %v3052
        %v3487 = vadd.f32 %v3486, %v3056
        %v3488 = vadd.f32 %v3487, %v3060
        %v3489 = vadd.f32 %v3488, %v3064
        %v3490 = vadd.f32 %v3489, %v3068
        %v3491 = vadd.f32 %v3490, %v3072
        %v3492 = vadd.f32 %v3491, %v3076
        %v3493 = vadd.f32 %v3492, %v3080
        %v3494 = vadd.f32 %v3493, %v3084
        %v3495 = vadd.f32 %v3494, %v3088
        %v3496 = vadd.f32 %v3495, %v3092
        %v3497 = vadd.f32 %v3496, %v3096
        %v3498 = vadd.f32 %v3497, %v3100
        %v3499 = vadd.f32 %v3498, %v3104
        %v3500 = vadd.f32 %v3499, %v3108
        %v3501 = vadd.f32 %v3500, %v3112
        %v3502 = vadd.f32 %v3501, %v3116
        %v3503 = vadd.f32 %v3502, %v3120
        %v3504 = vadd.f32 %v3503, %v3124
        %v3505 = vadd.f32 %v3504, %v3128
        %v3506 = vadd.f32 %v3505, %v3132
        %v3507 = vadd.f32 %v3506, %v3136
        %v3508 = vadd.f32 %v3507, %v3140
        %v3509 = vadd.f32 %v3508, %v3144
        %v3510 = vadd.f32 %v3509, %v3148
        %v3511 = vadd.f32 %v3510, %v3152
        %v3512 = vadd.f32 %v3511, %v3156
        %v3513 = vadd.f32 %v3512, %v3160
        %v3514 = vadd.f32 %v3513, %v3164
        %v3515 = vadd.f32 %v3514, %v3168
        %v3516 = vadd.f32 %v3515, %v3172
        %v3517 = vadd.f32 %v3516, %v3176
        %v3518 = vadd.f32 %v3517, %v3180
        %v3519 = vadd.f32 %v3518, %v3184
        %v3520 = vadd.f32 %v3519, %v3188
        %v3521 = vadd.f32 %v3520, %v3192
        %v3522 = vadd.f32 %v3521, %v3196
        %v3523 = vadd.f32 %v3522, %v3200
        %v3524 = vadd.f32 %v3523, %v3204
        %v3525 = vadd.f32 %v3524, %v3208
        %v3526 = vadd.f32 %v3525, %v3212
        %v3527 = vadd.f32 %v3526, %v3216
        %v3528 = vadd.f32 %v3527, %v3220
        %v3529 = vadd.f32 %v3528, %v3224
        %v3530 = vadd.f32 %v3529, %v3228
        %v3531 = vadd.f32 %v3530, %v3232
        %v3532 = vadd.f32 %v3531, %v3236
        %v3533 = vadd.f32 %v3532, %v3240
        %v3534 = vadd.f32 %v3533, %v3244
        %v3535 = vadd.f32 %v3534, %v3248
        %v3536 = vadd.f32 %v3535, %v3252
        %v3537 = vadd.f32 %v3536, %v3256
        %v3538 = vadd.f32 %v3537, %v3260
        %v3539 = vadd.f32 %v3538, %v3264
        %v3540 = vadd.f32 %v3539, %v3268
        %v3541 = vadd.f32 %v3540, %v3272
        %v3542 = vadd.f32 %v3541, %v3276
        %v3543 = vadd.f32 %v3542, %v3280
        %v3544 = vadd.f32 %v3543, %v3284
        %v3545 = vadd.f32 %v3544, %v3288
        %v3546 = vadd.f32 %v3545, %v3292
        %v3547 = vadd.f32 %v3546, %v3296
        %v3548 = vadd.f32 %v3547, %v3300
        %v3549 = vadd.f32 %v3548, %v3304
        %v3550 = vadd.f32 %v3549, %v3308
        %v3551 = vadd.f32 %v3550, %v3312
        %v3552 = vadd.f32 %v3551, %v3316
        %v3553 = vadd.f32 %v3552, %v3320
        %v3554 = vadd.f32 %v3553, %v3324
        %v3555 = vadd.f32 %v3554, %v3328
        %v3556 = vadd.f32 %v3555, %v3332
        %v3557 = vadd.f32 %v3556, %v3336
        %v3558 = vadd.f32 %v3557, %v3340
        %v3559 = vadd.f32 %v3558, %v3344
        %v3560 = vadd.f32 %v3559, %v3348
        %v3561 = vadd.f32 %v3560, %v3352
        %v3562 = vadd.f32 %v3561, %v3356
        %v3563 = vadd.f32 %v3562, %v3360
        %v3564 = vadd.f32 %v3563, %v3364
        %v3565 = vadd.f32 %v3564, %v3368
        %v3566 = vadd.f32 %v3565, %v3372
        %v3567 = vadd.f32 %v2609, %v2613
        %v3568 = vadd.f32 %v3567, %v2617
        %v3569 = vadd.f32 %v3568, %v2621
        %v3570 = vadd.f32 %v3569, %v2625
        %v3571 = vadd.f32 %v3570, %v2629
        %v3572 = vadd.f32 %v3571, %v2633
        %v3573 = vadd.f32 %v3572, %v2637
        %v3574 = vadd.f32 %v3573, %v2641
        %v3575 = vadd.f32 %v3574, %v2645
        %v3576 = vadd.f32 %v3575, %v2649
        %v3577 = vadd.f32 %v3576, %v2653
        %v3578 = vadd.f32 %v3577, %v2657
        %v3579 = vadd.f32 %v3578, %v2661
        %v3580 = vadd.f32 %v3579, %v2665
        %v3581 = vadd.f32 %v3580, %v2669
        %v3582 = vadd.f32 %v3581, %v2673
        %v3583 = vadd.f32 %v3582, %v2677
        %v3584 = vadd.f32 %v3583, %v2681
        %v3585 = vadd.f32 %v3584, %v2685
        %v3586 = vadd.f32 %v3585, %v2689
        %v3587 = vadd.f32 %v3586, %v2693
        %v3588 = vadd.f32 %v3587, %v2697
        %v3589 = vadd.f32 %v3588, %v2701
        %v3590 = vadd.f32 %v3589, %v2705
        %v3591 = vadd.f32 %v3590, %v2709
        %v3592 = vadd.f32 %v3591, %v2713
        %v3593 = vadd.f32 %v3592, %v2717
        %v3594 = vadd.f32 %v3593, %v2721
        %v3595 = vadd.f32 %v3594, %v2725
        %v3596 = vadd.f32 %v3595, %v2729
        %v3597 = vadd.f32 %v3596, %v2733
        %v3598 = vadd.f32 %v3597, %v2737
        %v3599 = vadd.f32 %v3598, %v2741
        %v3600 = vadd.f32 %v3599, %v2745
        %v3601 = vadd.f32 %v3600, %v2749
        %v3602 = vadd.f32 %v3601, %v2753
        %v3603 = vadd.f32 %v3602, %v2757
        %v3604 = vadd.f32 %v3603, %v2761
        %v3605 = vadd.f32 %v3604, %v2765
        %v3606 = vadd.f32 %v3605, %v2769
        %v3607 = vadd.f32 %v3606, %v2773
        %v3608 = vadd.f32 %v3607, %v2777
        %v3609 = vadd.f32 %v3608, %v2781
        %v3610 = vadd.f32 %v3609, %v2785
        %v3611 = vadd.f32 %v3610, %v2789
        %v3612 = vadd.f32 %v3611, %v2793
        %v3613 = vadd.f32 %v3612, %v2797
        %v3614 = vadd.f32 %v3613, %v2801
        %v3615 = vadd.f32 %v3614, %v2805
        %v3616 = vadd.f32 %v3615, %v2809
        %v3617 = vadd.f32 %v3616, %v2813
        %v3618 = vadd.f32 %v3617, %v2817
        %v3619 = vadd.f32 %v3618, %v2821
        %v3620 = vadd.f32 %v3619, %v2825
        %v3621 = vadd.f32 %v3620, %v2829
        %v3622 = vadd.f32 %v3621, %v2833
        %v3623 = vadd.f32 %v3622, %v2837
        %v3624 = vadd.f32 %v3623, %v2841
        %v3625 = vadd.f32 %v3624, %v2845
        %v3626 = vadd.f32 %v3625, %v2849
        %v3627 = vadd.f32 %v3626, %v2853
        %v3628 = vadd.f32 %v3627, %v2857
        %v3629 = vadd.f32 %v3628, %v2861
        %v3630 = vadd.f32 %v3629, %v2865
        %v3631 = vadd.f32 %v3630, %v2869
        %v3632 = vadd.f32 %v3631, %v2873
        %v3633 = vadd.f32 %v3632, %v2877
        %v3634 = vadd.f32 %v3633, %v2881
        %v3635 = vadd.f32 %v3634, %v2885
        %v3636 = vadd.f32 %v3635, %v2889
        %v3637 = vadd.f32 %v3636, %v2893
        %v3638 = vadd.f32 %v3637, %v2897
        %v3639 = vadd.f32 %v3638, %v2901
        %v3640 = vadd.f32 %v3639, %v2905
        %v3641 = vadd.f32 %v3640, %v2909
        %v3642 = vadd.f32 %v3641, %v2913
        %v3643 = vadd.f32 %v3642, %v2917
        %v3644 = vadd.f32 %v3643, %v2921
        %v3645 = vadd.f32 %v3644, %v2925
        %v3646 = vadd.f32 %v3645, %v2929
        %v3647 = vadd.f32 %v3646, %v2933
        %v3648 = vadd.f32 %v3647, %v2937
        %v3649 = vadd.f32 %v3648, %v2941
        %v3650 = vadd.f32 %v3649, %v2945
        %v3651 = vadd.f32 %v3650, %v2949
        %v3652 = vadd.f32 %v3651, %v2953
        %v3653 = vadd.f32 %v3652, %v2957
        %v3654 = vadd.f32 %v3653, %v2961
        %v3655 = vadd.f32 %v3654, %v2965
        %v3656 = vadd.f32 %v3655, %v2969
        %v3657 = vadd.f32 %v3656, %v2973
        %v3658 = vadd.f32 %v3657, %v2977
        %v3659 = vadd.f32 %v3658, %v2981
        %v3660 = vadd.f32 %v3659, %v2985
        %v3661 = vadd.f32 %v3660, %v2989
        %v3662 = vadd.f32 %v3661, %v2993
        %v3663 = vadd.f32 %v3662, %v2997
        %v3664 = vadd.f32 %v3663, %v3001
        %v3665 = vadd.f32 %v3664, %v3005
        %v3666 = vadd.f32 %v3665, %v3009
        %v3667 = vadd.f32 %v3666, %v3013
        %v3668 = vadd.f32 %v3667, %v3017
        %v3669 = vadd.f32 %v3668, %v3021
        %v3670 = vadd.f32 %v3669, %v3025
        %v3671 = vadd.f32 %v3670, %v3029
        %v3672 = vadd.f32 %v3671, %v3033
        %v3673 = vadd.f32 %v3672, %v3037
        %v3674 = vadd.f32 %v3673, %v3041
        %v3675 = vadd.f32 %v3674, %v3045
        %v3676 = vadd.f32 %v3675, %v3049
        %v3677 = vadd.f32 %v3676, %v3053
        %v3678 = vadd.f32 %v3677, %v3057
        %v3679 = vadd.f32 %v3678, %v3061
        %v3680 = vadd.f32 %v3679, %v3065
        %v3681 = vadd.f32 %v3680, %v3069
        %v3682 = vadd.f32 %v3681, %v3073
        %v3683 = vadd.f32 %v3682, %v3077
        %v3684 = vadd.f32 %v3683, %v3081
        %v3685 = vadd.f32 %v3684, %v3085
        %v3686 = vadd.f32 %v3685, %v3089
        %v3687 = vadd.f32 %v3686, %v3093
        %v3688 = vadd.f32 %v3687, %v3097
        %v3689 = vadd.f32 %v3688, %v3101
        %v3690 = vadd.f32 %v3689, %v3105
        %v3691 = vadd.f32 %v3690, %v3109
        %v3692 = vadd.f32 %v3691, %v3113
        %v3693 = vadd.f32 %v3692, %v3117
        %v3694 = vadd.f32 %v3693, %v3121
        %v3695 = vadd.f32 %v3694, %v3125
        %v3696 = vadd.f32 %v3695, %v3129
        %v3697 = vadd.f32 %v3696, %v3133
        %v3698 = vadd.f32 %v3697, %v3137
        %v3699 = vadd.f32 %v3698, %v3141
        %v3700 = vadd.f32 %v3699, %v3145
        %v3701 = vadd.f32 %v3700, %v3149
        %v3702 = vadd.f32 %v3701, %v3153
        %v3703 = vadd.f32 %v3702, %v3157
        %v3704 = vadd.f32 %v3703, %v3161
        %v3705 = vadd.f32 %v3704, %v3165
        %v3706 = vadd.f32 %v3705, %v3169
        %v3707 = vadd.f32 %v3706, %v3173
        %v3708 = vadd.f32 %v3707, %v3177
        %v3709 = vadd.f32 %v3708, %v3181
        %v3710 = vadd.f32 %v3709, %v3185
        %v3711 = vadd.f32 %v3710, %v3189
        %v3712 = vadd.f32 %v3711, %v3193
        %v3713 = vadd.f32 %v3712, %v3197
        %v3714 = vadd.f32 %v3713, %v3201
        %v3715 = vadd.f32 %v3714, %v3205
        %v3716 = vadd.f32 %v3715, %v3209
        %v3717 = vadd.f32 %v3716, %v3213
        %v3718 = vadd.f32 %v3717, %v3217
        %v3719 = vadd.f32 %v3718, %v3221
        %v3720 = vadd.f32 %v3719, %v3225
        %v3721 = vadd.f32 %v3720, %v3229
        %v3722 = vadd.f32 %v3721, %v3233
        %v3723 = vadd.f32 %v3722, %v3237
        %v3724 = vadd.f32 %v3723, %v3241
        %v3725 = vadd.f32 %v3724, %v3245
        %v3726 = vadd.f32 %v3725, %v3249
        %v3727 = vadd.f32 %v3726, %v3253
        %v3728 = vadd.f32 %v3727, %v3257
        %v3729 = vadd.f32 %v3728, %v3261
        %v3730 = vadd.f32 %v3729, %v3265
        %v3731 = vadd.f32 %v3730, %v3269
        %v3732 = vadd.f32 %v3731, %v3273
        %v3733 = vadd.f32 %v3732, %v3277
        %v3734 = vadd.f32 %v3733, %v3281
        %v3735 = vadd.f32 %v3734, %v3285
        %v3736 = vadd.f32 %v3735, %v3289
        %v3737 = vadd.f32 %v3736, %v3293
        %v3738 = vadd.f32 %v3737, %v3297
        %v3739 = vadd.f32 %v3738, %v3301
        %v3740 = vadd.f32 %v3739, %v3305
        %v3741 = vadd.f32 %v3740, %v3309
        %v3742 = vadd.f32 %v3741, %v3313
        %v3743 = vadd.f32 %v3742, %v3317
        %v3744 = vadd.f32 %v3743, %v3321
        %v3745 = vadd.f32 %v3744, %v3325
        %v3746 = vadd.f32 %v3745, %v3329
        %v3747 = vadd.f32 %v3746, %v3333
        %v3748 = vadd.f32 %v3747, %v3337
        %v3749 = vadd.f32 %v3748, %v3341
        %v3750 = vadd.f32 %v3749, %v3345
        %v3751 = vadd.f32 %v3750, %v3349
        %v3752 = vadd.f32 %v3751, %v3353
        %v3753 = vadd.f32 %v3752, %v3357
        %v3754 = vadd.f32 %v3753, %v3361
        %v3755 = vadd.f32 %v3754, %v3365
        %v3756 = vadd.f32 %v3755, %v3369
        %v3757 = vadd.f32 %v3756, %v3373
        %v3758 = vadd.f32 %v2610, %v2614
        %v3759 = vadd.f32 %v3758, %v2618
        %v3760 = vadd.f32 %v3759, %v2622
        %v3761 = vadd.f32 %v3760, %v2626
        %v3762 = vadd.f32 %v3761, %v2630
        %v3763 = vadd.f32 %v3762, %v2634
        %v3764 = vadd.f32 %v3763, %v2638
        %v3765 = vadd.f32 %v3764, %v2642
        %v3766 = vadd.f32 %v3765, %v2646
        %v3767 = vadd.f32 %v3766, %v2650
        %v3768 = vadd.f32 %v3767, %v2654
        %v3769 = vadd.f32 %v3768, %v2658
        %v3770 = vadd.f32 %v3769, %v2662
        %v3771 = vadd.f32 %v3770, %v2666
        %v3772 = vadd.f32 %v3771, %v2670
        %v3773 = vadd.f32 %v3772, %v2674
        %v3774 = vadd.f32 %v3773, %v2678
        %v3775 = vadd.f32 %v3774, %v2682
        %v3776 = vadd.f32 %v3775, %v2686
        %v3777 = vadd.f32 %v3776, %v2690
        %v3778 = vadd.f32 %v3777, %v2694
        %v3779 = vadd.f32 %v3778, %v2698
        %v3780 = vadd.f32 %v3779, %v2702
        %v3781 = vadd.f32 %v3780, %v2706
        %v3782 = vadd.f32 %v3781, %v2710
        %v3783 = vadd.f32 %v3782, %v2714
        %v3784 = vadd.f32 %v3783, %v2718
        %v3785 = vadd.f32 %v3784, %v2722
        %v3786 = vadd.f32 %v3785, %v2726
        %v3787 = vadd.f32 %v3786, %v2730
        %v3788 = vadd.f32 %v3787, %v2734
        %v3789 = vadd.f32 %v3788, %v2738
        %v3790 = vadd.f32 %v3789, %v2742
        %v3791 = vadd.f32 %v3790, %v2746
        %v3792 = vadd.f32 %v3791, %v2750
        %v3793 = vadd.f32 %v3792, %v2754
        %v3794 = vadd.f32 %v3793, %v2758
        %v3795 = vadd.f32 %v3794, %v2762
        %v3796 = vadd.f32 %v3795, %v2766
        %v3797 = vadd.f32 %v3796, %v2770
        %v3798 = vadd.f32 %v3797, %v2774
        %v3799 = vadd.f32 %v3798, %v2778
        %v3800 = vadd.f32 %v3799, %v2782
        %v3801 = vadd.f32 %v3800, %v2786
        %v3802 = vadd.f32 %v3801, %v2790
        %v3803 = vadd.f32 %v3802, %v2794
        %v3804 = vadd.f32 %v3803, %v2798
        %v3805 = vadd.f32 %v3804, %v2802
        %v3806 = vadd.f32 %v3805, %v2806
        %v3807 = vadd.f32 %v3806, %v2810
        %v3808 = vadd.f32 %v3807, %v2814
        %v3809 = vadd.f32 %v3808, %v2818
        %v3810 = vadd.f32 %v3809, %v2822
        %v3811 = vadd.f32 %v3810, %v2826
        %v3812 = vadd.f32 %v3811, %v2830
        %v3813 = vadd.f32 %v3812, %v2834
        %v3814 = vadd.f32 %v3813, %v2838
        %v3815 = vadd.f32 %v3814, %v2842
        %v3816 = vadd.f32 %v3815, %v2846
        %v3817 = vadd.f32 %v3816, %v2850
        %v3818 = vadd.f32 %v3817, %v2854
        %v3819 = vadd.f32 %v3818, %v2858
        %v3820 = vadd.f32 %v3819, %v2862
        %v3821 = vadd.f32 %v3820, %v2866
        %v3822 = vadd.f32 %v3821, %v2870
        %v3823 = vadd.f32 %v3822, %v2874
        %v3824 = vadd.f32 %v3823, %v2878
        %v3825 = vadd.f32 %v3824, %v2882
        %v3826 = vadd.f32 %v3825, %v2886
        %v3827 = vadd.f32 %v3826, %v2890
        %v3828 = vadd.f32 %v3827, %v2894
        %v3829 = vadd.f32 %v3828, %v2898
        %v3830 = vadd.f32 %v3829, %v2902
        %v3831 = vadd.f32 %v3830, %v2906
        %v3832 = vadd.f32 %v3831, %v2910
        %v3833 = vadd.f32 %v3832, %v2914
        %v3834 = vadd.f32 %v3833, %v2918
        %v3835 = vadd.f32 %v3834, %v2922
        %v3836 = vadd.f32 %v3835, %v2926
        %v3837 = vadd.f32 %v3836, %v2930
        %v3838 = vadd.f32 %v3837, %v2934
        %v3839 = vadd.f32 %v3838, %v2938
        %v3840 = vadd.f32 %v3839, %v2942
        %v3841 = vadd.f32 %v3840, %v2946
        %v3842 = vadd.f32 %v3841, %v2950
        %v3843 = vadd.f32 %v3842, %v2954
        %v3844 = vadd.f32 %v3843, %v2958
        %v3845 = vadd.f32 %v3844, %v2962
        %v3846 = vadd.f32 %v3845, %v2966
        %v3847 = vadd.f32 %v3846, %v2970
        %v3848 = vadd.f32 %v3847, %v2974
        %v3849 = vadd.f32 %v3848, %v2978
        %v3850 = vadd.f32 %v3849, %v2982
        %v3851 = vadd.f32 %v3850, %v2986
        %v3852 = vadd.f32 %v3851, %v2990
        %v3853 = vadd.f32 %v3852, %v2994
        %v3854 = vadd.f32 %v3853, %v2998
        %v3855 = vadd.f32 %v3854, %v3002
        %v3856 = vadd.f32 %v3855, %v3006
        %v3857 = vadd.f32 %v3856, %v3010
        %v3858 = vadd.f32 %v3857, %v3014
        %v3859 = vadd.f32 %v3858, %v3018
        %v3860 = vadd.f32 %v3859, %v3022
        %v3861 = vadd.f32 %v3860, %v3026
        %v3862 = vadd.f32 %v3861, %v3030
        %v3863 = vadd.f32 %v3862, %v3034
        %v3864 = vadd.f32 %v3863, %v3038
        %v3865 = vadd.f32 %v3864, %v3042
        %v3866 = vadd.f32 %v3865, %v3046
        %v3867 = vadd.f32 %v3866, %v3050
        %v3868 = vadd.f32 %v3867, %v3054
        %v3869 = vadd.f32 %v3868, %v3058
        %v3870 = vadd.f32 %v3869, %v3062
        %v3871 = vadd.f32 %v3870, %v3066
        %v3872 = vadd.f32 %v3871, %v3070
        %v3873 = vadd.f32 %v3872, %v3074
        %v3874 = vadd.f32 %v3873, %v3078
        %v3875 = vadd.f32 %v3874, %v3082
        %v3876 = vadd.f32 %v3875, %v3086
        %v3877 = vadd.f32 %v3876, %v3090
        %v3878 = vadd.f32 %v3877, %v3094
        %v3879 = vadd.f32 %v3878, %v3098
        %v3880 = vadd.f32 %v3879, %v3102
        %v3881 = vadd.f32 %v3880, %v3106
        %v3882 = vadd.f32 %v3881, %v3110
        %v3883 = vadd.f32 %v3882, %v3114
        %v3884 = vadd.f32 %v3883, %v3118
        %v3885 = vadd.f32 %v3884, %v3122
        %v3886 = vadd.f32 %v3885, %v3126
        %v3887 = vadd.f32 %v3886, %v3130
        %v3888 = vadd.f32 %v3887, %v3134
        %v3889 = vadd.f32 %v3888, %v3138
        %v3890 = vadd.f32 %v3889, %v3142
        %v3891 = vadd.f32 %v3890, %v3146
        %v3892 = vadd.f32 %v3891, %v3150
        %v3893 = vadd.f32 %v3892, %v3154
        %v3894 = vadd.f32 %v3893, %v3158
        %v3895 = vadd.f32 %v3894, %v3162
        %v3896 = vadd.f32 %v3895, %v3166
        %v3897 = vadd.f32 %v3896, %v3170
        %v3898 = vadd.f32 %v3897, %v3174
        %v3899 = vadd.f32 %v3898, %v3178
        %v3900 = vadd.f32 %v3899, %v3182
        %v3901 = vadd.f32 %v3900, %v3186
        %v3902 = vadd.f32 %v3901, %v3190
        %v3903 = vadd.f32 %v3902, %v3194
        %v3904 = vadd.f32 %v3903, %v3198
        %v3905 = vadd.f32 %v3904, %v3202
        %v3906 = vadd.f32 %v3905, %v3206
        %v3907 = vadd.f32 %v3906, %v3210
        %v3908 = vadd.f32 %v3907, %v3214
        %v3909 = vadd.f32 %v3908, %v3218
        %v3910 = vadd.f32 %v3909, %v3222
        %v3911 = vadd.f32 %v3910, %v3226
        %v3912 = vadd.f32 %v3911, %v3230
        %v3913 = vadd.f32 %v3912, %v3234
        %v3914 = vadd.f32 %v3913, %v3238
        %v3915 = vadd.f32 %v3914, %v3242
        %v3916 = vadd.f32 %v3915, %v3246
        %v3917 = vadd.f32 %v3916, %v3250
        %v3918 = vadd.f32 %v3917, %v3254
        %v3919 = vadd.f32 %v3918, %v3258
        %v3920 = vadd.f32 %v3919, %v3262
        %v3921 = vadd.f32 %v3920, %v3266
        %v3922 = vadd.f32 %v3921, %v3270
        %v3923 = vadd.f32 %v3922, %v3274
        %v3924 = vadd.f32 %v3923, %v3278
        %v3925 = vadd.f32 %v3924, %v3282
        %v3926 = vadd.f32 %v3925, %v3286
        %v3927 = vadd.f32 %v3926, %v3290
        %v3928 = vadd.f32 %v3927, %v3294
        %v3929 = vadd.f32 %v3928, %v3298
        %v3930 = vadd.f32 %v3929, %v3302
        %v3931 = vadd.f32 %v3930, %v3306
        %v3932 = vadd.f32 %v3931, %v3310
        %v3933 = vadd.f32 %v3932, %v3314
        %v3934 = vadd.f32 %v3933, %v3318
        %v3935 = vadd.f32 %v3934, %v3322
        %v3936 = vadd.f32 %v3935, %v3326
        %v3937 = vadd.f32 %v3936, %v3330
        %v3938 = vadd.f32 %v3937, %v3334
        %v3939 = vadd.f32 %v3938, %v3338
        %v3940 = vadd.f32 %v3939, %v3342
        %v3941 = vadd.f32 %v3940, %v3346
        %v3942 = vadd.f32 %v3941, %v3350
        %v3943 = vadd.f32 %v3942, %v3354
        %v3944 = vadd.f32 %v3943, %v3358
        %v3945 = vadd.f32 %v3944, %v3362
        %v3946 = vadd.f32 %v3945, %v3366
        %v3947 = vadd.f32 %v3946, %v3370
        %v3948 = vadd.f32 %v3947, %v3374
        %v3949 = vadd.f32 %v2611, %v2615
        %v3950 = vadd.f32 %v3949, %v2619
        %v3951 = vadd.f32 %v3950, %v2623
        %v3952 = vadd.f32 %v3951, %v2627
        %v3953 = vadd.f32 %v3952, %v2631
        %v3954 = vadd.f32 %v3953, %v2635
        %v3955 = vadd.f32 %v3954, %v2639
        %v3956 = vadd.f32 %v3955, %v2643
        %v3957 = vadd.f32 %v3956, %v2647
        %v3958 = vadd.f32 %v3957, %v2651
        %v3959 = vadd.f32 %v3958, %v2655
        %v3960 = vadd.f32 %v3959, %v2659
        %v3961 = vadd.f32 %v3960, %v2663
        %v3962 = vadd.f32 %v3961, %v2667
        %v3963 = vadd.f32 %v3962, %v2671
        %v3964 = vadd.f32 %v3963, %v2675
        %v3965 = vadd.f32 %v3964, %v2679
        %v3966 = vadd.f32 %v3965, %v2683
        %v3967 = vadd.f32 %v3966, %v2687
        %v3968 = vadd.f32 %v3967, %v2691
        %v3969 = vadd.f32 %v3968, %v2695
        %v3970 = vadd.f32 %v3969, %v2699
        %v3971 = vadd.f32 %v3970, %v2703
        %v3972 = vadd.f32 %v3971, %v2707
        %v3973 = vadd.f32 %v3972, %v2711
        %v3974 = vadd.f32 %v3973, %v2715
        %v3975 = vadd.f32 %v3974, %v2719
        %v3976 = vadd.f32 %v3975, %v2723
        %v3977 = vadd.f32 %v3976, %v2727
        %v3978 = vadd.f32 %v3977, %v2731
        %v3979 = vadd.f32 %v3978, %v2735
        %v3980 = vadd.f32 %v3979, %v2739
        %v3981 = vadd.f32 %v3980, %v2743
        %v3982 = vadd.f32 %v3981, %v2747
        %v3983 = vadd.f32 %v3982, %v2751
        %v3984 = vadd.f32 %v3983, %v2755
        %v3985 = vadd.f32 %v3984, %v2759
        %v3986 = vadd.f32 %v3985, %v2763
        %v3987 = vadd.f32 %v3986, %v2767
        %v3988 = vadd.f32 %v3987, %v2771
        %v3989 = vadd.f32 %v3988, %v2775
        %v3990 = vadd.f32 %v3989, %v2779
        %v3991 = vadd.f32 %v3990, %v2783
        %v3992 = vadd.f32 %v3991, %v2787
        %v3993 = vadd.f32 %v3992, %v2791
        %v3994 = vadd.f32 %v3993, %v2795
        %v3995 = vadd.f32 %v3994, %v2799
        %v3996 = vadd.f32 %v3995, %v2803
        %v3997 = vadd.f32 %v3996, %v2807
        %v3998 = vadd.f32 %v3997, %v2811
        %v3999 = vadd.f32 %v3998, %v2815
        %v4000 = vadd.f32 %v3999, %v2819
        %v4001 = vadd.f32 %v4000, %v2823
        %v4002 = vadd.f32 %v4001, %v2827
        %v4003 = vadd.f32 %v4002, %v2831
        %v4004 = vadd.f32 %v4003, %v2835
        %v4005 = vadd.f32 %v4004, %v2839
        %v4006 = vadd.f32 %v4005, %v2843
        %v4007 = vadd.f32 %v4006, %v2847
        %v4008 = vadd.f32 %v4007, %v2851
        %v4009 = vadd.f32 %v4008, %v2855
        %v4010 = vadd.f32 %v4009, %v2859
        %v4011 = vadd.f32 %v4010, %v2863
        %v4012 = vadd.f32 %v4011, %v2867
        %v4013 = vadd.f32 %v4012, %v2871
        %v4014 = vadd.f32 %v4013, %v2875
        %v4015 = vadd.f32 %v4014, %v2879
        %v4016 = vadd.f32 %v4015, %v2883
        %v4017 = vadd.f32 %v4016, %v2887
        %v4018 = vadd.f32 %v4017, %v2891
        %v4019 = vadd.f32 %v4018, %v2895
        %v4020 = vadd.f32 %v4019, %v2899
        %v4021 = vadd.f32 %v4020, %v2903
        %v4022 = vadd.f32 %v4021, %v2907
        %v4023 = vadd.f32 %v4022, %v2911
        %v4024 = vadd.f32 %v4023, %v2915
        %v4025 = vadd.f32 %v4024, %v2919
        %v4026 = vadd.f32 %v4025, %v2923
        %v4027 = vadd.f32 %v4026, %v2927
        %v4028 = vadd.f32 %v4027, %v2931
        %v4029 = vadd.f32 %v4028, %v2935
        %v4030 = vadd.f32 %v4029, %v2939
        %v4031 = vadd.f32 %v4030, %v2943
        %v4032 = vadd.f32 %v4031, %v2947
        %v4033 = vadd.f32 %v4032, %v2951
        %v4034 = vadd.f32 %v4033, %v2955
        %v4035 = vadd.f32 %v4034, %v2959
        %v4036 = vadd.f32 %v4035, %v2963
        %v4037 = vadd.f32 %v4036, %v2967
        %v4038 = vadd.f32 %v4037, %v2971
        %v4039 = vadd.f32 %v4038, %v2975
        %v4040 = vadd.f32 %v4039, %v2979
        %v4041 = vadd.f32 %v4040, %v2983
        %v4042 = vadd.f32 %v4041, %v2987
        %v4043 = vadd.f32 %v4042, %v2991
        %v4044 = vadd.f32 %v4043, %v2995
        %v4045 = vadd.f32 %v4044, %v2999
        %v4046 = vadd.f32 %v4045, %v3003
        %v4047 = vadd.f32 %v4046, %v3007
        %v4048 = vadd.f32 %v4047, %v3011
        %v4049 = vadd.f32 %v4048, %v3015
        %v4050 = vadd.f32 %v4049, %v3019
        %v4051 = vadd.f32 %v4050, %v3023
        %v4052 = vadd.f32 %v4051, %v3027
        %v4053 = vadd.f32 %v4052, %v3031
        %v4054 = vadd.f32 %v4053, %v3035
        %v4055 = vadd.f32 %v4054, %v3039
        %v4056 = vadd.f32 %v4055, %v3043
        %v4057 = vadd.f32 %v4056, %v3047
        %v4058 = vadd.f32 %v4057, %v3051
        %v4059 = vadd.f32 %v4058, %v3055
        %v4060 = vadd.f32 %v4059, %v3059
        %v4061 = vadd.f32 %v4060, %v3063
        %v4062 = vadd.f32 %v4061, %v3067
        %v4063 = vadd.f32 %v4062, %v3071
        %v4064 = vadd.f32 %v4063, %v3075
        %v4065 = vadd.f32 %v4064, %v3079
        %v4066 = vadd.f32 %v4065, %v3083
        %v4067 = vadd.f32 %v4066, %v3087
        %v4068 = vadd.f32 %v4067, %v3091
        %v4069 = vadd.f32 %v4068, %v3095
        %v4070 = vadd.f32 %v4069, %v3099
        %v4071 = vadd.f32 %v4070, %v3103
        %v4072 = vadd.f32 %v4071, %v3107
        %v4073 = vadd.f32 %v4072, %v3111
        %v4074 = vadd.f32 %v4073, %v3115
        %v4075 = vadd.f32 %v4074, %v3119
        %v4076 = vadd.f32 %v4075, %v3123
        %v4077 = vadd.f32 %v4076, %v3127
        %v4078 = vadd.f32 %v4077, %v3131
        %v4079 = vadd.f32 %v4078, %v3135
        %v4080 = vadd.f32 %v4079, %v3139
        %v4081 = vadd.f32 %v4080, %v3143
        %v4082 = vadd.f32 %v4081, %v3147
        %v4083 = vadd.f32 %v4082, %v3151
        %v4084 = vadd.f32 %v4083, %v3155
        %v4085 = vadd.f32 %v4084, %v3159
        %v4086 = vadd.f32 %v4085, %v3163
        %v4087 = vadd.f32 %v4086, %v3167
        %v4088 = vadd.f32 %v4087, %v3171
        %v4089 = vadd.f32 %v4088, %v3175
        %v4090 = vadd.f32 %v4089, %v3179
        %v4091 = vadd.f32 %v4090, %v3183
        %v4092 = vadd.f32 %v4091, %v3187
        %v4093 = vadd.f32 %v4092, %v3191
        %v4094 = vadd.f32 %v4093, %v3195
        %v4095 = vadd.f32 %v4094, %v3199
        %v4096 = vadd.f32 %v4095, %v3203
        %v4097 = vadd.f32 %v4096, %v3207
        %v4098 = vadd.f32 %v4097, %v3211
        %v4099 = vadd.f32 %v4098, %v3215
        %v4100 = vadd.f32 %v4099, %v3219
        %v4101 = vadd.f32 %v4100, %v3223
        %v4102 = vadd.f32 %v4101, %v3227
        %v4103 = vadd.f32 %v4102, %v3231
        %v4104 = vadd.f32 %v4103, %v3235
        %v4105 = vadd.f32 %v4104, %v3239
        %v4106 = vadd.f32 %v4105, %v3243
        %v4107 = vadd.f32 %v4106, %v3247
        %v4108 = vadd.f32 %v4107, %v3251
        %v4109 = vadd.f32 %v4108, %v3255
        %v4110 = vadd.f32 %v4109, %v3259
        %v4111 = vadd.f32 %v4110, %v3263
        %v4112 = vadd.f32 %v4111, %v3267
        %v4113 = vadd.f32 %v4112, %v3271
        %v4114 = vadd.f32 %v4113, %v3275
        %v4115 = vadd.f32 %v4114, %v3279
        %v4116 = vadd.f32 %v4115, %v3283
        %v4117 = vadd.f32 %v4116, %v3287
        %v4118 = vadd.f32 %v4117, %v3291
        %v4119 = vadd.f32 %v4118, %v3295
        %v4120 = vadd.f32 %v4119, %v3299
        %v4121 = vadd.f32 %v4120, %v3303
        %v4122 = vadd.f32 %v4121, %v3307
        %v4123 = vadd.f32 %v4122, %v3311
        %v4124 = vadd.f32 %v4123, %v3315
        %v4125 = vadd.f32 %v4124, %v3319
        %v4126 = vadd.f32 %v4125, %v3323
        %v4127 = vadd.f32 %v4126, %v3327
        %v4128 = vadd.f32 %v4127, %v3331
        %v4129 = vadd.f32 %v4128, %v3335
        %v4130 = vadd.f32 %v4129, %v3339
        %v4131 = vadd.f32 %v4130, %v3343
        %v4132 = vadd.f32 %v4131, %v3347
        %v4133 = vadd.f32 %v4132, %v3351
        %v4134 = vadd.f32 %v4133, %v3355
        %v4135 = vadd.f32 %v4134, %v3359
        %v4136 = vadd.f32 %v4135, %v3363
        %v4137 = vadd.f32 %v4136, %v3367
        %v4138 = vadd.f32 %v4137, %v3371
        %v4139 = vadd.f32 %v4138, %v3375
        %v4140 = vadd.f32 %v2604, %v3566
        %v4141 = vadd.f32 %v2605, %v3757
        %v4142 = vadd.f32 %v2606, %v3948
        %v4143 = vadd.f32 %v2607, %v4139
        %4144 = vst [vmem:[#allocation2] sm:$0xff] %v4140
        %4145 = vst [vmem:[#allocation2 + $0x8] sm:$0xff] %v4141
        %4146 = vst [vmem:[#allocation2 + $0x10] sm:$0xff] %v4142
        %4147 = vst [vmem:[#allocation2 + $0x18] sm:$0xff] %v4143
        %v4148 = vld [vmem:[#allocation3] sm:$0xff]
        %v4149 = vld [vmem:[#allocation3 + $0x8] sm:$0xff]
        %v4150 = vld [vmem:[#allocation3 + $0x10] sm:$0xff]
        %v4151 = vld [vmem:[#allocation3 + $0x18] sm:$0xff]
        %v4152 = vmul.f32 %v1836, %v1836
        %v4153 = vmul.f32 %v1837, %v1837
        %v4154 = vmul.f32 %v1838, %v1838
        %v4155 = vmul.f32 %v1839, %v1839
        %v4156 = vmul.f32 %v1840, %v1840
        %v4157 = vmul.f32 %v1841, %v1841
        %v4158 = vmul.f32 %v1842, %v1842
        %v4159 = vmul.f32 %v1843, %v1843
        %v4160 = vmul.f32 %v1844, %v1844
        %v4161 = vmul.f32 %v1845, %v1845
        %v4162 = vmul.f32 %v1846, %v1846
        %v4163 = vmul.f32 %v1847, %v1847
        %v4164 = vmul.f32 %v1848, %v1848
        %v4165 = vmul.f32 %v1849, %v1849
        %v4166 = vmul.f32 %v1850, %v1850
        %v4167 = vmul.f32 %v1851, %v1851
        %v4168 = vmul.f32 %v1852, %v1852
        %v4169 = vmul.f32 %v1853, %v1853
        %v4170 = vmul.f32 %v1854, %v1854
        %v4171 = vmul.f32 %v1855, %v1855
        %v4172 = vmul.f32 %v1856, %v1856
        %v4173 = vmul.f32 %v1857, %v1857
        %v4174 = vmul.f32 %v1858, %v1858
        %v4175 = vmul.f32 %v1859, %v1859
        %v4176 = vmul.f32 %v1860, %v1860
        %v4177 = vmul.f32 %v1861, %v1861
        %v4178 = vmul.f32 %v1862, %v1862
        %v4179 = vmul.f32 %v1863, %v1863
        %v4180 = vmul.f32 %v1864, %v1864
        %v4181 = vmul.f32 %v1865, %v1865
        %v4182 = vmul.f32 %v1866, %v1866
        %v4183 = vmul.f32 %v1867, %v1867
        %v4184 = vmul.f32 %v1868, %v1868
        %v4185 = vmul.f32 %v1869, %v1869
        %v4186 = vmul.f32 %v1870, %v1870
        %v4187 = vmul.f32 %v1871, %v1871
        %v4188 = vmul.f32 %v1872, %v1872
        %v4189 = vmul.f32 %v1873, %v1873
        %v4190 = vmul.f32 %v1874, %v1874
        %v4191 = vmul.f32 %v1875, %v1875
        %v4192 = vmul.f32 %v1876, %v1876
        %v4193 = vmul.f32 %v1877, %v1877
        %v4194 = vmul.f32 %v1878, %v1878
        %v4195 = vmul.f32 %v1879, %v1879
        %v4196 = vmul.f32 %v1880, %v1880
        %v4197 = vmul.f32 %v1881, %v1881
        %v4198 = vmul.f32 %v1882, %v1882
        %v4199 = vmul.f32 %v1883, %v1883
        %v4200 = vmul.f32 %v1884, %v1884
        %v4201 = vmul.f32 %v1885, %v1885
        %v4202 = vmul.f32 %v1886, %v1886
        %v4203 = vmul.f32 %v1887, %v1887
        %v4204 = vmul.f32 %v1888, %v1888
        %v4205 = vmul.f32 %v1889, %v1889
        %v4206 = vmul.f32 %v1890, %v1890
        %v4207 = vmul.f32 %v1891, %v1891
        %v4208 = vmul.f32 %v1892, %v1892
        %v4209 = vmul.f32 %v1893, %v1893
        %v4210 = vmul.f32 %v1894, %v1894
        %v4211 = vmul.f32 %v1895, %v1895
        %v4212 = vmul.f32 %v1896, %v1896
        %v4213 = vmul.f32 %v1897, %v1897
        %v4214 = vmul.f32 %v1898, %v1898
        %v4215 = vmul.f32 %v1899, %v1899
        %v4216 = vmul.f32 %v1900, %v1900
        %v4217 = vmul.f32 %v1901, %v1901
        %v4218 = vmul.f32 %v1902, %v1902
        %v4219 = vmul.f32 %v1903, %v1903
        %v4220 = vmul.f32 %v1904, %v1904
        %v4221 = vmul.f32 %v1905, %v1905
        %v4222 = vmul.f32 %v1906, %v1906
        %v4223 = vmul.f32 %v1907, %v1907
        %v4224 = vmul.f32 %v1908, %v1908
        %v4225 = vmul.f32 %v1909, %v1909
        %v4226 = vmul.f32 %v1910, %v1910
        %v4227 = vmul.f32 %v1911, %v1911
        %v4228 = vmul.f32 %v1912, %v1912
        %v4229 = vmul.f32 %v1913, %v1913
        %v4230 = vmul.f32 %v1914, %v1914
        %v4231 = vmul.f32 %v1915, %v1915
        %v4232 = vmul.f32 %v1916, %v1916
        %v4233 = vmul.f32 %v1917, %v1917
        %v4234 = vmul.f32 %v1918, %v1918
        %v4235 = vmul.f32 %v1919, %v1919
        %v4236 = vmul.f32 %v1920, %v1920
        %v4237 = vmul.f32 %v1921, %v1921
        %v4238 = vmul.f32 %v1922, %v1922
        %v4239 = vmul.f32 %v1923, %v1923
        %v4240 = vmul.f32 %v1924, %v1924
        %v4241 = vmul.f32 %v1925, %v1925
        %v4242 = vmul.f32 %v1926, %v1926
        %v4243 = vmul.f32 %v1927, %v1927
        %v4244 = vmul.f32 %v1928, %v1928
        %v4245 = vmul.f32 %v1929, %v1929
        %v4246 = vmul.f32 %v1930, %v1930
        %v4247 = vmul.f32 %v1931, %v1931
        %v4248 = vmul.f32 %v1932, %v1932
        %v4249 = vmul.f32 %v1933, %v1933
        %v4250 = vmul.f32 %v1934, %v1934
        %v4251 = vmul.f32 %v1935, %v1935
        %v4252 = vmul.f32 %v1936, %v1936
        %v4253 = vmul.f32 %v1937, %v1937
        %v4254 = vmul.f32 %v1938, %v1938
        %v4255 = vmul.f32 %v1939, %v1939
        %v4256 = vmul.f32 %v1940, %v1940
        %v4257 = vmul.f32 %v1941, %v1941
        %v4258 = vmul.f32 %v1942, %v1942
        %v4259 = vmul.f32 %v1943, %v1943
        %v4260 = vmul.f32 %v1944, %v1944
        %v4261 = vmul.f32 %v1945, %v1945
        %v4262 = vmul.f32 %v1946, %v1946
        %v4263 = vmul.f32 %v1947, %v1947
        %v4264 = vmul.f32 %v1948, %v1948
        %v4265 = vmul.f32 %v1949, %v1949
        %v4266 = vmul.f32 %v1950, %v1950
        %v4267 = vmul.f32 %v1951, %v1951
        %v4268 = vmul.f32 %v1952, %v1952
        %v4269 = vmul.f32 %v1953, %v1953
        %v4270 = vmul.f32 %v1954, %v1954
        %v4271 = vmul.f32 %v1955, %v1955
        %v4272 = vmul.f32 %v1956, %v1956
        %v4273 = vmul.f32 %v1957, %v1957
        %v4274 = vmul.f32 %v1958, %v1958
        %v4275 = vmul.f32 %v1959, %v1959
        %v4276 = vmul.f32 %v1960, %v1960
        %v4277 = vmul.f32 %v1961, %v1961
        %v4278 = vmul.f32 %v1962, %v1962
        %v4279 = vmul.f32 %v1963, %v1963
        %v4280 = vmul.f32 %v1964, %v1964
        %v4281 = vmul.f32 %v1965, %v1965
        %v4282 = vmul.f32 %v1966, %v1966
        %v4283 = vmul.f32 %v1967, %v1967
        %v4284 = vmul.f32 %v1968, %v1968
        %v4285 = vmul.f32 %v1969, %v1969
        %v4286 = vmul.f32 %v1970, %v1970
        %v4287 = vmul.f32 %v1971, %v1971
        %v4288 = vmul.f32 %v1972, %v1972
        %v4289 = vmul.f32 %v1973, %v1973
        %v4290 = vmul.f32 %v1974, %v1974
        %v4291 = vmul.f32 %v1975, %v1975
        %v4292 = vmul.f32 %v1976, %v1976
        %v4293 = vmul.f32 %v1977, %v1977
        %v4294 = vmul.f32 %v1978, %v1978
        %v4295 = vmul.f32 %v1979, %v1979
        %v4296 = vmul.f32 %v1980, %v1980
        %v4297 = vmul.f32 %v1981, %v1981
        %v4298 = vmul.f32 %v1982, %v1982
        %v4299 = vmul.f32 %v1983, %v1983
        %v4300 = vmul.f32 %v1984, %v1984
        %v4301 = vmul.f32 %v1985, %v1985
        %v4302 = vmul.f32 %v1986, %v1986
        %v4303 = vmul.f32 %v1987, %v1987
        %v4304 = vmul.f32 %v1988, %v1988
        %v4305 = vmul.f32 %v1989, %v1989
        %v4306 = vmul.f32 %v1990, %v1990
        %v4307 = vmul.f32 %v1991, %v1991
        %v4308 = vmul.f32 %v1992, %v1992
        %v4309 = vmul.f32 %v1993, %v1993
        %v4310 = vmul.f32 %v1994, %v1994
        %v4311 = vmul.f32 %v1995, %v1995
        %v4312 = vmul.f32 %v1996, %v1996
        %v4313 = vmul.f32 %v1997, %v1997
        %v4314 = vmul.f32 %v1998, %v1998
        %v4315 = vmul.f32 %v1999, %v1999
        %v4316 = vmul.f32 %v2000, %v2000
        %v4317 = vmul.f32 %v2001, %v2001
        %v4318 = vmul.f32 %v2002, %v2002
        %v4319 = vmul.f32 %v2003, %v2003
        %v4320 = vmul.f32 %v2004, %v2004
        %v4321 = vmul.f32 %v2005, %v2005
        %v4322 = vmul.f32 %v2006, %v2006
        %v4323 = vmul.f32 %v2007, %v2007
        %v4324 = vmul.f32 %v2008, %v2008
        %v4325 = vmul.f32 %v2009, %v2009
        %v4326 = vmul.f32 %v2010, %v2010
        %v4327 = vmul.f32 %v2011, %v2011
        %v4328 = vmul.f32 %v2012, %v2012
        %v4329 = vmul.f32 %v2013, %v2013
        %v4330 = vmul.f32 %v2014, %v2014
        %v4331 = vmul.f32 %v2015, %v2015
        %v4332 = vmul.f32 %v2016, %v2016
        %v4333 = vmul.f32 %v2017, %v2017
        %v4334 = vmul.f32 %v2018, %v2018
        %v4335 = vmul.f32 %v2019, %v2019
        %v4336 = vmul.f32 %v2020, %v2020
        %v4337 = vmul.f32 %v2021, %v2021
        %v4338 = vmul.f32 %v2022, %v2022
        %v4339 = vmul.f32 %v2023, %v2023
        %v4340 = vmul.f32 %v2024, %v2024
        %v4341 = vmul.f32 %v2025, %v2025
        %v4342 = vmul.f32 %v2026, %v2026
        %v4343 = vmul.f32 %v2027, %v2027
        %v4344 = vmul.f32 %v2028, %v2028
        %v4345 = vmul.f32 %v2029, %v2029
        %v4346 = vmul.f32 %v2030, %v2030
        %v4347 = vmul.f32 %v2031, %v2031
        %v4348 = vmul.f32 %v2032, %v2032
        %v4349 = vmul.f32 %v2033, %v2033
        %v4350 = vmul.f32 %v2034, %v2034
        %v4351 = vmul.f32 %v2035, %v2035
        %v4352 = vmul.f32 %v2036, %v2036
        %v4353 = vmul.f32 %v2037, %v2037
        %v4354 = vmul.f32 %v2038, %v2038
        %v4355 = vmul.f32 %v2039, %v2039
        %v4356 = vmul.f32 %v2040, %v2040
        %v4357 = vmul.f32 %v2041, %v2041
        %v4358 = vmul.f32 %v2042, %v2042
        %v4359 = vmul.f32 %v2043, %v2043
        %v4360 = vmul.f32 %v2044, %v2044
        %v4361 = vmul.f32 %v2045, %v2045
        %v4362 = vmul.f32 %v2046, %v2046
        %v4363 = vmul.f32 %v2047, %v2047
        %v4364 = vmul.f32 %v2048, %v2048
        %v4365 = vmul.f32 %v2049, %v2049
        %v4366 = vmul.f32 %v2050, %v2050
        %v4367 = vmul.f32 %v2051, %v2051
        %v4368 = vmul.f32 %v2052, %v2052
        %v4369 = vmul.f32 %v2053, %v2053
        %v4370 = vmul.f32 %v2054, %v2054
        %v4371 = vmul.f32 %v2055, %v2055
        %v4372 = vmul.f32 %v2056, %v2056
        %v4373 = vmul.f32 %v2057, %v2057
        %v4374 = vmul.f32 %v2058, %v2058
        %v4375 = vmul.f32 %v2059, %v2059
        %v4376 = vmul.f32 %v2060, %v2060
        %v4377 = vmul.f32 %v2061, %v2061
        %v4378 = vmul.f32 %v2062, %v2062
        %v4379 = vmul.f32 %v2063, %v2063
        %v4380 = vmul.f32 %v2064, %v2064
        %v4381 = vmul.f32 %v2065, %v2065
        %v4382 = vmul.f32 %v2066, %v2066
        %v4383 = vmul.f32 %v2067, %v2067
        %v4384 = vmul.f32 %v2068, %v2068
        %v4385 = vmul.f32 %v2069, %v2069
        %v4386 = vmul.f32 %v2070, %v2070
        %v4387 = vmul.f32 %v2071, %v2071
        %v4388 = vmul.f32 %v2072, %v2072
        %v4389 = vmul.f32 %v2073, %v2073
        %v4390 = vmul.f32 %v2074, %v2074
        %v4391 = vmul.f32 %v2075, %v2075
        %v4392 = vmul.f32 %v2076, %v2076
        %v4393 = vmul.f32 %v2077, %v2077
        %v4394 = vmul.f32 %v2078, %v2078
        %v4395 = vmul.f32 %v2079, %v2079
        %v4396 = vmul.f32 %v2080, %v2080
        %v4397 = vmul.f32 %v2081, %v2081
        %v4398 = vmul.f32 %v2082, %v2082
        %v4399 = vmul.f32 %v2083, %v2083
        %v4400 = vmul.f32 %v2084, %v2084
        %v4401 = vmul.f32 %v2085, %v2085
        %v4402 = vmul.f32 %v2086, %v2086
        %v4403 = vmul.f32 %v2087, %v2087
        %v4404 = vmul.f32 %v2088, %v2088
        %v4405 = vmul.f32 %v2089, %v2089
        %v4406 = vmul.f32 %v2090, %v2090
        %v4407 = vmul.f32 %v2091, %v2091
        %v4408 = vmul.f32 %v2092, %v2092
        %v4409 = vmul.f32 %v2093, %v2093
        %v4410 = vmul.f32 %v2094, %v2094
        %v4411 = vmul.f32 %v2095, %v2095
        %v4412 = vmul.f32 %v2096, %v2096
        %v4413 = vmul.f32 %v2097, %v2097
        %v4414 = vmul.f32 %v2098, %v2098
        %v4415 = vmul.f32 %v2099, %v2099
        %v4416 = vmul.f32 %v2100, %v2100
        %v4417 = vmul.f32 %v2101, %v2101
        %v4418 = vmul.f32 %v2102, %v2102
        %v4419 = vmul.f32 %v2103, %v2103
        %v4420 = vmul.f32 %v2104, %v2104
        %v4421 = vmul.f32 %v2105, %v2105
        %v4422 = vmul.f32 %v2106, %v2106
        %v4423 = vmul.f32 %v2107, %v2107
        %v4424 = vmul.f32 %v2108, %v2108
        %v4425 = vmul.f32 %v2109, %v2109
        %v4426 = vmul.f32 %v2110, %v2110
        %v4427 = vmul.f32 %v2111, %v2111
        %v4428 = vmul.f32 %v2112, %v2112
        %v4429 = vmul.f32 %v2113, %v2113
        %v4430 = vmul.f32 %v2114, %v2114
        %v4431 = vmul.f32 %v2115, %v2115
        %v4432 = vmul.f32 %v2116, %v2116
        %v4433 = vmul.f32 %v2117, %v2117
        %v4434 = vmul.f32 %v2118, %v2118
        %v4435 = vmul.f32 %v2119, %v2119
        %v4436 = vmul.f32 %v2120, %v2120
        %v4437 = vmul.f32 %v2121, %v2121
        %v4438 = vmul.f32 %v2122, %v2122
        %v4439 = vmul.f32 %v2123, %v2123
        %v4440 = vmul.f32 %v2124, %v2124
        %v4441 = vmul.f32 %v2125, %v2125
        %v4442 = vmul.f32 %v2126, %v2126
        %v4443 = vmul.f32 %v2127, %v2127
        %v4444 = vmul.f32 %v2128, %v2128
        %v4445 = vmul.f32 %v2129, %v2129
        %v4446 = vmul.f32 %v2130, %v2130
        %v4447 = vmul.f32 %v2131, %v2131
        %v4448 = vmul.f32 %v2132, %v2132
        %v4449 = vmul.f32 %v2133, %v2133
        %v4450 = vmul.f32 %v2134, %v2134
        %v4451 = vmul.f32 %v2135, %v2135
        %v4452 = vmul.f32 %v2136, %v2136
        %v4453 = vmul.f32 %v2137, %v2137
        %v4454 = vmul.f32 %v2138, %v2138
        %v4455 = vmul.f32 %v2139, %v2139
        %v4456 = vmul.f32 %v2140, %v2140
        %v4457 = vmul.f32 %v2141, %v2141
        %v4458 = vmul.f32 %v2142, %v2142
        %v4459 = vmul.f32 %v2143, %v2143
        %v4460 = vmul.f32 %v2144, %v2144
        %v4461 = vmul.f32 %v2145, %v2145
        %v4462 = vmul.f32 %v2146, %v2146
        %v4463 = vmul.f32 %v2147, %v2147
        %v4464 = vmul.f32 %v2148, %v2148
        %v4465 = vmul.f32 %v2149, %v2149
        %v4466 = vmul.f32 %v2150, %v2150
        %v4467 = vmul.f32 %v2151, %v2151
        %v4468 = vmul.f32 %v2152, %v2152
        %v4469 = vmul.f32 %v2153, %v2153
        %v4470 = vmul.f32 %v2154, %v2154
        %v4471 = vmul.f32 %v2155, %v2155
        %v4472 = vmul.f32 %v2156, %v2156
        %v4473 = vmul.f32 %v2157, %v2157
        %v4474 = vmul.f32 %v2158, %v2158
        %v4475 = vmul.f32 %v2159, %v2159
        %v4476 = vmul.f32 %v2160, %v2160
        %v4477 = vmul.f32 %v2161, %v2161
        %v4478 = vmul.f32 %v2162, %v2162
        %v4479 = vmul.f32 %v2163, %v2163
        %v4480 = vmul.f32 %v2164, %v2164
        %v4481 = vmul.f32 %v2165, %v2165
        %v4482 = vmul.f32 %v2166, %v2166
        %v4483 = vmul.f32 %v2167, %v2167
        %v4484 = vmul.f32 %v2168, %v2168
        %v4485 = vmul.f32 %v2169, %v2169
        %v4486 = vmul.f32 %v2170, %v2170
        %v4487 = vmul.f32 %v2171, %v2171
        %v4488 = vmul.f32 %v2172, %v2172
        %v4489 = vmul.f32 %v2173, %v2173
        %v4490 = vmul.f32 %v2174, %v2174
        %v4491 = vmul.f32 %v2175, %v2175
        %v4492 = vmul.f32 %v2176, %v2176
        %v4493 = vmul.f32 %v2177, %v2177
        %v4494 = vmul.f32 %v2178, %v2178
        %v4495 = vmul.f32 %v2179, %v2179
        %v4496 = vmul.f32 %v2180, %v2180
        %v4497 = vmul.f32 %v2181, %v2181
        %v4498 = vmul.f32 %v2182, %v2182
        %v4499 = vmul.f32 %v2183, %v2183
        %v4500 = vmul.f32 %v2184, %v2184
        %v4501 = vmul.f32 %v2185, %v2185
        %v4502 = vmul.f32 %v2186, %v2186
        %v4503 = vmul.f32 %v2187, %v2187
        %v4504 = vmul.f32 %v2188, %v2188
        %v4505 = vmul.f32 %v2189, %v2189
        %v4506 = vmul.f32 %v2190, %v2190
        %v4507 = vmul.f32 %v2191, %v2191
        %v4508 = vmul.f32 %v2192, %v2192
        %v4509 = vmul.f32 %v2193, %v2193
        %v4510 = vmul.f32 %v2194, %v2194
        %v4511 = vmul.f32 %v2195, %v2195
        %v4512 = vmul.f32 %v2196, %v2196
        %v4513 = vmul.f32 %v2197, %v2197
        %v4514 = vmul.f32 %v2198, %v2198
        %v4515 = vmul.f32 %v2199, %v2199
        %v4516 = vmul.f32 %v2200, %v2200
        %v4517 = vmul.f32 %v2201, %v2201
        %v4518 = vmul.f32 %v2202, %v2202
        %v4519 = vmul.f32 %v2203, %v2203
        %v4520 = vmul.f32 %v2204, %v2204
        %v4521 = vmul.f32 %v2205, %v2205
        %v4522 = vmul.f32 %v2206, %v2206
        %v4523 = vmul.f32 %v2207, %v2207
        %v4524 = vmul.f32 %v2208, %v2208
        %v4525 = vmul.f32 %v2209, %v2209
        %v4526 = vmul.f32 %v2210, %v2210
        %v4527 = vmul.f32 %v2211, %v2211
        %v4528 = vmul.f32 %v2212, %v2212
        %v4529 = vmul.f32 %v2213, %v2213
        %v4530 = vmul.f32 %v2214, %v2214
        %v4531 = vmul.f32 %v2215, %v2215
        %v4532 = vmul.f32 %v2216, %v2216
        %v4533 = vmul.f32 %v2217, %v2217
        %v4534 = vmul.f32 %v2218, %v2218
        %v4535 = vmul.f32 %v2219, %v2219
        %v4536 = vmul.f32 %v2220, %v2220
        %v4537 = vmul.f32 %v2221, %v2221
        %v4538 = vmul.f32 %v2222, %v2222
        %v4539 = vmul.f32 %v2223, %v2223
        %v4540 = vmul.f32 %v2224, %v2224
        %v4541 = vmul.f32 %v2225, %v2225
        %v4542 = vmul.f32 %v2226, %v2226
        %v4543 = vmul.f32 %v2227, %v2227
        %v4544 = vmul.f32 %v2228, %v2228
        %v4545 = vmul.f32 %v2229, %v2229
        %v4546 = vmul.f32 %v2230, %v2230
        %v4547 = vmul.f32 %v2231, %v2231
        %v4548 = vmul.f32 %v2232, %v2232
        %v4549 = vmul.f32 %v2233, %v2233
        %v4550 = vmul.f32 %v2234, %v2234
        %v4551 = vmul.f32 %v2235, %v2235
        %v4552 = vmul.f32 %v2236, %v2236
        %v4553 = vmul.f32 %v2237, %v2237
        %v4554 = vmul.f32 %v2238, %v2238
        %v4555 = vmul.f32 %v2239, %v2239
        %v4556 = vmul.f32 %v2240, %v2240
        %v4557 = vmul.f32 %v2241, %v2241
        %v4558 = vmul.f32 %v2242, %v2242
        %v4559 = vmul.f32 %v2243, %v2243
        %v4560 = vmul.f32 %v2244, %v2244
        %v4561 = vmul.f32 %v2245, %v2245
        %v4562 = vmul.f32 %v2246, %v2246
        %v4563 = vmul.f32 %v2247, %v2247
        %v4564 = vmul.f32 %v2248, %v2248
        %v4565 = vmul.f32 %v2249, %v2249
        %v4566 = vmul.f32 %v2250, %v2250
        %v4567 = vmul.f32 %v2251, %v2251
        %v4568 = vmul.f32 %v2252, %v2252
        %v4569 = vmul.f32 %v2253, %v2253
        %v4570 = vmul.f32 %v2254, %v2254
        %v4571 = vmul.f32 %v2255, %v2255
        %v4572 = vmul.f32 %v2256, %v2256
        %v4573 = vmul.f32 %v2257, %v2257
        %v4574 = vmul.f32 %v2258, %v2258
        %v4575 = vmul.f32 %v2259, %v2259
        %v4576 = vmul.f32 %v2260, %v2260
        %v4577 = vmul.f32 %v2261, %v2261
        %v4578 = vmul.f32 %v2262, %v2262
        %v4579 = vmul.f32 %v2263, %v2263
        %v4580 = vmul.f32 %v2264, %v2264
        %v4581 = vmul.f32 %v2265, %v2265
        %v4582 = vmul.f32 %v2266, %v2266
        %v4583 = vmul.f32 %v2267, %v2267
        %v4584 = vmul.f32 %v2268, %v2268
        %v4585 = vmul.f32 %v2269, %v2269
        %v4586 = vmul.f32 %v2270, %v2270
        %v4587 = vmul.f32 %v2271, %v2271
        %v4588 = vmul.f32 %v2272, %v2272
        %v4589 = vmul.f32 %v2273, %v2273
        %v4590 = vmul.f32 %v2274, %v2274
        %v4591 = vmul.f32 %v2275, %v2275
        %v4592 = vmul.f32 %v2276, %v2276
        %v4593 = vmul.f32 %v2277, %v2277
        %v4594 = vmul.f32 %v2278, %v2278
        %v4595 = vmul.f32 %v2279, %v2279
        %v4596 = vmul.f32 %v2280, %v2280
        %v4597 = vmul.f32 %v2281, %v2281
        %v4598 = vmul.f32 %v2282, %v2282
        %v4599 = vmul.f32 %v2283, %v2283
        %v4600 = vmul.f32 %v2284, %v2284
        %v4601 = vmul.f32 %v2285, %v2285
        %v4602 = vmul.f32 %v2286, %v2286
        %v4603 = vmul.f32 %v2287, %v2287
        %v4604 = vmul.f32 %v2288, %v2288
        %v4605 = vmul.f32 %v2289, %v2289
        %v4606 = vmul.f32 %v2290, %v2290
        %v4607 = vmul.f32 %v2291, %v2291
        %v4608 = vmul.f32 %v2292, %v2292
        %v4609 = vmul.f32 %v2293, %v2293
        %v4610 = vmul.f32 %v2294, %v2294
        %v4611 = vmul.f32 %v2295, %v2295
        %v4612 = vmul.f32 %v2296, %v2296
        %v4613 = vmul.f32 %v2297, %v2297
        %v4614 = vmul.f32 %v2298, %v2298
        %v4615 = vmul.f32 %v2299, %v2299
        %v4616 = vmul.f32 %v2300, %v2300
        %v4617 = vmul.f32 %v2301, %v2301
        %v4618 = vmul.f32 %v2302, %v2302
        %v4619 = vmul.f32 %v2303, %v2303
        %v4620 = vmul.f32 %v2304, %v2304
        %v4621 = vmul.f32 %v2305, %v2305
        %v4622 = vmul.f32 %v2306, %v2306
        %v4623 = vmul.f32 %v2307, %v2307
        %v4624 = vmul.f32 %v2308, %v2308
        %v4625 = vmul.f32 %v2309, %v2309
        %v4626 = vmul.f32 %v2310, %v2310
        %v4627 = vmul.f32 %v2311, %v2311
        %v4628 = vmul.f32 %v2312, %v2312
        %v4629 = vmul.f32 %v2313, %v2313
        %v4630 = vmul.f32 %v2314, %v2314
        %v4631 = vmul.f32 %v2315, %v2315
        %v4632 = vmul.f32 %v2316, %v2316
        %v4633 = vmul.f32 %v2317, %v2317
        %v4634 = vmul.f32 %v2318, %v2318
        %v4635 = vmul.f32 %v2319, %v2319
        %v4636 = vmul.f32 %v2320, %v2320
        %v4637 = vmul.f32 %v2321, %v2321
        %v4638 = vmul.f32 %v2322, %v2322
        %v4639 = vmul.f32 %v2323, %v2323
        %v4640 = vmul.f32 %v2324, %v2324
        %v4641 = vmul.f32 %v2325, %v2325
        %v4642 = vmul.f32 %v2326, %v2326
        %v4643 = vmul.f32 %v2327, %v2327
        %v4644 = vmul.f32 %v2328, %v2328
        %v4645 = vmul.f32 %v2329, %v2329
        %v4646 = vmul.f32 %v2330, %v2330
        %v4647 = vmul.f32 %v2331, %v2331
        %v4648 = vmul.f32 %v2332, %v2332
        %v4649 = vmul.f32 %v2333, %v2333
        %v4650 = vmul.f32 %v2334, %v2334
        %v4651 = vmul.f32 %v2335, %v2335
        %v4652 = vmul.f32 %v2336, %v2336
        %v4653 = vmul.f32 %v2337, %v2337
        %v4654 = vmul.f32 %v2338, %v2338
        %v4655 = vmul.f32 %v2339, %v2339
        %v4656 = vmul.f32 %v2340, %v2340
        %v4657 = vmul.f32 %v2341, %v2341
        %v4658 = vmul.f32 %v2342, %v2342
        %v4659 = vmul.f32 %v2343, %v2343
        %v4660 = vmul.f32 %v2344, %v2344
        %v4661 = vmul.f32 %v2345, %v2345
        %v4662 = vmul.f32 %v2346, %v2346
        %v4663 = vmul.f32 %v2347, %v2347
        %v4664 = vmul.f32 %v2348, %v2348
        %v4665 = vmul.f32 %v2349, %v2349
        %v4666 = vmul.f32 %v2350, %v2350
        %v4667 = vmul.f32 %v2351, %v2351
        %v4668 = vmul.f32 %v2352, %v2352
        %v4669 = vmul.f32 %v2353, %v2353
        %v4670 = vmul.f32 %v2354, %v2354
        %v4671 = vmul.f32 %v2355, %v2355
        %v4672 = vmul.f32 %v2356, %v2356
        %v4673 = vmul.f32 %v2357, %v2357
        %v4674 = vmul.f32 %v2358, %v2358
        %v4675 = vmul.f32 %v2359, %v2359
        %v4676 = vmul.f32 %v2360, %v2360
        %v4677 = vmul.f32 %v2361, %v2361
        %v4678 = vmul.f32 %v2362, %v2362
        %v4679 = vmul.f32 %v2363, %v2363
        %v4680 = vmul.f32 %v2364, %v2364
        %v4681 = vmul.f32 %v2365, %v2365
        %v4682 = vmul.f32 %v2366, %v2366
        %v4683 = vmul.f32 %v2367, %v2367
        %v4684 = vmul.f32 %v2368, %v2368
        %v4685 = vmul.f32 %v2369, %v2369
        %v4686 = vmul.f32 %v2370, %v2370
        %v4687 = vmul.f32 %v2371, %v2371
        %v4688 = vmul.f32 %v2372, %v2372
        %v4689 = vmul.f32 %v2373, %v2373
        %v4690 = vmul.f32 %v2374, %v2374
        %v4691 = vmul.f32 %v2375, %v2375
        %v4692 = vmul.f32 %v2376, %v2376
        %v4693 = vmul.f32 %v2377, %v2377
        %v4694 = vmul.f32 %v2378, %v2378
        %v4695 = vmul.f32 %v2379, %v2379
        %v4696 = vmul.f32 %v2380, %v2380
        %v4697 = vmul.f32 %v2381, %v2381
        %v4698 = vmul.f32 %v2382, %v2382
        %v4699 = vmul.f32 %v2383, %v2383
        %v4700 = vmul.f32 %v2384, %v2384
        %v4701 = vmul.f32 %v2385, %v2385
        %v4702 = vmul.f32 %v2386, %v2386
        %v4703 = vmul.f32 %v2387, %v2387
        %v4704 = vmul.f32 %v2388, %v2388
        %v4705 = vmul.f32 %v2389, %v2389
        %v4706 = vmul.f32 %v2390, %v2390
        %v4707 = vmul.f32 %v2391, %v2391
        %v4708 = vmul.f32 %v2392, %v2392
        %v4709 = vmul.f32 %v2393, %v2393
        %v4710 = vmul.f32 %v2394, %v2394
        %v4711 = vmul.f32 %v2395, %v2395
        %v4712 = vmul.f32 %v2396, %v2396
        %v4713 = vmul.f32 %v2397, %v2397
        %v4714 = vmul.f32 %v2398, %v2398
        %v4715 = vmul.f32 %v2399, %v2399
        %v4716 = vmul.f32 %v2400, %v2400
        %v4717 = vmul.f32 %v2401, %v2401
        %v4718 = vmul.f32 %v2402, %v2402
        %v4719 = vmul.f32 %v2403, %v2403
        %v4720 = vmul.f32 %v2404, %v2404
        %v4721 = vmul.f32 %v2405, %v2405
        %v4722 = vmul.f32 %v2406, %v2406
        %v4723 = vmul.f32 %v2407, %v2407
        %v4724 = vmul.f32 %v2408, %v2408
        %v4725 = vmul.f32 %v2409, %v2409
        %v4726 = vmul.f32 %v2410, %v2410
        %v4727 = vmul.f32 %v2411, %v2411
        %v4728 = vmul.f32 %v2412, %v2412
        %v4729 = vmul.f32 %v2413, %v2413
        %v4730 = vmul.f32 %v2414, %v2414
        %v4731 = vmul.f32 %v2415, %v2415
        %v4732 = vmul.f32 %v2416, %v2416
        %v4733 = vmul.f32 %v2417, %v2417
        %v4734 = vmul.f32 %v2418, %v2418
        %v4735 = vmul.f32 %v2419, %v2419
        %v4736 = vmul.f32 %v2420, %v2420
        %v4737 = vmul.f32 %v2421, %v2421
        %v4738 = vmul.f32 %v2422, %v2422
        %v4739 = vmul.f32 %v2423, %v2423
        %v4740 = vmul.f32 %v2424, %v2424
        %v4741 = vmul.f32 %v2425, %v2425
        %v4742 = vmul.f32 %v2426, %v2426
        %v4743 = vmul.f32 %v2427, %v2427
        %v4744 = vmul.f32 %v2428, %v2428
        %v4745 = vmul.f32 %v2429, %v2429
        %v4746 = vmul.f32 %v2430, %v2430
        %v4747 = vmul.f32 %v2431, %v2431
        %v4748 = vmul.f32 %v2432, %v2432
        %v4749 = vmul.f32 %v2433, %v2433
        %v4750 = vmul.f32 %v2434, %v2434
        %v4751 = vmul.f32 %v2435, %v2435
        %v4752 = vmul.f32 %v2436, %v2436
        %v4753 = vmul.f32 %v2437, %v2437
        %v4754 = vmul.f32 %v2438, %v2438
        %v4755 = vmul.f32 %v2439, %v2439
        %v4756 = vmul.f32 %v2440, %v2440
        %v4757 = vmul.f32 %v2441, %v2441
        %v4758 = vmul.f32 %v2442, %v2442
        %v4759 = vmul.f32 %v2443, %v2443
        %v4760 = vmul.f32 %v2444, %v2444
        %v4761 = vmul.f32 %v2445, %v2445
        %v4762 = vmul.f32 %v2446, %v2446
        %v4763 = vmul.f32 %v2447, %v2447
        %v4764 = vmul.f32 %v2448, %v2448
        %v4765 = vmul.f32 %v2449, %v2449
        %v4766 = vmul.f32 %v2450, %v2450
        %v4767 = vmul.f32 %v2451, %v2451
        %v4768 = vmul.f32 %v2452, %v2452
        %v4769 = vmul.f32 %v2453, %v2453
        %v4770 = vmul.f32 %v2454, %v2454
        %v4771 = vmul.f32 %v2455, %v2455
        %v4772 = vmul.f32 %v2456, %v2456
        %v4773 = vmul.f32 %v2457, %v2457
        %v4774 = vmul.f32 %v2458, %v2458
        %v4775 = vmul.f32 %v2459, %v2459
        %v4776 = vmul.f32 %v2460, %v2460
        %v4777 = vmul.f32 %v2461, %v2461
        %v4778 = vmul.f32 %v2462, %v2462
        %v4779 = vmul.f32 %v2463, %v2463
        %v4780 = vmul.f32 %v2464, %v2464
        %v4781 = vmul.f32 %v2465, %v2465
        %v4782 = vmul.f32 %v2466, %v2466
        %v4783 = vmul.f32 %v2467, %v2467
        %v4784 = vmul.f32 %v2468, %v2468
        %v4785 = vmul.f32 %v2469, %v2469
        %v4786 = vmul.f32 %v2470, %v2470
        %v4787 = vmul.f32 %v2471, %v2471
        %v4788 = vmul.f32 %v2472, %v2472
        %v4789 = vmul.f32 %v2473, %v2473
        %v4790 = vmul.f32 %v2474, %v2474
        %v4791 = vmul.f32 %v2475, %v2475
        %v4792 = vmul.f32 %v2476, %v2476
        %v4793 = vmul.f32 %v2477, %v2477
        %v4794 = vmul.f32 %v2478, %v2478
        %v4795 = vmul.f32 %v2479, %v2479
        %v4796 = vmul.f32 %v2480, %v2480
        %v4797 = vmul.f32 %v2481, %v2481
        %v4798 = vmul.f32 %v2482, %v2482
        %v4799 = vmul.f32 %v2483, %v2483
        %v4800 = vmul.f32 %v2484, %v2484
        %v4801 = vmul.f32 %v2485, %v2485
        %v4802 = vmul.f32 %v2486, %v2486
        %v4803 = vmul.f32 %v2487, %v2487
        %v4804 = vmul.f32 %v2488, %v2488
        %v4805 = vmul.f32 %v2489, %v2489
        %v4806 = vmul.f32 %v2490, %v2490
        %v4807 = vmul.f32 %v2491, %v2491
        %v4808 = vmul.f32 %v2492, %v2492
        %v4809 = vmul.f32 %v2493, %v2493
        %v4810 = vmul.f32 %v2494, %v2494
        %v4811 = vmul.f32 %v2495, %v2495
        %v4812 = vmul.f32 %v2496, %v2496
        %v4813 = vmul.f32 %v2497, %v2497
        %v4814 = vmul.f32 %v2498, %v2498
        %v4815 = vmul.f32 %v2499, %v2499
        %v4816 = vmul.f32 %v2500, %v2500
        %v4817 = vmul.f32 %v2501, %v2501
        %v4818 = vmul.f32 %v2502, %v2502
        %v4819 = vmul.f32 %v2503, %v2503
        %v4820 = vmul.f32 %v2504, %v2504
        %v4821 = vmul.f32 %v2505, %v2505
        %v4822 = vmul.f32 %v2506, %v2506
        %v4823 = vmul.f32 %v2507, %v2507
        %v4824 = vmul.f32 %v2508, %v2508
        %v4825 = vmul.f32 %v2509, %v2509
        %v4826 = vmul.f32 %v2510, %v2510
        %v4827 = vmul.f32 %v2511, %v2511
        %v4828 = vmul.f32 %v2512, %v2512
        %v4829 = vmul.f32 %v2513, %v2513
        %v4830 = vmul.f32 %v2514, %v2514
        %v4831 = vmul.f32 %v2515, %v2515
        %v4832 = vmul.f32 %v2516, %v2516
        %v4833 = vmul.f32 %v2517, %v2517
        %v4834 = vmul.f32 %v2518, %v2518
        %v4835 = vmul.f32 %v2519, %v2519
        %v4836 = vmul.f32 %v2520, %v2520
        %v4837 = vmul.f32 %v2521, %v2521
        %v4838 = vmul.f32 %v2522, %v2522
        %v4839 = vmul.f32 %v2523, %v2523
        %v4840 = vmul.f32 %v2524, %v2524
        %v4841 = vmul.f32 %v2525, %v2525
        %v4842 = vmul.f32 %v2526, %v2526
        %v4843 = vmul.f32 %v2527, %v2527
        %v4844 = vmul.f32 %v2528, %v2528
        %v4845 = vmul.f32 %v2529, %v2529
        %v4846 = vmul.f32 %v2530, %v2530
        %v4847 = vmul.f32 %v2531, %v2531
        %v4848 = vmul.f32 %v2532, %v2532
        %v4849 = vmul.f32 %v2533, %v2533
        %v4850 = vmul.f32 %v2534, %v2534
        %v4851 = vmul.f32 %v2535, %v2535
        %v4852 = vmul.f32 %v2536, %v2536
        %v4853 = vmul.f32 %v2537, %v2537
        %v4854 = vmul.f32 %v2538, %v2538
        %v4855 = vmul.f32 %v2539, %v2539
        %v4856 = vmul.f32 %v2540, %v2540
        %v4857 = vmul.f32 %v2541, %v2541
        %v4858 = vmul.f32 %v2542, %v2542
        %v4859 = vmul.f32 %v2543, %v2543
        %v4860 = vmul.f32 %v2544, %v2544
        %v4861 = vmul.f32 %v2545, %v2545
        %v4862 = vmul.f32 %v2546, %v2546
        %v4863 = vmul.f32 %v2547, %v2547
        %v4864 = vmul.f32 %v2548, %v2548
        %v4865 = vmul.f32 %v2549, %v2549
        %v4866 = vmul.f32 %v2550, %v2550
        %v4867 = vmul.f32 %v2551, %v2551
        %v4868 = vmul.f32 %v2552, %v2552
        %v4869 = vmul.f32 %v2553, %v2553
        %v4870 = vmul.f32 %v2554, %v2554
        %v4871 = vmul.f32 %v2555, %v2555
        %v4872 = vmul.f32 %v2556, %v2556
        %v4873 = vmul.f32 %v2557, %v2557
        %v4874 = vmul.f32 %v2558, %v2558
        %v4875 = vmul.f32 %v2559, %v2559
        %v4876 = vmul.f32 %v2560, %v2560
        %v4877 = vmul.f32 %v2561, %v2561
        %v4878 = vmul.f32 %v2562, %v2562
        %v4879 = vmul.f32 %v2563, %v2563
        %v4880 = vmul.f32 %v2564, %v2564
        %v4881 = vmul.f32 %v2565, %v2565
        %v4882 = vmul.f32 %v2566, %v2566
        %v4883 = vmul.f32 %v2567, %v2567
        %v4884 = vmul.f32 %v2568, %v2568
        %v4885 = vmul.f32 %v2569, %v2569
        %v4886 = vmul.f32 %v2570, %v2570
        %v4887 = vmul.f32 %v2571, %v2571
        %v4888 = vmul.f32 %v2572, %v2572
        %v4889 = vmul.f32 %v2573, %v2573
        %v4890 = vmul.f32 %v2574, %v2574
        %v4891 = vmul.f32 %v2575, %v2575
        %v4892 = vmul.f32 %v2576, %v2576
        %v4893 = vmul.f32 %v2577, %v2577
        %v4894 = vmul.f32 %v2578, %v2578
        %v4895 = vmul.f32 %v2579, %v2579
        %v4896 = vmul.f32 %v2580, %v2580
        %v4897 = vmul.f32 %v2581, %v2581
        %v4898 = vmul.f32 %v2582, %v2582
        %v4899 = vmul.f32 %v2583, %v2583
        %v4900 = vmul.f32 %v2584, %v2584
        %v4901 = vmul.f32 %v2585, %v2585
        %v4902 = vmul.f32 %v2586, %v2586
        %v4903 = vmul.f32 %v2587, %v2587
        %v4904 = vmul.f32 %v2588, %v2588
        %v4905 = vmul.f32 %v2589, %v2589
        %v4906 = vmul.f32 %v2590, %v2590
        %v4907 = vmul.f32 %v2591, %v2591
        %v4908 = vmul.f32 %v2592, %v2592
        %v4909 = vmul.f32 %v2593, %v2593
        %v4910 = vmul.f32 %v2594, %v2594
        %v4911 = vmul.f32 %v2595, %v2595
        %v4912 = vmul.f32 %v2596, %v2596
        %v4913 = vmul.f32 %v2597, %v2597
        %v4914 = vmul.f32 %v2598, %v2598
        %v4915 = vmul.f32 %v2599, %v2599
        %v4916 = vmul.f32 %v2600, %v2600
        %v4917 = vmul.f32 %v2601, %v2601
        %v4918 = vmul.f32 %v2602, %v2602
        %v4919 = vmul.f32 %v2603, %v2603
        %v4920 = vadd.f32 %v4152, %v4156
        %v4921 = vadd.f32 %v4920, %v4160
        %v4922 = vadd.f32 %v4921, %v4164
        %v4923 = vadd.f32 %v4922, %v4168
        %v4924 = vadd.f32 %v4923, %v4172
        %v4925 = vadd.f32 %v4924, %v4176
        %v4926 = vadd.f32 %v4925, %v4180
        %v4927 = vadd.f32 %v4926, %v4184
        %v4928 = vadd.f32 %v4927, %v4188
        %v4929 = vadd.f32 %v4928, %v4192
        %v4930 = vadd.f32 %v4929, %v4196
        %v4931 = vadd.f32 %v4930, %v4200
        %v4932 = vadd.f32 %v4931, %v4204
        %v4933 = vadd.f32 %v4932, %v4208
        %v4934 = vadd.f32 %v4933, %v4212
        %v4935 = vadd.f32 %v4934, %v4216
        %v4936 = vadd.f32 %v4935, %v4220
        %v4937 = vadd.f32 %v4936, %v4224
        %v4938 = vadd.f32 %v4937, %v4228
        %v4939 = vadd.f32 %v4938, %v4232
        %v4940 = vadd.f32 %v4939, %v4236
        %v4941 = vadd.f32 %v4940, %v4240
        %v4942 = vadd.f32 %v4941, %v4244
        %v4943 = vadd.f32 %v4942, %v4248
        %v4944 = vadd.f32 %v4943, %v4252
        %v4945 = vadd.f32 %v4944, %v4256
        %v4946 = vadd.f32 %v4945, %v4260
        %v4947 = vadd.f32 %v4946, %v4264
        %v4948 = vadd.f32 %v4947, %v4268
        %v4949 = vadd.f32 %v4948, %v4272
        %v4950 = vadd.f32 %v4949, %v4276
        %v4951 = vadd.f32 %v4950, %v4280
        %v4952 = vadd.f32 %v4951, %v4284
        %v4953 = vadd.f32 %v4952, %v4288
        %v4954 = vadd.f32 %v4953, %v4292
        %v4955 = vadd.f32 %v4954, %v4296
        %v4956 = vadd.f32 %v4955, %v4300
        %v4957 = vadd.f32 %v4956, %v4304
        %v4958 = vadd.f32 %v4957, %v4308
        %v4959 = vadd.f32 %v4958, %v4312
        %v4960 = vadd.f32 %v4959, %v4316
        %v4961 = vadd.f32 %v4960, %v4320
        %v4962 = vadd.f32 %v4961, %v4324
        %v4963 = vadd.f32 %v4962, %v4328
        %v4964 = vadd.f32 %v4963, %v4332
        %v4965 = vadd.f32 %v4964, %v4336
        %v4966 = vadd.f32 %v4965, %v4340
        %v4967 = vadd.f32 %v4966, %v4344
        %v4968 = vadd.f32 %v4967, %v4348
        %v4969 = vadd.f32 %v4968, %v4352
        %v4970 = vadd.f32 %v4969, %v4356
        %v4971 = vadd.f32 %v4970, %v4360
        %v4972 = vadd.f32 %v4971, %v4364
        %v4973 = vadd.f32 %v4972, %v4368
        %v4974 = vadd.f32 %v4973, %v4372
        %v4975 = vadd.f32 %v4974, %v4376
        %v4976 = vadd.f32 %v4975, %v4380
        %v4977 = vadd.f32 %v4976, %v4384
        %v4978 = vadd.f32 %v4977, %v4388
        %v4979 = vadd.f32 %v4978, %v4392
        %v4980 = vadd.f32 %v4979, %v4396
        %v4981 = vadd.f32 %v4980, %v4400
        %v4982 = vadd.f32 %v4981, %v4404
        %v4983 = vadd.f32 %v4982, %v4408
        %v4984 = vadd.f32 %v4983, %v4412
        %v4985 = vadd.f32 %v4984, %v4416
        %v4986 = vadd.f32 %v4985, %v4420
        %v4987 = vadd.f32 %v4986, %v4424
        %v4988 = vadd.f32 %v4987, %v4428
        %v4989 = vadd.f32 %v4988, %v4432
        %v4990 = vadd.f32 %v4989, %v4436
        %v4991 = vadd.f32 %v4990, %v4440
        %v4992 = vadd.f32 %v4991, %v4444
        %v4993 = vadd.f32 %v4992, %v4448
        %v4994 = vadd.f32 %v4993, %v4452
        %v4995 = vadd.f32 %v4994, %v4456
        %v4996 = vadd.f32 %v4995, %v4460
        %v4997 = vadd.f32 %v4996, %v4464
        %v4998 = vadd.f32 %v4997, %v4468
        %v4999 = vadd.f32 %v4998, %v4472
        %v5000 = vadd.f32 %v4999, %v4476
        %v5001 = vadd.f32 %v5000, %v4480
        %v5002 = vadd.f32 %v5001, %v4484
        %v5003 = vadd.f32 %v5002, %v4488
        %v5004 = vadd.f32 %v5003, %v4492
        %v5005 = vadd.f32 %v5004, %v4496
        %v5006 = vadd.f32 %v5005, %v4500
        %v5007 = vadd.f32 %v5006, %v4504
        %v5008 = vadd.f32 %v5007, %v4508
        %v5009 = vadd.f32 %v5008, %v4512
        %v5010 = vadd.f32 %v5009, %v4516
        %v5011 = vadd.f32 %v5010, %v4520
        %v5012 = vadd.f32 %v5011, %v4524
        %v5013 = vadd.f32 %v5012, %v4528
        %v5014 = vadd.f32 %v5013, %v4532
        %v5015 = vadd.f32 %v5014, %v4536
        %v5016 = vadd.f32 %v5015, %v4540
        %v5017 = vadd.f32 %v5016, %v4544
        %v5018 = vadd.f32 %v5017, %v4548
        %v5019 = vadd.f32 %v5018, %v4552
        %v5020 = vadd.f32 %v5019, %v4556
        %v5021 = vadd.f32 %v5020, %v4560
        %v5022 = vadd.f32 %v5021, %v4564
        %v5023 = vadd.f32 %v5022, %v4568
        %v5024 = vadd.f32 %v5023, %v4572
        %v5025 = vadd.f32 %v5024, %v4576
        %v5026 = vadd.f32 %v5025, %v4580
        %v5027 = vadd.f32 %v5026, %v4584
        %v5028 = vadd.f32 %v5027, %v4588
        %v5029 = vadd.f32 %v5028, %v4592
        %v5030 = vadd.f32 %v5029, %v4596
        %v5031 = vadd.f32 %v5030, %v4600
        %v5032 = vadd.f32 %v5031, %v4604
        %v5033 = vadd.f32 %v5032, %v4608
        %v5034 = vadd.f32 %v5033, %v4612
        %v5035 = vadd.f32 %v5034, %v4616
        %v5036 = vadd.f32 %v5035, %v4620
        %v5037 = vadd.f32 %v5036, %v4624
        %v5038 = vadd.f32 %v5037, %v4628
        %v5039 = vadd.f32 %v5038, %v4632
        %v5040 = vadd.f32 %v5039, %v4636
        %v5041 = vadd.f32 %v5040, %v4640
        %v5042 = vadd.f32 %v5041, %v4644
        %v5043 = vadd.f32 %v5042, %v4648
        %v5044 = vadd.f32 %v5043, %v4652
        %v5045 = vadd.f32 %v5044, %v4656
        %v5046 = vadd.f32 %v5045, %v4660
        %v5047 = vadd.f32 %v5046, %v4664
        %v5048 = vadd.f32 %v5047, %v4668
        %v5049 = vadd.f32 %v5048, %v4672
        %v5050 = vadd.f32 %v5049, %v4676
        %v5051 = vadd.f32 %v5050, %v4680
        %v5052 = vadd.f32 %v5051, %v4684
        %v5053 = vadd.f32 %v5052, %v4688
        %v5054 = vadd.f32 %v5053, %v4692
        %v5055 = vadd.f32 %v5054, %v4696
        %v5056 = vadd.f32 %v5055, %v4700
        %v5057 = vadd.f32 %v5056, %v4704
        %v5058 = vadd.f32 %v5057, %v4708
        %v5059 = vadd.f32 %v5058, %v4712
        %v5060 = vadd.f32 %v5059, %v4716
        %v5061 = vadd.f32 %v5060, %v4720
        %v5062 = vadd.f32 %v5061, %v4724
        %v5063 = vadd.f32 %v5062, %v4728
        %v5064 = vadd.f32 %v5063, %v4732
        %v5065 = vadd.f32 %v5064, %v4736
        %v5066 = vadd.f32 %v5065, %v4740
        %v5067 = vadd.f32 %v5066, %v4744
        %v5068 = vadd.f32 %v5067, %v4748
        %v5069 = vadd.f32 %v5068, %v4752
        %v5070 = vadd.f32 %v5069, %v4756
        %v5071 = vadd.f32 %v5070, %v4760
        %v5072 = vadd.f32 %v5071, %v4764
        %v5073 = vadd.f32 %v5072, %v4768
        %v5074 = vadd.f32 %v5073, %v4772
        %v5075 = vadd.f32 %v5074, %v4776
        %v5076 = vadd.f32 %v5075, %v4780
        %v5077 = vadd.f32 %v5076, %v4784
        %v5078 = vadd.f32 %v5077, %v4788
        %v5079 = vadd.f32 %v5078, %v4792
        %v5080 = vadd.f32 %v5079, %v4796
        %v5081 = vadd.f32 %v5080, %v4800
        %v5082 = vadd.f32 %v5081, %v4804
        %v5083 = vadd.f32 %v5082, %v4808
        %v5084 = vadd.f32 %v5083, %v4812
        %v5085 = vadd.f32 %v5084, %v4816
        %v5086 = vadd.f32 %v5085, %v4820
        %v5087 = vadd.f32 %v5086, %v4824
        %v5088 = vadd.f32 %v5087, %v4828
        %v5089 = vadd.f32 %v5088, %v4832
        %v5090 = vadd.f32 %v5089, %v4836
        %v5091 = vadd.f32 %v5090, %v4840
        %v5092 = vadd.f32 %v5091, %v4844
        %v5093 = vadd.f32 %v5092, %v4848
        %v5094 = vadd.f32 %v5093, %v4852
        %v5095 = vadd.f32 %v5094, %v4856
        %v5096 = vadd.f32 %v5095, %v4860
        %v5097 = vadd.f32 %v5096, %v4864
        %v5098 = vadd.f32 %v5097, %v4868
        %v5099 = vadd.f32 %v5098, %v4872
        %v5100 = vadd.f32 %v5099, %v4876
        %v5101 = vadd.f32 %v5100, %v4880
        %v5102 = vadd.f32 %v5101, %v4884
        %v5103 = vadd.f32 %v5102, %v4888
        %v5104 = vadd.f32 %v5103, %v4892
        %v5105 = vadd.f32 %v5104, %v4896
        %v5106 = vadd.f32 %v5105, %v4900
        %v5107 = vadd.f32 %v5106, %v4904
        %v5108 = vadd.f32 %v5107, %v4908
        %v5109 = vadd.f32 %v5108, %v4912
        %v5110 = vadd.f32 %v5109, %v4916
        %v5111 = vadd.f32 %v4153, %v4157
        %v5112 = vadd.f32 %v5111, %v4161
        %v5113 = vadd.f32 %v5112, %v4165
        %v5114 = vadd.f32 %v5113, %v4169
        %v5115 = vadd.f32 %v5114, %v4173
        %v5116 = vadd.f32 %v5115, %v4177
        %v5117 = vadd.f32 %v5116, %v4181
        %v5118 = vadd.f32 %v5117, %v4185
        %v5119 = vadd.f32 %v5118, %v4189
        %v5120 = vadd.f32 %v5119, %v4193
        %v5121 = vadd.f32 %v5120, %v4197
        %v5122 = vadd.f32 %v5121, %v4201
        %v5123 = vadd.f32 %v5122, %v4205
        %v5124 = vadd.f32 %v5123, %v4209
        %v5125 = vadd.f32 %v5124, %v4213
        %v5126 = vadd.f32 %v5125, %v4217
        %v5127 = vadd.f32 %v5126, %v4221
        %v5128 = vadd.f32 %v5127, %v4225
        %v5129 = vadd.f32 %v5128, %v4229
        %v5130 = vadd.f32 %v5129, %v4233
        %v5131 = vadd.f32 %v5130, %v4237
        %v5132 = vadd.f32 %v5131, %v4241
        %v5133 = vadd.f32 %v5132, %v4245
        %v5134 = vadd.f32 %v5133, %v4249
        %v5135 = vadd.f32 %v5134, %v4253
        %v5136 = vadd.f32 %v5135, %v4257
        %v5137 = vadd.f32 %v5136, %v4261
        %v5138 = vadd.f32 %v5137, %v4265
        %v5139 = vadd.f32 %v5138, %v4269
        %v5140 = vadd.f32 %v5139, %v4273
        %v5141 = vadd.f32 %v5140, %v4277
        %v5142 = vadd.f32 %v5141, %v4281
        %v5143 = vadd.f32 %v5142, %v4285
        %v5144 = vadd.f32 %v5143, %v4289
        %v5145 = vadd.f32 %v5144, %v4293
        %v5146 = vadd.f32 %v5145, %v4297
        %v5147 = vadd.f32 %v5146, %v4301
        %v5148 = vadd.f32 %v5147, %v4305
        %v5149 = vadd.f32 %v5148, %v4309
        %v5150 = vadd.f32 %v5149, %v4313
        %v5151 = vadd.f32 %v5150, %v4317
        %v5152 = vadd.f32 %v5151, %v4321
        %v5153 = vadd.f32 %v5152, %v4325
        %v5154 = vadd.f32 %v5153, %v4329
        %v5155 = vadd.f32 %v5154, %v4333
        %v5156 = vadd.f32 %v5155, %v4337
        %v5157 = vadd.f32 %v5156, %v4341
        %v5158 = vadd.f32 %v5157, %v4345
        %v5159 = vadd.f32 %v5158, %v4349
        %v5160 = vadd.f32 %v5159, %v4353
        %v5161 = vadd.f32 %v5160, %v4357
        %v5162 = vadd.f32 %v5161, %v4361
        %v5163 = vadd.f32 %v5162, %v4365
        %v5164 = vadd.f32 %v5163, %v4369
        %v5165 = vadd.f32 %v5164, %v4373
        %v5166 = vadd.f32 %v5165, %v4377
        %v5167 = vadd.f32 %v5166, %v4381
        %v5168 = vadd.f32 %v5167, %v4385
        %v5169 = vadd.f32 %v5168, %v4389
        %v5170 = vadd.f32 %v5169, %v4393
        %v5171 = vadd.f32 %v5170, %v4397
        %v5172 = vadd.f32 %v5171, %v4401
        %v5173 = vadd.f32 %v5172, %v4405
        %v5174 = vadd.f32 %v5173, %v4409
        %v5175 = vadd.f32 %v5174, %v4413
        %v5176 = vadd.f32 %v5175, %v4417
        %v5177 = vadd.f32 %v5176, %v4421
        %v5178 = vadd.f32 %v5177, %v4425
        %v5179 = vadd.f32 %v5178, %v4429
        %v5180 = vadd.f32 %v5179, %v4433
        %v5181 = vadd.f32 %v5180, %v4437
        %v5182 = vadd.f32 %v5181, %v4441
        %v5183 = vadd.f32 %v5182, %v4445
        %v5184 = vadd.f32 %v5183, %v4449
        %v5185 = vadd.f32 %v5184, %v4453
        %v5186 = vadd.f32 %v5185, %v4457
        %v5187 = vadd.f32 %v5186, %v4461
        %v5188 = vadd.f32 %v5187, %v4465
        %v5189 = vadd.f32 %v5188, %v4469
        %v5190 = vadd.f32 %v5189, %v4473
        %v5191 = vadd.f32 %v5190, %v4477
        %v5192 = vadd.f32 %v5191, %v4481
        %v5193 = vadd.f32 %v5192, %v4485
        %v5194 = vadd.f32 %v5193, %v4489
        %v5195 = vadd.f32 %v5194, %v4493
        %v5196 = vadd.f32 %v5195, %v4497
        %v5197 = vadd.f32 %v5196, %v4501
        %v5198 = vadd.f32 %v5197, %v4505
        %v5199 = vadd.f32 %v5198, %v4509
        %v5200 = vadd.f32 %v5199, %v4513
        %v5201 = vadd.f32 %v5200, %v4517
        %v5202 = vadd.f32 %v5201, %v4521
        %v5203 = vadd.f32 %v5202, %v4525
        %v5204 = vadd.f32 %v5203, %v4529
        %v5205 = vadd.f32 %v5204, %v4533
        %v5206 = vadd.f32 %v5205, %v4537
        %v5207 = vadd.f32 %v5206, %v4541
        %v5208 = vadd.f32 %v5207, %v4545
        %v5209 = vadd.f32 %v5208, %v4549
        %v5210 = vadd.f32 %v5209, %v4553
        %v5211 = vadd.f32 %v5210, %v4557
        %v5212 = vadd.f32 %v5211, %v4561
        %v5213 = vadd.f32 %v5212, %v4565
        %v5214 = vadd.f32 %v5213, %v4569
        %v5215 = vadd.f32 %v5214, %v4573
        %v5216 = vadd.f32 %v5215, %v4577
        %v5217 = vadd.f32 %v5216, %v4581
        %v5218 = vadd.f32 %v5217, %v4585
        %v5219 = vadd.f32 %v5218, %v4589
        %v5220 = vadd.f32 %v5219, %v4593
        %v5221 = vadd.f32 %v5220, %v4597
        %v5222 = vadd.f32 %v5221, %v4601
        %v5223 = vadd.f32 %v5222, %v4605
        %v5224 = vadd.f32 %v5223, %v4609
        %v5225 = vadd.f32 %v5224, %v4613
        %v5226 = vadd.f32 %v5225, %v4617
        %v5227 = vadd.f32 %v5226, %v4621
        %v5228 = vadd.f32 %v5227, %v4625
        %v5229 = vadd.f32 %v5228, %v4629
        %v5230 = vadd.f32 %v5229, %v4633
        %v5231 = vadd.f32 %v5230, %v4637
        %v5232 = vadd.f32 %v5231, %v4641
        %v5233 = vadd.f32 %v5232, %v4645
        %v5234 = vadd.f32 %v5233, %v4649
        %v5235 = vadd.f32 %v5234, %v4653
        %v5236 = vadd.f32 %v5235, %v4657
        %v5237 = vadd.f32 %v5236, %v4661
        %v5238 = vadd.f32 %v5237, %v4665
        %v5239 = vadd.f32 %v5238, %v4669
        %v5240 = vadd.f32 %v5239, %v4673
        %v5241 = vadd.f32 %v5240, %v4677
        %v5242 = vadd.f32 %v5241, %v4681
        %v5243 = vadd.f32 %v5242, %v4685
        %v5244 = vadd.f32 %v5243, %v4689
        %v5245 = vadd.f32 %v5244, %v4693
        %v5246 = vadd.f32 %v5245, %v4697
        %v5247 = vadd.f32 %v5246, %v4701
        %v5248 = vadd.f32 %v5247, %v4705
        %v5249 = vadd.f32 %v5248, %v4709
        %v5250 = vadd.f32 %v5249, %v4713
        %v5251 = vadd.f32 %v5250, %v4717
        %v5252 = vadd.f32 %v5251, %v4721
        %v5253 = vadd.f32 %v5252, %v4725
        %v5254 = vadd.f32 %v5253, %v4729
        %v5255 = vadd.f32 %v5254, %v4733
        %v5256 = vadd.f32 %v5255, %v4737
        %v5257 = vadd.f32 %v5256, %v4741
        %v5258 = vadd.f32 %v5257, %v4745
        %v5259 = vadd.f32 %v5258, %v4749
        %v5260 = vadd.f32 %v5259, %v4753
        %v5261 = vadd.f32 %v5260, %v4757
        %v5262 = vadd.f32 %v5261, %v4761
        %v5263 = vadd.f32 %v5262, %v4765
        %v5264 = vadd.f32 %v5263, %v4769
        %v5265 = vadd.f32 %v5264, %v4773
        %v5266 = vadd.f32 %v5265, %v4777
        %v5267 = vadd.f32 %v5266, %v4781
        %v5268 = vadd.f32 %v5267, %v4785
        %v5269 = vadd.f32 %v5268, %v4789
        %v5270 = vadd.f32 %v5269, %v4793
        %v5271 = vadd.f32 %v5270, %v4797
        %v5272 = vadd.f32 %v5271, %v4801
        %v5273 = vadd.f32 %v5272, %v4805
        %v5274 = vadd.f32 %v5273, %v4809
        %v5275 = vadd.f32 %v5274, %v4813
        %v5276 = vadd.f32 %v5275, %v4817
        %v5277 = vadd.f32 %v5276, %v4821
        %v5278 = vadd.f32 %v5277, %v4825
        %v5279 = vadd.f32 %v5278, %v4829
        %v5280 = vadd.f32 %v5279, %v4833
        %v5281 = vadd.f32 %v5280, %v4837
        %v5282 = vadd.f32 %v5281, %v4841
        %v5283 = vadd.f32 %v5282, %v4845
        %v5284 = vadd.f32 %v5283, %v4849
        %v5285 = vadd.f32 %v5284, %v4853
        %v5286 = vadd.f32 %v5285, %v4857
        %v5287 = vadd.f32 %v5286, %v4861
        %v5288 = vadd.f32 %v5287, %v4865
        %v5289 = vadd.f32 %v5288, %v4869
        %v5290 = vadd.f32 %v5289, %v4873
        %v5291 = vadd.f32 %v5290, %v4877
        %v5292 = vadd.f32 %v5291, %v4881
        %v5293 = vadd.f32 %v5292, %v4885
        %v5294 = vadd.f32 %v5293, %v4889
        %v5295 = vadd.f32 %v5294, %v4893
        %v5296 = vadd.f32 %v5295, %v4897
        %v5297 = vadd.f32 %v5296, %v4901
        %v5298 = vadd.f32 %v5297, %v4905
        %v5299 = vadd.f32 %v5298, %v4909
        %v5300 = vadd.f32 %v5299, %v4913
        %v5301 = vadd.f32 %v5300, %v4917
        %v5302 = vadd.f32 %v4154, %v4158
        %v5303 = vadd.f32 %v5302, %v4162
        %v5304 = vadd.f32 %v5303, %v4166
        %v5305 = vadd.f32 %v5304, %v4170
        %v5306 = vadd.f32 %v5305, %v4174
        %v5307 = vadd.f32 %v5306, %v4178
        %v5308 = vadd.f32 %v5307, %v4182
        %v5309 = vadd.f32 %v5308, %v4186
        %v5310 = vadd.f32 %v5309, %v4190
        %v5311 = vadd.f32 %v5310, %v4194
        %v5312 = vadd.f32 %v5311, %v4198
        %v5313 = vadd.f32 %v5312, %v4202
        %v5314 = vadd.f32 %v5313, %v4206
        %v5315 = vadd.f32 %v5314, %v4210
        %v5316 = vadd.f32 %v5315, %v4214
        %v5317 = vadd.f32 %v5316, %v4218
        %v5318 = vadd.f32 %v5317, %v4222
        %v5319 = vadd.f32 %v5318, %v4226
        %v5320 = vadd.f32 %v5319, %v4230
        %v5321 = vadd.f32 %v5320, %v4234
        %v5322 = vadd.f32 %v5321, %v4238
        %v5323 = vadd.f32 %v5322, %v4242
        %v5324 = vadd.f32 %v5323, %v4246
        %v5325 = vadd.f32 %v5324, %v4250
        %v5326 = vadd.f32 %v5325, %v4254
        %v5327 = vadd.f32 %v5326, %v4258
        %v5328 = vadd.f32 %v5327, %v4262
        %v5329 = vadd.f32 %v5328, %v4266
        %v5330 = vadd.f32 %v5329, %v4270
        %v5331 = vadd.f32 %v5330, %v4274
        %v5332 = vadd.f32 %v5331, %v4278
        %v5333 = vadd.f32 %v5332, %v4282
        %v5334 = vadd.f32 %v5333, %v4286
        %v5335 = vadd.f32 %v5334, %v4290
        %v5336 = vadd.f32 %v5335, %v4294
        %v5337 = vadd.f32 %v5336, %v4298
        %v5338 = vadd.f32 %v5337, %v4302
        %v5339 = vadd.f32 %v5338, %v4306
        %v5340 = vadd.f32 %v5339, %v4310
        %v5341 = vadd.f32 %v5340, %v4314
        %v5342 = vadd.f32 %v5341, %v4318
        %v5343 = vadd.f32 %v5342, %v4322
        %v5344 = vadd.f32 %v5343, %v4326
        %v5345 = vadd.f32 %v5344, %v4330
        %v5346 = vadd.f32 %v5345, %v4334
        %v5347 = vadd.f32 %v5346, %v4338
        %v5348 = vadd.f32 %v5347, %v4342
        %v5349 = vadd.f32 %v5348, %v4346
        %v5350 = vadd.f32 %v5349, %v4350
        %v5351 = vadd.f32 %v5350, %v4354
        %v5352 = vadd.f32 %v5351, %v4358
        %v5353 = vadd.f32 %v5352, %v4362
        %v5354 = vadd.f32 %v5353, %v4366
        %v5355 = vadd.f32 %v5354, %v4370
        %v5356 = vadd.f32 %v5355, %v4374
        %v5357 = vadd.f32 %v5356, %v4378
        %v5358 = vadd.f32 %v5357, %v4382
        %v5359 = vadd.f32 %v5358, %v4386
        %v5360 = vadd.f32 %v5359, %v4390
        %v5361 = vadd.f32 %v5360, %v4394
        %v5362 = vadd.f32 %v5361, %v4398
        %v5363 = vadd.f32 %v5362, %v4402
        %v5364 = vadd.f32 %v5363, %v4406
        %v5365 = vadd.f32 %v5364, %v4410
        %v5366 = vadd.f32 %v5365, %v4414
        %v5367 = vadd.f32 %v5366, %v4418
        %v5368 = vadd.f32 %v5367, %v4422
        %v5369 = vadd.f32 %v5368, %v4426
        %v5370 = vadd.f32 %v5369, %v4430
        %v5371 = vadd.f32 %v5370, %v4434
        %v5372 = vadd.f32 %v5371, %v4438
        %v5373 = vadd.f32 %v5372, %v4442
        %v5374 = vadd.f32 %v5373, %v4446
        %v5375 = vadd.f32 %v5374, %v4450
        %v5376 = vadd.f32 %v5375, %v4454
        %v5377 = vadd.f32 %v5376, %v4458
        %v5378 = vadd.f32 %v5377, %v4462
        %v5379 = vadd.f32 %v5378, %v4466
        %v5380 = vadd.f32 %v5379, %v4470
        %v5381 = vadd.f32 %v5380, %v4474
        %v5382 = vadd.f32 %v5381, %v4478
        %v5383 = vadd.f32 %v5382, %v4482
        %v5384 = vadd.f32 %v5383, %v4486
        %v5385 = vadd.f32 %v5384, %v4490
        %v5386 = vadd.f32 %v5385, %v4494
        %v5387 = vadd.f32 %v5386, %v4498
        %v5388 = vadd.f32 %v5387, %v4502
        %v5389 = vadd.f32 %v5388, %v4506
        %v5390 = vadd.f32 %v5389, %v4510
        %v5391 = vadd.f32 %v5390, %v4514
        %v5392 = vadd.f32 %v5391, %v4518
        %v5393 = vadd.f32 %v5392, %v4522
        %v5394 = vadd.f32 %v5393, %v4526
        %v5395 = vadd.f32 %v5394, %v4530
        %v5396 = vadd.f32 %v5395, %v4534
        %v5397 = vadd.f32 %v5396, %v4538
        %v5398 = vadd.f32 %v5397, %v4542
        %v5399 = vadd.f32 %v5398, %v4546
        %v5400 = vadd.f32 %v5399, %v4550
        %v5401 = vadd.f32 %v5400, %v4554
        %v5402 = vadd.f32 %v5401, %v4558
        %v5403 = vadd.f32 %v5402, %v4562
        %v5404 = vadd.f32 %v5403, %v4566
        %v5405 = vadd.f32 %v5404, %v4570
        %v5406 = vadd.f32 %v5405, %v4574
        %v5407 = vadd.f32 %v5406, %v4578
        %v5408 = vadd.f32 %v5407, %v4582
        %v5409 = vadd.f32 %v5408, %v4586
        %v5410 = vadd.f32 %v5409, %v4590
        %v5411 = vadd.f32 %v5410, %v4594
        %v5412 = vadd.f32 %v5411, %v4598
        %v5413 = vadd.f32 %v5412, %v4602
        %v5414 = vadd.f32 %v5413, %v4606
        %v5415 = vadd.f32 %v5414, %v4610
        %v5416 = vadd.f32 %v5415, %v4614
        %v5417 = vadd.f32 %v5416, %v4618
        %v5418 = vadd.f32 %v5417, %v4622
        %v5419 = vadd.f32 %v5418, %v4626
        %v5420 = vadd.f32 %v5419, %v4630
        %v5421 = vadd.f32 %v5420, %v4634
        %v5422 = vadd.f32 %v5421, %v4638
        %v5423 = vadd.f32 %v5422, %v4642
        %v5424 = vadd.f32 %v5423, %v4646
        %v5425 = vadd.f32 %v5424, %v4650
        %v5426 = vadd.f32 %v5425, %v4654
        %v5427 = vadd.f32 %v5426, %v4658
        %v5428 = vadd.f32 %v5427, %v4662
        %v5429 = vadd.f32 %v5428, %v4666
        %v5430 = vadd.f32 %v5429, %v4670
        %v5431 = vadd.f32 %v5430, %v4674
        %v5432 = vadd.f32 %v5431, %v4678
        %v5433 = vadd.f32 %v5432, %v4682
        %v5434 = vadd.f32 %v5433, %v4686
        %v5435 = vadd.f32 %v5434, %v4690
        %v5436 = vadd.f32 %v5435, %v4694
        %v5437 = vadd.f32 %v5436, %v4698
        %v5438 = vadd.f32 %v5437, %v4702
        %v5439 = vadd.f32 %v5438, %v4706
        %v5440 = vadd.f32 %v5439, %v4710
        %v5441 = vadd.f32 %v5440, %v4714
        %v5442 = vadd.f32 %v5441, %v4718
        %v5443 = vadd.f32 %v5442, %v4722
        %v5444 = vadd.f32 %v5443, %v4726
        %v5445 = vadd.f32 %v5444, %v4730
        %v5446 = vadd.f32 %v5445, %v4734
        %v5447 = vadd.f32 %v5446, %v4738
        %v5448 = vadd.f32 %v5447, %v4742
        %v5449 = vadd.f32 %v5448, %v4746
        %v5450 = vadd.f32 %v5449, %v4750
        %v5451 = vadd.f32 %v5450, %v4754
        %v5452 = vadd.f32 %v5451, %v4758
        %v5453 = vadd.f32 %v5452, %v4762
        %v5454 = vadd.f32 %v5453, %v4766
        %v5455 = vadd.f32 %v5454, %v4770
        %v5456 = vadd.f32 %v5455, %v4774
        %v5457 = vadd.f32 %v5456, %v4778
        %v5458 = vadd.f32 %v5457, %v4782
        %v5459 = vadd.f32 %v5458, %v4786
        %v5460 = vadd.f32 %v5459, %v4790
        %v5461 = vadd.f32 %v5460, %v4794
        %v5462 = vadd.f32 %v5461, %v4798
        %v5463 = vadd.f32 %v5462, %v4802
        %v5464 = vadd.f32 %v5463, %v4806
        %v5465 = vadd.f32 %v5464, %v4810
        %v5466 = vadd.f32 %v5465, %v4814
        %v5467 = vadd.f32 %v5466, %v4818
        %v5468 = vadd.f32 %v5467, %v4822
        %v5469 = vadd.f32 %v5468, %v4826
        %v5470 = vadd.f32 %v5469, %v4830
        %v5471 = vadd.f32 %v5470, %v4834
        %v5472 = vadd.f32 %v5471, %v4838
        %v5473 = vadd.f32 %v5472, %v4842
        %v5474 = vadd.f32 %v5473, %v4846
        %v5475 = vadd.f32 %v5474, %v4850
        %v5476 = vadd.f32 %v5475, %v4854
        %v5477 = vadd.f32 %v5476, %v4858
        %v5478 = vadd.f32 %v5477, %v4862
        %v5479 = vadd.f32 %v5478, %v4866
        %v5480 = vadd.f32 %v5479, %v4870
        %v5481 = vadd.f32 %v5480, %v4874
        %v5482 = vadd.f32 %v5481, %v4878
        %v5483 = vadd.f32 %v5482, %v4882
        %v5484 = vadd.f32 %v5483, %v4886
        %v5485 = vadd.f32 %v5484, %v4890
        %v5486 = vadd.f32 %v5485, %v4894
        %v5487 = vadd.f32 %v5486, %v4898
        %v5488 = vadd.f32 %v5487, %v4902
        %v5489 = vadd.f32 %v5488, %v4906
        %v5490 = vadd.f32 %v5489, %v4910
        %v5491 = vadd.f32 %v5490, %v4914
        %v5492 = vadd.f32 %v5491, %v4918
        %v5493 = vadd.f32 %v4155, %v4159
        %v5494 = vadd.f32 %v5493, %v4163
        %v5495 = vadd.f32 %v5494, %v4167
        %v5496 = vadd.f32 %v5495, %v4171
        %v5497 = vadd.f32 %v5496, %v4175
        %v5498 = vadd.f32 %v5497, %v4179
        %v5499 = vadd.f32 %v5498, %v4183
        %v5500 = vadd.f32 %v5499, %v4187
        %v5501 = vadd.f32 %v5500, %v4191
        %v5502 = vadd.f32 %v5501, %v4195
        %v5503 = vadd.f32 %v5502, %v4199
        %v5504 = vadd.f32 %v5503, %v4203
        %v5505 = vadd.f32 %v5504, %v4207
        %v5506 = vadd.f32 %v5505, %v4211
        %v5507 = vadd.f32 %v5506, %v4215
        %v5508 = vadd.f32 %v5507, %v4219
        %v5509 = vadd.f32 %v5508, %v4223
        %v5510 = vadd.f32 %v5509, %v4227
        %v5511 = vadd.f32 %v5510, %v4231
        %v5512 = vadd.f32 %v5511, %v4235
        %v5513 = vadd.f32 %v5512, %v4239
        %v5514 = vadd.f32 %v5513, %v4243
        %v5515 = vadd.f32 %v5514, %v4247
        %v5516 = vadd.f32 %v5515, %v4251
        %v5517 = vadd.f32 %v5516, %v4255
        %v5518 = vadd.f32 %v5517, %v4259
        %v5519 = vadd.f32 %v5518, %v4263
        %v5520 = vadd.f32 %v5519, %v4267
        %v5521 = vadd.f32 %v5520, %v4271
        %v5522 = vadd.f32 %v5521, %v4275
        %v5523 = vadd.f32 %v5522, %v4279
        %v5524 = vadd.f32 %v5523, %v4283
        %v5525 = vadd.f32 %v5524, %v4287
        %v5526 = vadd.f32 %v5525, %v4291
        %v5527 = vadd.f32 %v5526, %v4295
        %v5528 = vadd.f32 %v5527, %v4299
        %v5529 = vadd.f32 %v5528, %v4303
        %v5530 = vadd.f32 %v5529, %v4307
        %v5531 = vadd.f32 %v5530, %v4311
        %v5532 = vadd.f32 %v5531, %v4315
        %v5533 = vadd.f32 %v5532, %v4319
        %v5534 = vadd.f32 %v5533, %v4323
        %v5535 = vadd.f32 %v5534, %v4327
        %v5536 = vadd.f32 %v5535, %v4331
        %v5537 = vadd.f32 %v5536, %v4335
        %v5538 = vadd.f32 %v5537, %v4339
        %v5539 = vadd.f32 %v5538, %v4343
        %v5540 = vadd.f32 %v5539, %v4347
        %v5541 = vadd.f32 %v5540, %v4351
        %v5542 = vadd.f32 %v5541, %v4355
        %v5543 = vadd.f32 %v5542, %v4359
        %v5544 = vadd.f32 %v5543, %v4363
        %v5545 = vadd.f32 %v5544, %v4367
        %v5546 = vadd.f32 %v5545, %v4371
        %v5547 = vadd.f32 %v5546, %v4375
        %v5548 = vadd.f32 %v5547, %v4379
        %v5549 = vadd.f32 %v5548, %v4383
        %v5550 = vadd.f32 %v5549, %v4387
        %v5551 = vadd.f32 %v5550, %v4391
        %v5552 = vadd.f32 %v5551, %v4395
        %v5553 = vadd.f32 %v5552, %v4399
        %v5554 = vadd.f32 %v5553, %v4403
        %v5555 = vadd.f32 %v5554, %v4407
        %v5556 = vadd.f32 %v5555, %v4411
        %v5557 = vadd.f32 %v5556, %v4415
        %v5558 = vadd.f32 %v5557, %v4419
        %v5559 = vadd.f32 %v5558, %v4423
        %v5560 = vadd.f32 %v5559, %v4427
        %v5561 = vadd.f32 %v5560, %v4431
        %v5562 = vadd.f32 %v5561, %v4435
        %v5563 = vadd.f32 %v5562, %v4439
        %v5564 = vadd.f32 %v5563, %v4443
        %v5565 = vadd.f32 %v5564, %v4447
        %v5566 = vadd.f32 %v5565, %v4451
        %v5567 = vadd.f32 %v5566, %v4455
        %v5568 = vadd.f32 %v5567, %v4459
        %v5569 = vadd.f32 %v5568, %v4463
        %v5570 = vadd.f32 %v5569, %v4467
        %v5571 = vadd.f32 %v5570, %v4471
        %v5572 = vadd.f32 %v5571, %v4475
        %v5573 = vadd.f32 %v5572, %v4479
        %v5574 = vadd.f32 %v5573, %v4483
        %v5575 = vadd.f32 %v5574, %v4487
        %v5576 = vadd.f32 %v5575, %v4491
        %v5577 = vadd.f32 %v5576, %v4495
        %v5578 = vadd.f32 %v5577, %v4499
        %v5579 = vadd.f32 %v5578, %v4503
        %v5580 = vadd.f32 %v5579, %v4507
        %v5581 = vadd.f32 %v5580, %v4511
        %v5582 = vadd.f32 %v5581, %v4515
        %v5583 = vadd.f32 %v5582, %v4519
        %v5584 = vadd.f32 %v5583, %v4523
        %v5585 = vadd.f32 %v5584, %v4527
        %v5586 = vadd.f32 %v5585, %v4531
        %v5587 = vadd.f32 %v5586, %v4535
        %v5588 = vadd.f32 %v5587, %v4539
        %v5589 = vadd.f32 %v5588, %v4543
        %v5590 = vadd.f32 %v5589, %v4547
        %v5591 = vadd.f32 %v5590, %v4551
        %v5592 = vadd.f32 %v5591, %v4555
        %v5593 = vadd.f32 %v5592, %v4559
        %v5594 = vadd.f32 %v5593, %v4563
        %v5595 = vadd.f32 %v5594, %v4567
        %v5596 = vadd.f32 %v5595, %v4571
        %v5597 = vadd.f32 %v5596, %v4575
        %v5598 = vadd.f32 %v5597, %v4579
        %v5599 = vadd.f32 %v5598, %v4583
        %v5600 = vadd.f32 %v5599, %v4587
        %v5601 = vadd.f32 %v5600, %v4591
        %v5602 = vadd.f32 %v5601, %v4595
        %v5603 = vadd.f32 %v5602, %v4599
        %v5604 = vadd.f32 %v5603, %v4603
        %v5605 = vadd.f32 %v5604, %v4607
        %v5606 = vadd.f32 %v5605, %v4611
        %v5607 = vadd.f32 %v5606, %v4615
        %v5608 = vadd.f32 %v5607, %v4619
        %v5609 = vadd.f32 %v5608, %v4623
        %v5610 = vadd.f32 %v5609, %v4627
        %v5611 = vadd.f32 %v5610, %v4631
        %v5612 = vadd.f32 %v5611, %v4635
        %v5613 = vadd.f32 %v5612, %v4639
        %v5614 = vadd.f32 %v5613, %v4643
        %v5615 = vadd.f32 %v5614, %v4647
        %v5616 = vadd.f32 %v5615, %v4651
        %v5617 = vadd.f32 %v5616, %v4655
        %v5618 = vadd.f32 %v5617, %v4659
        %v5619 = vadd.f32 %v5618, %v4663
        %v5620 = vadd.f32 %v5619, %v4667
        %v5621 = vadd.f32 %v5620, %v4671
        %v5622 = vadd.f32 %v5621, %v4675
        %v5623 = vadd.f32 %v5622, %v4679
        %v5624 = vadd.f32 %v5623, %v4683
        %v5625 = vadd.f32 %v5624, %v4687
        %v5626 = vadd.f32 %v5625, %v4691
        %v5627 = vadd.f32 %v5626, %v4695
        %v5628 = vadd.f32 %v5627, %v4699
        %v5629 = vadd.f32 %v5628, %v4703
        %v5630 = vadd.f32 %v5629, %v4707
        %v5631 = vadd.f32 %v5630, %v4711
        %v5632 = vadd.f32 %v5631, %v4715
        %v5633 = vadd.f32 %v5632, %v4719
        %v5634 = vadd.f32 %v5633, %v4723
        %v5635 = vadd.f32 %v5634, %v4727
        %v5636 = vadd.f32 %v5635, %v4731
        %v5637 = vadd.f32 %v5636, %v4735
        %v5638 = vadd.f32 %v5637, %v4739
        %v5639 = vadd.f32 %v5638, %v4743
        %v5640 = vadd.f32 %v5639, %v4747
        %v5641 = vadd.f32 %v5640, %v4751
        %v5642 = vadd.f32 %v5641, %v4755
        %v5643 = vadd.f32 %v5642, %v4759
        %v5644 = vadd.f32 %v5643, %v4763
        %v5645 = vadd.f32 %v5644, %v4767
        %v5646 = vadd.f32 %v5645, %v4771
        %v5647 = vadd.f32 %v5646, %v4775
        %v5648 = vadd.f32 %v5647, %v4779
        %v5649 = vadd.f32 %v5648, %v4783
        %v5650 = vadd.f32 %v5649, %v4787
        %v5651 = vadd.f32 %v5650, %v4791
        %v5652 = vadd.f32 %v5651, %v4795
        %v5653 = vadd.f32 %v5652, %v4799
        %v5654 = vadd.f32 %v5653, %v4803
        %v5655 = vadd.f32 %v5654, %v4807
        %v5656 = vadd.f32 %v5655, %v4811
        %v5657 = vadd.f32 %v5656, %v4815
        %v5658 = vadd.f32 %v5657, %v4819
        %v5659 = vadd.f32 %v5658, %v4823
        %v5660 = vadd.f32 %v5659, %v4827
        %v5661 = vadd.f32 %v5660, %v4831
        %v5662 = vadd.f32 %v5661, %v4835
        %v5663 = vadd.f32 %v5662, %v4839
        %v5664 = vadd.f32 %v5663, %v4843
        %v5665 = vadd.f32 %v5664, %v4847
        %v5666 = vadd.f32 %v5665, %v4851
        %v5667 = vadd.f32 %v5666, %v4855
        %v5668 = vadd.f32 %v5667, %v4859
        %v5669 = vadd.f32 %v5668, %v4863
        %v5670 = vadd.f32 %v5669, %v4867
        %v5671 = vadd.f32 %v5670, %v4871
        %v5672 = vadd.f32 %v5671, %v4875
        %v5673 = vadd.f32 %v5672, %v4879
        %v5674 = vadd.f32 %v5673, %v4883
        %v5675 = vadd.f32 %v5674, %v4887
        %v5676 = vadd.f32 %v5675, %v4891
        %v5677 = vadd.f32 %v5676, %v4895
        %v5678 = vadd.f32 %v5677, %v4899
        %v5679 = vadd.f32 %v5678, %v4903
        %v5680 = vadd.f32 %v5679, %v4907
        %v5681 = vadd.f32 %v5680, %v4911
        %v5682 = vadd.f32 %v5681, %v4915
        %v5683 = vadd.f32 %v5682, %v4919
        %v5684 = vadd.f32 %v4148, %v5110
        %v5685 = vadd.f32 %v4149, %v5301
        %v5686 = vadd.f32 %v4150, %v5492
        %v5687 = vadd.f32 %v4151, %v5683
        %5688 = vst [vmem:[#allocation3] sm:$0xff] %v5684
        %5689 = vst [vmem:[#allocation3 + $0x8] sm:$0xff] %v5685
        %5690 = vst [vmem:[#allocation3 + $0x10] sm:$0xff] %v5686
        %5691 = vst [vmem:[#allocation3 + $0x18] sm:$0xff] %v5687
        %p5692 = scmp.eq.s32.totalorder %s26, 1
        // Predicated region
        $region41: #{tpu_custom_call.1} parent=27 // pred_check
          %p5693 = pneg %p5692
        $region42: #{tpu_custom_call.1} parent=27 // pred_check_branch
          %5695 = sbr.rel (%p5693) target = $region44
        $region43: #{tpu_custom_call.1} parent=27 // pred_region
          %v5696 = vld [vmem:[#allocation2] sm:$0xff]
          %v5697 = vld [vmem:[#allocation2 + $0x8] sm:$0xff]
          %v5698 = vld [vmem:[#allocation2 + $0x10] sm:$0xff]
          %v5699 = vld [vmem:[#allocation2 + $0x18] sm:$0xff]
          %v5700 = vadd.f32 %v5696, %v5697
          %v5701 = vadd.f32 %v5700, %v5698
          %v5702 = vadd.f32 %v5701, %v5699
          %5703 = vadd.xlane.f32.xlu0 %v5702
          %v5704 = vpop.xlane.xlu0 %5703
          %v5705 = vrot.slane %v5704, 4
          %v5706 = vadd.f32 %v5704, %v5705
          %v5707 = vrot.slane %v5706, 2
          %v5708 = vadd.f32 %v5706, %v5707
          %v5709 = vrot.slane %v5708, 1
          %v5710 = vadd.f32 %v5708, %v5709
          %s5711 = vtos %v5710
          %v5712 = vstv %s5711
          %vm5713 = vcmask 0
          %5714 = vst.msk [vmem:[%s284] sm:$0x1] %vm5713, %v5712
          %v5715 = vld [vmem:[#allocation3] sm:$0xff]
          %v5716 = vld [vmem:[#allocation3 + $0x8] sm:$0xff]
          %v5717 = vld [vmem:[#allocation3 + $0x10] sm:$0xff]
          %v5718 = vld [vmem:[#allocation3 + $0x18] sm:$0xff]
          %v5719 = vadd.f32 %v5715, %v5716
          %v5720 = vadd.f32 %v5719, %v5717
          %v5721 = vadd.f32 %v5720, %v5718
          %5722 = vadd.xlane.f32.xlu0 %v5721
          %v5723 = vpop.xlane.xlu0 %5722
          %v5724 = vrot.slane %v5723, 4
          %v5725 = vadd.f32 %v5723, %v5724
          %v5726 = vrot.slane %v5725, 2
          %v5727 = vadd.f32 %v5725, %v5726
          %v5728 = vrot.slane %v5727, 1
          %v5729 = vadd.f32 %v5727, %v5728
          %s5730 = vtos %v5729
          %v5731 = vstv %s5730
          %5732 = vst.msk [vmem:[%s287] sm:$0x1] %vm5713, %v5731
        $region44: #{tpu_custom_call.1} parent=27 // pred_fallthru
          _
        %p5733 = scmp.lt.s32.totalorder %s25, 1
        %s5734 = scalar_select %p5733, %s25, 1
        %s5735 = scalar_lea.vmem %s2, %s5734
        %p5736 = scmp.lt.s32.totalorder %s25, 1
        %s5737 = scalar_select %p5736, %s25, 1
        %s5738 = scalar_lea.vmem %s3, %s5737
        // Predicated region
        $region45: #{tpu_custom_call.1} parent=27 // pred_check
          %p5739 = pneg %p119
        $region46: #{tpu_custom_call.1} parent=27 // pred_check_branch
          %5741 = sbr.rel (%p5739) target = $region48
        $region47: #{tpu_custom_call.1} parent=27 // pred_region
          _
        $region48: #{tpu_custom_call.1} parent=27 // pred_fallthru
          _
        // Predicated region
        $region49: #{tpu_custom_call.1} parent=27 // pred_check
          %p5742 = pneg %p145
        $region50: #{tpu_custom_call.1} parent=27 // pred_check_branch
          %5744 = sbr.rel (%p5742) target = $region52
        $region51: #{tpu_custom_call.1} parent=27 // pred_region
          _
        $region52: #{tpu_custom_call.1} parent=27 // pred_fallthru
          _
      $region28: #{tpu_custom_call.1} parent=5 // pred_fallthru
        _
      %p5745 = scmp.le.s32.totalorder 2, %s16
      // Predicated region
      $region53: #{tpu_custom_call.1} parent=5 // pred_check
        %p5746 = pneg %p5745
      $region54: #{tpu_custom_call.1} parent=5 // pred_check_branch
        %5748 = sbr.rel (%p5746) target = $region56
      $region55: #{tpu_custom_call.1} parent=5 // pred_region
        %s5749 = ssub.s32 %s16, 2
        // Predicated region
        $region57: #{tpu_custom_call.1} parent=55 // pred_check
          %p5750 = pneg %p125
        $region58: #{tpu_custom_call.1} parent=55 // pred_check_branch
          %5752 = sbr.rel (%p5750) target = $region60
        $region59: #{tpu_custom_call.1} parent=55 // pred_region
          %p5753 = scmp.lt.s32.totalorder %s27, 1
          %s5754 = scalar_select %p5753, %s27, 1
          %s5755 = scalar_lea.vmem %s2, %s5754
        $region60: #{tpu_custom_call.1} parent=55 // pred_fallthru
          _
        // Predicated region
        $region61: #{tpu_custom_call.1} parent=55 // pred_check
          %p5756 = pneg %p151
        $region62: #{tpu_custom_call.1} parent=55 // pred_check_branch
          %5758 = sbr.rel (%p5756) target = $region64
        $region63: #{tpu_custom_call.1} parent=55 // pred_region
          %p5759 = scmp.lt.s32.totalorder %s27, 1
          %s5760 = scalar_select %p5759, %s27, 1
          %s5761 = scalar_lea.vmem %s3, %s5760
        $region64: #{tpu_custom_call.1} parent=55 // pred_fallthru
          _
      $region56: #{tpu_custom_call.1} parent=5 // pred_fallthru
        _
    $region6: #{tpu_custom_call.1} parent=1 // loop_footer
      %s20 = sadd.s32 1, %s16
    $region7: #{tpu_custom_call.1} parent=1 // loop_footer_branch
      %15 = sbr.rel target = $region3
    $region8: #{tpu_custom_call.1} parent=1 // loop_exit
      _
    %5762 = vsyncpa [#allocation5], 1
    %s5763 = scalar_lea.sflag [#allocation5], 1
    %5764 = vsyncpa %s5763, 1
    %5765 = vsyncpa [#allocation7], 1
    %s5766 = scalar_lea.sflag [#allocation7], 1
    %5767 = vsyncpa %s5766, 1

</llo_original>
